<compile_context>
chip_gen: v7x
topology: tpu7x:2x2x1
jax: 0.10.0
libtpu: 0.0.40
codegen_flags: <defaults>
</compile_context>

<pallas_src>
import functools
import math

import jax
import jax.numpy as jnp
from jax import lax
from jax.experimental import pallas as pl
from jax.experimental.pallas import tpu as pltpu


def _layernorm(v, scale, shift, eps=1e-5):
    # v: (rows, E) f32; scale/shift: (1, E).  Unbiased variance (E-1),
    # matching torch.var's default used by the reference LayerNorm.
    E = v.shape[-1]
    mean = jnp.mean(v, axis=-1, keepdims=True)
    centered = v - mean
    var = jnp.sum(centered * centered, axis=-1, keepdims=True) / (E - 1)
    return scale * (centered / jnp.sqrt(var + eps)) + shift


def _gelu(v):
    c = math.sqrt(2.0 / math.pi)
    return 0.5 * v * (1.0 + jnp.tanh(c * (v + 0.044715 * v * v * v)))


def transformer_block_kernel(
    x_ref,                        # (T, E)  full sequence for this batch elem
    ln1_s_ref, ln1_b_ref,         # (1, E)
    wq_ref,                       # (E, E)   query projection (compute dtype)
    wkv_ref,                      # (E, 2E)  fused key/value projection
    ln2_s_ref, ln2_b_ref,         # (1, E)
    w1_ref, b1_ref, w2_ref, b2_ref,
    o_ref,                        # (tq, E) output rows for this query tile
    kT_scr,                       # (H, Dh, T) persistent K^T (compute dtype)
    v_scr,                        # (H, T, Dh) persistent V   (compute dtype)
    *, num_heads, softmax_approx_recip,
):
    T, E = x_ref.shape
    tq = o_ref.shape[0]
    H = num_heads
    Dh = E // H
    cdt = wq_ref.dtype            # matmul compute dtype (bf16 or f32)

    qi = pl.program_id(1)
    qstart = pl.multiple_of(qi * tq, tq)

    ln1_s = ln1_s_ref[...].astype(jnp.float32)
    ln1_b = ln1_b_ref[...].astype(jnp.float32)

    # ---- K/V projection: once per batch element (q axis is "arbitrary",
    #      K/V scratch persists across the query tiles of this batch elem) ----
    @pl.when(qi == 0)
    def _compute_kv():
        x_f = x_ref[...].astype(jnp.float32)                   # (T, E)
        h_f = _layernorm(x_f, ln1_s, ln1_b)
        kv = jnp.dot(h_f.astype(cdt), wkv_ref[...],
                     preferred_element_type=jnp.float32)       # (T, 2E)
        kv_c = kv.astype(cdt)
        for hh in range(H):                                    # static unroll
            sl = slice(hh * Dh, (hh + 1) * Dh)
            # Store K transposed so per-tile QK^T is a plain lane-dense matmul
            # (transpose cost paid once per batch element, off the hot loop).
            kT_scr[hh] = kv_c[:, sl].T
            v_scr[hh] = kv_c[:, E + hh * Dh:E + (hh + 1) * Dh]

    # ---- sub-block 1: LN -> multi-head causal attention -> residual ----
    x_q = x_ref[pl.ds(qstart, tq), :].astype(jnp.float32)      # (tq, E) queries
    h_q = _layernorm(x_q, ln1_s, ln1_b)

    # Fold 1/sqrt(Dh) into the (small) query activations, not the score matrix.
    inv_sqrt_hd = 1.0 / math.sqrt(float(Dh))
    q = jnp.dot((h_q * inv_sqrt_hd).astype(cdt), wq_ref[...],
                preferred_element_type=jnp.float32)            # (tq, E)
    q_c = q.astype(cdt)

    # 2-D causal mask (triu, diagonal=1) built once; finite sentinel, no -inf.
    row = qstart + lax.broadcasted_iota(jnp.int32, (tq, T), 0)
    col = lax.broadcasted_iota(jnp.int32, (tq, T), 1)
    causal = col > row
    neg_big = jnp.float32(jnp.finfo(jnp.float32).min / 2)

    # Per-head attention; Q stays in registers, contexts assembled in
    # registers and stored once (single lane-dense (tq, E) write).
    # TODO(synk): flash-style streaming over key tiles (online max/sum) for
    # very long T so the (tq, T) score temporaries scale with the key tile.
    ctx_heads = []
    for hh in range(H):                                        # static unroll
        q_h = q_c[:, hh * Dh:(hh + 1) * Dh]                    # (tq, Dh)
        s = jnp.dot(q_h, kT_scr[hh],
                    preferred_element_type=jnp.float32)        # (tq, T)
        s = jnp.where(causal, neg_big, s)
        m = jnp.max(s, axis=-1, keepdims=True)
        p = jnp.exp(s - m)
        denom = jnp.sum(p, axis=-1, keepdims=True)
        if softmax_approx_recip:
            probs = p * pl.reciprocal(denom, approx=True)      # EUP slot
        else:
            probs = p / denom                                  # exact (f32 path)
        ctx_heads.append(jnp.dot(probs.astype(cdt), v_scr[hh],
                                 preferred_element_type=jnp.float32))
    ctx = jnp.concatenate(ctx_heads, axis=-1)                  # (tq, E) f32

    x1 = x_q + ctx                      # residual (attention dropout = identity)

    # ---- sub-block 2: LN -> feed-forward (tanh GELU) -> residual ----
    ln2_s = ln2_s_ref[...].astype(jnp.float32)
    ln2_b = ln2_b_ref[...].astype(jnp.float32)
    h2 = _layernorm(x1, ln2_s, ln2_b)
    ff = jnp.dot(h2.astype(cdt), w1_ref[...],
                 preferred_element_type=jnp.float32) + b1_ref[...].astype(jnp.float32)
    ff = _gelu(ff)
    # TODO(synk): tile the hidden (4E) dimension / stream w1,w2 for large
    # emb_dim so FFN weights need not be fully resident (v7x 64 MiB VMEM).
    ff = jnp.dot(ff.astype(cdt), w2_ref[...],
                 preferred_element_type=jnp.float32) + b2_ref[...].astype(jnp.float32)

    o_ref[...] = (x1 + ff).astype(o_ref.dtype)


def transformer_block(x, params, num_heads, *, q_tile=128,
                      matmul_dtype=jnp.bfloat16):
    """x: (B, T, E) float32.  params: dict of weights (see init_params)."""
    B, T, E = x.shape
    H = num_heads
    assert E % H == 0
    Dh = E // H
    tq = min(q_tile, T)
    assert T % tq == 0 and tq % 8 == 0
    nq = T // tq

    cdt = jnp.dtype(matmul_dtype)
    # Fused K/V weight (E, 2E); Q kept separate (only tile rows need it).
    wq = params["wq"].astype(cdt)
    wkv = jnp.concatenate([params["wk"], params["wv"]], axis=1).astype(cdt)
    w1 = params["w1"].astype(cdt)
    w2 = params["w2"].astype(cdt)

    param_list = [
        params["ln1_scale"], params["ln1_shift"], wq, wkv,
        params["ln2_scale"], params["ln2_shift"],
        w1, params["b1"], w2, params["b2"],
    ]

    x_spec = pl.BlockSpec((None, T, E), lambda b, q: (b, 0, 0))
    out_spec = pl.BlockSpec((None, tq, E), lambda b, q: (b, q, 0))

    def _param_specs(single_buffer):
        specs = []
        for p in param_list:
            idx = functools.partial(lambda nd, b, q: (0,) * nd, p.ndim)
            if single_buffer:
                # Constant index map -> double buffering is pure VMEM waste.
                specs.append(pl.BlockSpec(p.shape, idx,
                                          pipeline_mode=pl.Buffered(1)))
            else:
                specs.append(pl.BlockSpec(p.shape, idx))
        return specs

    scratch_shapes = [
        pltpu.VMEM((H, Dh, T), cdt),    # K^T, head-major, persistent per batch
        pltpu.VMEM((H, T, Dh), cdt),    # V,   head-major, persistent per batch
    ]

    # VMEM budget: single-buffered params, double-buffered x / out blocks,
    # persistent K/V scratch, plus headroom for in-kernel temporaries;
    # clamped to the device's *physical* VMEM (v7x = 64 MiB, v5e/v6e = 128 MiB).
    param_bytes = sum(int(p.size) * p.dtype.itemsize for p in param_list)
    block_bytes = 2 * (T * E + tq * E) * x.dtype.itemsize
    scratch_bytes = 2 * T * E * cdt.itemsize
    tmp_bytes = 4 * (3 * T * E + tq * (2 * T + 8 * E))  # h_f/kv, scores, ffn
    vmem_limit = int(param_bytes + block_bytes + scratch_bytes
                     + tmp_bytes + (8 << 20))
    try:
        vmem_cap = int(pltpu.get_tpu_info().vmem_capacity_bytes)
    except Exception:
        vmem_cap = 64 << 20   # conservative default (v7x per-TC VMEM)
    vmem_limit = max(16 << 20, min(vmem_limit, vmem_cap - (4 << 20)))

    kernel = functools.partial(
        transformer_block_kernel,
        num_heads=H,
        softmax_approx_recip=(cdt != jnp.dtype(jnp.float32)))

    def _build(single_buffer):
        return pl.pallas_call(
            kernel,
            out_shape=jax.ShapeDtypeStruct((B, T, E), x.dtype),
            grid_spec=pltpu.PrefetchScalarGridSpec(
                num_scalar_prefetch=0,
                grid=(B, nq),
                in_specs=[x_spec] + _param_specs(single_buffer),
                out_specs=out_spec,
                scratch_shapes=scratch_shapes,
            ),
            compiler_params=pltpu.CompilerParams(
                # batch parallel (megacore), query-tile axis sequential so the
                # K/V scratch computed at q_idx == 0 is reused by later tiles.
                dimension_semantics=("parallel", "arbitrary"),
                vmem_limit_bytes=vmem_limit,
            ),
        )

    try:
        return _build(True)(x, *param_list)
    except Exception:
        # pl.Buffered(1) / pipeline_mode unsupported on this JAX version:
        # fall back to default (double-buffered) parameter blocks.
        return _build(False)(x, *param_list)


def init_params(key, emb_dim):
    """Deterministic synthetic parameters with the PyTorch module's shapes."""
    ks = jax.random.split(key, 6)
    hidden = emb_dim * 4
    s = 0.05
    return {
        "ln1_scale": jnp.ones((1, emb_dim), jnp.float32),
        "ln1_shift": jnp.zeros((1, emb_dim), jnp.float32),
        # qkv_bias=False in the config -> no bias for W_query/W_key/W_value
        "wq": s * jax.random.normal(ks[0], (emb_dim, emb_dim), jnp.float32),
        "wk": s * jax.random.normal(ks[1], (emb_dim, emb_dim), jnp.float32),
        "wv": s * jax.random.normal(ks[2], (emb_dim, emb_dim), jnp.float32),
        "ln2_scale": jnp.ones((1, emb_dim), jnp.float32),
        "ln2_shift": jnp.zeros((1, emb_dim), jnp.float32),
        "w1": s * jax.random.normal(ks[3], (emb_dim, hidden), jnp.float32),
        "b1": s * jax.random.normal(ks[4], (1, hidden), jnp.float32),
        "w2": s * jax.random.normal(ks[5], (hidden, emb_dim), jnp.float32),
        "b2": jnp.zeros((1, emb_dim), jnp.float32),
    }


def reference_block(x, params, num_heads):
    """Pure-JAX reference reproducing the PyTorch forward (for validation)."""
    B, T, E = x.shape
    Dh = E // num_heads

    def ln(v, s, b, eps=1e-5):
        mean = jnp.mean(v, axis=-1, keepdims=True)
        var = jnp.sum((v - mean) ** 2, axis=-1, keepdims=True) / (E - 1)
        return s * (v - mean) / jnp.sqrt(var + eps) + b

    h = ln(x, params["ln1_scale"], params["ln1_shift"])
    q = h @ params["wq"]
    k = h @ params["wk"]
    v = h @ params["wv"]
    q = q.reshape(B, T, num_heads, Dh).transpose(0, 2, 1, 3)
    k = k.reshape(B, T, num_heads, Dh).transpose(0, 2, 1, 3)
    v = v.reshape(B, T, num_heads, Dh).transpose(0, 2, 1, 3)
    scores = jnp.einsum("bhtd,bhsd->bhts", q, k)
    mask = jnp.triu(jnp.ones((T, T)), k=1) == 1
    scores = jnp.where(mask[None, None], -jnp.inf, scores)
    scores = scores / jnp.sqrt(jnp.float32(Dh))
    attn = jax.nn.softmax(scores, axis=-1)
    ctx = jnp.einsum("bhts,bhsd->bhtd", attn, v)
    ctx = ctx.transpose(0, 2, 1, 3).reshape(B, T, E)
    x1 = x + ctx

    h2 = ln(x1, params["ln2_scale"], params["ln2_shift"])
    c = math.sqrt(2.0 / math.pi)
    ff = h2 @ params["w1"] + params["b1"]
    ff = 0.5 * ff * (1 + jnp.tanh(c * (ff + 0.044715 * ff**3)))
    ff = ff @ params["w2"] + params["b2"]
    return x1 + ff


if __name__ == "__main__":
    config = {
        "emb_dim": 32,
        "context_length": 16,
        "n_heads": 4,
        "drop_rate": 0.0,
        "qkv_bias": False,
    }
    B, T, E = 2, config["context_length"], config["emb_dim"]

    key = jax.random.PRNGKey(0)
    kx, kp = jax.random.split(key)
    x = jax.random.normal(kx, (B, T, E), jnp.float32)
    params = init_params(kp, E)

    ref = reference_block(x, params, config["n_heads"])

    # f32-matmul path (numerics check; q_tile=8 -> 2 query tiles, exercises the
    # hoisted-KV / persistent-scratch reuse across the "arbitrary" grid axis).
    out_f32 = transformer_block(x, params, config["n_heads"],
                                q_tile=8, matmul_dtype=jnp.float32)
    out_f32 = jax.block_until_ready(out_f32)
    assert out_f32.shape == (B, T, E)
    err32 = float(jnp.max(jnp.abs(out_f32 - ref)))
    assert jnp.allclose(out_f32, ref, rtol=1e-2, atol=1e-2), (
        f"f32 path max abs err = {err32}"
    )

    # bf16-matmul / f32-accumulate fast path (default compute dtype).
    out_bf16 = transformer_block(x, params, config["n_heads"], q_tile=8)
    out_bf16 = jax.block_until_ready(out_bf16)
    errbf = float(jnp.max(jnp.abs(out_bf16 - ref)))
    assert jnp.allclose(out_bf16, ref, rtol=5e-2, atol=5e-2), (
        f"bf16 path max abs err = {errbf}"
    )

    print("KERNEL_OK")
</pallas_src>

<mosaic_0001>
module attributes {stable_mosaic.version = 11 : i64} {
  func.func @transformer_block_kernel(%arg0: i32, %arg1: i32, %arg2: memref<1x16x32xf32, #tpu.memory_space<vmem>>, %arg3: memref<1x32xf32, #tpu.memory_space<vmem>>, %arg4: memref<1x32xf32, #tpu.memory_space<vmem>>, %arg5: memref<32x32xf32, #tpu.memory_space<vmem>>, %arg6: memref<32x64xf32, #tpu.memory_space<vmem>>, %arg7: memref<1x32xf32, #tpu.memory_space<vmem>>, %arg8: memref<1x32xf32, #tpu.memory_space<vmem>>, %arg9: memref<32x128xf32, #tpu.memory_space<vmem>>, %arg10: memref<1x128xf32, #tpu.memory_space<vmem>>, %arg11: memref<128x32xf32, #tpu.memory_space<vmem>>, %arg12: memref<1x32xf32, #tpu.memory_space<vmem>>, %arg13: memref<1x8x32xf32, #tpu.memory_space<vmem>>, %arg14: memref<4x8x16xf32, #tpu.memory_space<vmem>>, %arg15: memref<4x16x8xf32, #tpu.memory_space<vmem>>) attributes {dimension_semantics = [#tpu.dimension_semantics<parallel>, #tpu.dimension_semantics<arbitrary>], iteration_bounds = array<i64: 2, 2>, scalar_prefetch = 0 : i64, scratch_operands = 2 : i64, tpu.core_type = #tpu.core_type<tc>, window_params = [{transform_indices = @transform_0, window_bounds = array<i64: 1, 16, 32>}, {pipeline_mode = #tpu.pipeline_mode<synchronous>, transform_indices = @transform_1, window_bounds = array<i64: 1, 32>}, {pipeline_mode = #tpu.pipeline_mode<synchronous>, transform_indices = @transform_2, window_bounds = array<i64: 1, 32>}, {pipeline_mode = #tpu.pipeline_mode<synchronous>, transform_indices = @transform_3, window_bounds = array<i64: 32, 32>}, {pipeline_mode = #tpu.pipeline_mode<synchronous>, transform_indices = @transform_4, window_bounds = array<i64: 32, 64>}, {pipeline_mode = #tpu.pipeline_mode<synchronous>, transform_indices = @transform_5, window_bounds = array<i64: 1, 32>}, {pipeline_mode = #tpu.pipeline_mode<synchronous>, transform_indices = @transform_6, window_bounds = array<i64: 1, 32>}, {pipeline_mode = #tpu.pipeline_mode<synchronous>, transform_indices = @transform_7, window_bounds = array<i64: 32, 128>}, {pipeline_mode = #tpu.pipeline_mode<synchronous>, transform_indices = @transform_8, window_bounds = array<i64: 1, 128>}, {pipeline_mode = #tpu.pipeline_mode<synchronous>, transform_indices = @transform_9, window_bounds = array<i64: 128, 32>}, {pipeline_mode = #tpu.pipeline_mode<synchronous>, transform_indices = @transform_10, window_bounds = array<i64: 1, 32>}, {transform_indices = @transform_11, window_bounds = array<i64: 1, 8, 32>}]} {
    %c8_i32 = arith.constant 8 : i32
    %0 = arith.muli %arg1, %c8_i32 : i32
    %1 = tpu.assume_multiple %0, 8 : i32
    %c0 = arith.constant 0 : index
    %c0_0 = arith.constant 0 : index
    %2 = vector.load %arg3[%c0, %c0_0] : memref<1x32xf32, #tpu.memory_space<vmem>>, vector<1x32xf32>
    %c0_1 = arith.constant 0 : index
    %c0_2 = arith.constant 0 : index
    %3 = vector.load %arg4[%c0_1, %c0_2] : memref<1x32xf32, #tpu.memory_space<vmem>>, vector<1x32xf32>
    %c0_i32 = arith.constant 0 : i32
    %4 = arith.cmpi eq, %arg1, %c0_i32 : i32
    %5 = arith.extui %4 : i1 to i32
    %c0_i32_3 = arith.constant 0 : i32
    %6 = arith.cmpi ne, %5, %c0_i32_3 : i32
    scf.if %6 {
      %c0_81 = arith.constant 0 : index
      %c0_82 = arith.constant 0 : index
      %c0_83 = arith.constant 0 : index
      %162 = vector.load %arg2[%c0_81, %c0_82, %c0_83] : memref<1x16x32xf32, #tpu.memory_space<vmem>>, vector<1x16x32xf32>
      %163 = vector.shape_cast %162 : vector<1x16x32xf32> to vector<16x32xf32>
      %cst_84 = arith.constant dense<0.000000e+00> : vector<16xf32>
      %164 = vector.multi_reduction <add>, %163, %cst_84 [1] : vector<16x32xf32> to vector<16xf32>
      %165 = vector.shape_cast %164 : vector<16xf32> to vector<16x1xf32>
      %cst_85 = arith.constant 3.200000e+01 : f32
      %166 = vector.broadcast %cst_85 : f32 to vector<16x1xf32>
      %167 = arith.divf %165, %166 : vector<16x1xf32>
      %168 = vector.broadcast %167 : vector<16x1xf32> to vector<16x32xf32>
      %169 = arith.subf %163, %168 : vector<16x32xf32>
      %170 = arith.mulf %169, %169 : vector<16x32xf32>
      %cst_86 = arith.constant dense<0.000000e+00> : vector<16xf32>
      %171 = vector.multi_reduction <add>, %170, %cst_86 [1] : vector<16x32xf32> to vector<16xf32>
      %172 = vector.shape_cast %171 : vector<16xf32> to vector<16x1xf32>
      %cst_87 = arith.constant 3.100000e+01 : f32
      %173 = vector.broadcast %cst_87 : f32 to vector<16x1xf32>
      %174 = arith.divf %172, %173 : vector<16x1xf32>
      %cst_88 = arith.constant 9.99999974E-6 : f32
      %175 = vector.broadcast %cst_88 : f32 to vector<16x1xf32>
      %176 = arith.addf %174, %175 : vector<16x1xf32>
      %177 = math.sqrt %176 : vector<16x1xf32>
      %178 = vector.broadcast %177 : vector<16x1xf32> to vector<16x32xf32>
      %179 = arith.divf %169, %178 : vector<16x32xf32>
      %180 = vector.broadcast %2 : vector<1x32xf32> to vector<16x32xf32>
      %181 = arith.mulf %180, %179 : vector<16x32xf32>
      %182 = vector.broadcast %3 : vector<1x32xf32> to vector<16x32xf32>
      %183 = arith.addf %181, %182 : vector<16x32xf32>
      %c0_89 = arith.constant 0 : index
      %c0_90 = arith.constant 0 : index
      %184 = vector.load %arg6[%c0_89, %c0_90] : memref<32x64xf32, #tpu.memory_space<vmem>>, vector<32x64xf32>
      %cst_91 = arith.constant dense<0.000000e+00> : vector<16x64xf32>
      %185 = tpu.matmul %183, %184, %cst_91 {dimension_numbers = #tpu.dot_dimension_numbers<[1], [0], [0], [1], [0, 0, 1, 1], [], []>} : vector<16x32xf32>, vector<32x64xf32>, vector<16x64xf32> -> vector<16x64xf32>
      %186 = vector.extract_strided_slice %185 {offsets = [0, 0], sizes = [16, 8], strides = [1, 1]} : vector<16x64xf32> to vector<16x8xf32>
      %187 = tpu.transpose %186, [1, 0] : vector<16x8xf32> -> vector<8x16xf32>
      %c0_92 = arith.constant 0 : index
      %c0_93 = arith.constant 0 : index
      %c0_94 = arith.constant 0 : index
      %188 = vector.load %arg14[%c0_92, %c0_93, %c0_94] : memref<4x8x16xf32, #tpu.memory_space<vmem>>, vector<1x8x16xf32>
      %189 = vector.shape_cast %188 : vector<1x8x16xf32> to vector<8x16xf32>
      %190 = vector.shape_cast %187 : vector<8x16xf32> to vector<1x8x16xf32>
      tpu.vector_store %arg14[%c0_92, %c0_93, %c0_94], %190 {strides = array<i32>} : memref<4x8x16xf32, #tpu.memory_space<vmem>>, vector<1x8x16xf32>,
      %191 = vector.extract_strided_slice %185 {offsets = [0, 32], sizes = [16, 8], strides = [1, 1]} : vector<16x64xf32> to vector<16x8xf32>
      %c0_95 = arith.constant 0 : index
      %c0_96 = arith.constant 0 : index
      %c0_97 = arith.constant 0 : index
      %192 = vector.load %arg15[%c0_95, %c0_96, %c0_97] : memref<4x16x8xf32, #tpu.memory_space<vmem>>, vector<1x16x8xf32>
      %193 = vector.shape_cast %192 : vector<1x16x8xf32> to vector<16x8xf32>
      %194 = vector.shape_cast %191 : vector<16x8xf32> to vector<1x16x8xf32>
      tpu.vector_store %arg15[%c0_95, %c0_96, %c0_97], %194 {strides = array<i32>} : memref<4x16x8xf32, #tpu.memory_space<vmem>>, vector<1x16x8xf32>,
      %195 = vector.extract_strided_slice %185 {offsets = [0, 8], sizes = [16, 8], strides = [1, 1]} : vector<16x64xf32> to vector<16x8xf32>
      %196 = tpu.transpose %195, [1, 0] : vector<16x8xf32> -> vector<8x16xf32>
      %c1_98 = arith.constant 1 : index
      %c0_99 = arith.constant 0 : index
      %c0_100 = arith.constant 0 : index
      %197 = vector.load %arg14[%c1_98, %c0_99, %c0_100] : memref<4x8x16xf32, #tpu.memory_space<vmem>>, vector<1x8x16xf32>
      %198 = vector.shape_cast %197 : vector<1x8x16xf32> to vector<8x16xf32>
      %199 = vector.shape_cast %196 : vector<8x16xf32> to vector<1x8x16xf32>
      tpu.vector_store %arg14[%c1_98, %c0_99, %c0_100], %199 {strides = array<i32>} : memref<4x8x16xf32, #tpu.memory_space<vmem>>, vector<1x8x16xf32>,
      %200 = vector.extract_strided_slice %185 {offsets = [0, 40], sizes = [16, 8], strides = [1, 1]} : vector<16x64xf32> to vector<16x8xf32>
      %c1_101 = arith.constant 1 : index
      %c0_102 = arith.constant 0 : index
      %c0_103 = arith.constant 0 : index
      %201 = vector.load %arg15[%c1_101, %c0_102, %c0_103] : memref<4x16x8xf32, #tpu.memory_space<vmem>>, vector<1x16x8xf32>
      %202 = vector.shape_cast %201 : vector<1x16x8xf32> to vector<16x8xf32>
      %203 = vector.shape_cast %200 : vector<16x8xf32> to vector<1x16x8xf32>
      tpu.vector_store %arg15[%c1_101, %c0_102, %c0_103], %203 {strides = array<i32>} : memref<4x16x8xf32, #tpu.memory_space<vmem>>, vector<1x16x8xf32>,
      %204 = vector.extract_strided_slice %185 {offsets = [0, 16], sizes = [16, 8], strides = [1, 1]} : vector<16x64xf32> to vector<16x8xf32>
      %205 = tpu.transpose %204, [1, 0] : vector<16x8xf32> -> vector<8x16xf32>
      %c2_104 = arith.constant 2 : index
      %c0_105 = arith.constant 0 : index
      %c0_106 = arith.constant 0 : index
      %206 = vector.load %arg14[%c2_104, %c0_105, %c0_106] : memref<4x8x16xf32, #tpu.memory_space<vmem>>, vector<1x8x16xf32>
      %207 = vector.shape_cast %206 : vector<1x8x16xf32> to vector<8x16xf32>
      %208 = vector.shape_cast %205 : vector<8x16xf32> to vector<1x8x16xf32>
      tpu.vector_store %arg14[%c2_104, %c0_105, %c0_106], %208 {strides = array<i32>} : memref<4x8x16xf32, #tpu.memory_space<vmem>>, vector<1x8x16xf32>,
      %209 = vector.extract_strided_slice %185 {offsets = [0, 48], sizes = [16, 8], strides = [1, 1]} : vector<16x64xf32> to vector<16x8xf32>
      %c2_107 = arith.constant 2 : index
      %c0_108 = arith.constant 0 : index
      %c0_109 = arith.constant 0 : index
      %210 = vector.load %arg15[%c2_107, %c0_108, %c0_109] : memref<4x16x8xf32, #tpu.memory_space<vmem>>, vector<1x16x8xf32>
      %211 = vector.shape_cast %210 : vector<1x16x8xf32> to vector<16x8xf32>
      %212 = vector.shape_cast %209 : vector<16x8xf32> to vector<1x16x8xf32>
      tpu.vector_store %arg15[%c2_107, %c0_108, %c0_109], %212 {strides = array<i32>} : memref<4x16x8xf32, #tpu.memory_space<vmem>>, vector<1x16x8xf32>,
      %213 = vector.extract_strided_slice %185 {offsets = [0, 24], sizes = [16, 8], strides = [1, 1]} : vector<16x64xf32> to vector<16x8xf32>
      %214 = tpu.transpose %213, [1, 0] : vector<16x8xf32> -> vector<8x16xf32>
      %c3_110 = arith.constant 3 : index
      %c0_111 = arith.constant 0 : index
      %c0_112 = arith.constant 0 : index
      %215 = vector.load %arg14[%c3_110, %c0_111, %c0_112] : memref<4x8x16xf32, #tpu.memory_space<vmem>>, vector<1x8x16xf32>
      %216 = vector.shape_cast %215 : vector<1x8x16xf32> to vector<8x16xf32>
      %217 = vector.shape_cast %214 : vector<8x16xf32> to vector<1x8x16xf32>
      tpu.vector_store %arg14[%c3_110, %c0_111, %c0_112], %217 {strides = array<i32>} : memref<4x8x16xf32, #tpu.memory_space<vmem>>, vector<1x8x16xf32>,
      %218 = vector.extract_strided_slice %185 {offsets = [0, 56], sizes = [16, 8], strides = [1, 1]} : vector<16x64xf32> to vector<16x8xf32>
      %c3_113 = arith.constant 3 : index
      %c0_114 = arith.constant 0 : index
      %c0_115 = arith.constant 0 : index
      %219 = vector.load %arg15[%c3_113, %c0_114, %c0_115] : memref<4x16x8xf32, #tpu.memory_space<vmem>>, vector<1x16x8xf32>
      %220 = vector.shape_cast %219 : vector<1x16x8xf32> to vector<16x8xf32>
      %221 = vector.shape_cast %218 : vector<16x8xf32> to vector<1x16x8xf32>
      tpu.vector_store %arg15[%c3_113, %c0_114, %c0_115], %221 {strides = array<i32>} : memref<4x16x8xf32, #tpu.memory_space<vmem>>, vector<1x16x8xf32>,
    } else {
    }
    %c0_4 = arith.constant 0 : index
    %7 = arith.index_cast %1 : i32 to index
    %c0_5 = arith.constant 0 : index
    %8 = vector.load %arg2[%c0_4, %7, %c0_5] : memref<1x16x32xf32, #tpu.memory_space<vmem>>, vector<1x8x32xf32>
    %9 = vector.shape_cast %8 : vector<1x8x32xf32> to vector<8x32xf32>
    %cst = arith.constant dense<0.000000e+00> : vector<8xf32>
    %10 = vector.multi_reduction <add>, %9, %cst [1] : vector<8x32xf32> to vector<8xf32>
    %11 = vector.shape_cast %10 : vector<8xf32> to vector<8x1xf32>
    %cst_6 = arith.constant 3.200000e+01 : f32
    %12 = vector.broadcast %cst_6 : f32 to vector<8x1xf32>
    %13 = arith.divf %11, %12 : vector<8x1xf32>
    %14 = vector.broadcast %13 : vector<8x1xf32> to vector<8x32xf32>
    %15 = arith.subf %9, %14 : vector<8x32xf32>
    %16 = arith.mulf %15, %15 : vector<8x32xf32>
    %cst_7 = arith.constant dense<0.000000e+00> : vector<8xf32>
    %17 = vector.multi_reduction <add>, %16, %cst_7 [1] : vector<8x32xf32> to vector<8xf32>
    %18 = vector.shape_cast %17 : vector<8xf32> to vector<8x1xf32>
    %cst_8 = arith.constant 3.100000e+01 : f32
    %19 = vector.broadcast %cst_8 : f32 to vector<8x1xf32>
    %20 = arith.divf %18, %19 : vector<8x1xf32>
    %cst_9 = arith.constant 9.99999974E-6 : f32
    %21 = vector.broadcast %cst_9 : f32 to vector<8x1xf32>
    %22 = arith.addf %20, %21 : vector<8x1xf32>
    %23 = math.sqrt %22 : vector<8x1xf32>
    %24 = vector.broadcast %23 : vector<8x1xf32> to vector<8x32xf32>
    %25 = arith.divf %15, %24 : vector<8x32xf32>
    %26 = vector.broadcast %2 : vector<1x32xf32> to vector<8x32xf32>
    %27 = arith.mulf %26, %25 : vector<8x32xf32>
    %28 = vector.broadcast %3 : vector<1x32xf32> to vector<8x32xf32>
    %29 = arith.addf %27, %28 : vector<8x32xf32>
    %cst_10 = arith.constant 0.353553385 : f32
    %30 = vector.broadcast %cst_10 : f32 to vector<8x32xf32>
    %31 = arith.mulf %29, %30 : vector<8x32xf32>
    %c0_11 = arith.constant 0 : index
    %c0_12 = arith.constant 0 : index
    %32 = vector.load %arg5[%c0_11, %c0_12] : memref<32x32xf32, #tpu.memory_space<vmem>>, vector<32x32xf32>
    %cst_13 = arith.constant dense<0.000000e+00> : vector<8x32xf32>
    %33 = tpu.matmul %31, %32, %cst_13 {dimension_numbers = #tpu.dot_dimension_numbers<[1], [0], [0], [1], [0, 0, 1, 1], [], []>} : vector<8x32xf32>, vector<32x32xf32>, vector<8x32xf32> -> vector<8x32xf32>
    %34 = tpu.iota {dimensions = array<i32: 0>} : vector<8x16xi32>
    %35 = vector.broadcast %1 : i32 to vector<8x16xi32>
    %36 = arith.addi %35, %34 : vector<8x16xi32>
    %37 = tpu.iota {dimensions = array<i32: 1>} : vector<8x16xi32>
    %38 = arith.cmpi sgt, %37, %36 : vector<8x16xi32>
    %39 = vector.extract_strided_slice %33 {offsets = [0, 0], sizes = [8, 8], strides = [1, 1]} : vector<8x32xf32> to vector<8x8xf32>
    %c0_14 = arith.constant 0 : index
    %c0_15 = arith.constant 0 : index
    %c0_16 = arith.constant 0 : index
    %40 = vector.load %arg14[%c0_14, %c0_15, %c0_16] : memref<4x8x16xf32, #tpu.memory_space<vmem>>, vector<1x8x16xf32>
    %41 = vector.shape_cast %40 : vector<1x8x16xf32> to vector<8x16xf32>
    %cst_17 = arith.constant dense<0.000000e+00> : vector<8x16xf32>
    %42 = tpu.matmul %39, %41, %cst_17 {dimension_numbers = #tpu.dot_dimension_numbers<[1], [0], [0], [1], [0, 0, 1, 1], [], []>} : vector<8x8xf32>, vector<8x16xf32>, vector<8x16xf32> -> vector<8x16xf32>
    %cst_18 = arith.constant -1.70141173E+38 : f32
    %43 = vector.broadcast %cst_18 : f32 to vector<8x16xf32>
    %44 = arith.select %38, %43, %42 : vector<8x16xi1>, vector<8x16xf32>
    %cst_19 = arith.constant dense<0xFF800000> : vector<8xf32>
    %45 = vector.multi_reduction <maximumf>, %44, %cst_19 [1] : vector<8x16xf32> to vector<8xf32>
    %46 = vector.shape_cast %45 : vector<8xf32> to vector<8x1xf32>
    %47 = vector.broadcast %46 : vector<8x1xf32> to vector<8x16xf32>
    %48 = arith.subf %44, %47 : vector<8x16xf32>
    %49 = math.exp %48 : vector<8x16xf32>
    %cst_20 = arith.constant dense<0.000000e+00> : vector<8xf32>
    %50 = vector.multi_reduction <add>, %49, %cst_20 [1] : vector<8x16xf32> to vector<8xf32>
    %51 = vector.shape_cast %50 : vector<8xf32> to vector<8x1xf32>
    %52 = vector.broadcast %51 : vector<8x1xf32> to vector<8x16xf32>
    %53 = arith.divf %49, %52 : vector<8x16xf32>
    %c0_21 = arith.constant 0 : index
    %c0_22 = arith.constant 0 : index
    %c0_23 = arith.constant 0 : index
    %54 = vector.load %arg15[%c0_21, %c0_22, %c0_23] : memref<4x16x8xf32, #tpu.memory_space<vmem>>, vector<1x16x8xf32>
    %55 = vector.shape_cast %54 : vector<1x16x8xf32> to vector<16x8xf32>
    %cst_24 = arith.constant dense<0.000000e+00> : vector<8x8xf32>
    %56 = tpu.matmul %53, %55, %cst_24 {dimension_numbers = #tpu.dot_dimension_numbers<[1], [0], [0], [1], [0, 0, 1, 1], [], []>} : vector<8x16xf32>, vector<16x8xf32>, vector<8x8xf32> -> vector<8x8xf32>
    %57 = vector.extract_strided_slice %33 {offsets = [0, 8], sizes = [8, 8], strides = [1, 1]} : vector<8x32xf32> to vector<8x8xf32>
    %c1 = arith.constant 1 : index
    %c0_25 = arith.constant 0 : index
    %c0_26 = arith.constant 0 : index
    %58 = vector.load %arg14[%c1, %c0_25, %c0_26] : memref<4x8x16xf32, #tpu.memory_space<vmem>>, vector<1x8x16xf32>
    %59 = vector.shape_cast %58 : vector<1x8x16xf32> to vector<8x16xf32>
    %cst_27 = arith.constant dense<0.000000e+00> : vector<8x16xf32>
    %60 = tpu.matmul %57, %59, %cst_27 {dimension_numbers = #tpu.dot_dimension_numbers<[1], [0], [0], [1], [0, 0, 1, 1], [], []>} : vector<8x8xf32>, vector<8x16xf32>, vector<8x16xf32> -> vector<8x16xf32>
    %cst_28 = arith.constant -1.70141173E+38 : f32
    %61 = vector.broadcast %cst_28 : f32 to vector<8x16xf32>
    %62 = arith.select %38, %61, %60 : vector<8x16xi1>, vector<8x16xf32>
    %cst_29 = arith.constant dense<0xFF800000> : vector<8xf32>
    %63 = vector.multi_reduction <maximumf>, %62, %cst_29 [1] : vector<8x16xf32> to vector<8xf32>
    %64 = vector.shape_cast %63 : vector<8xf32> to vector<8x1xf32>
    %65 = vector.broadcast %64 : vector<8x1xf32> to vector<8x16xf32>
    %66 = arith.subf %62, %65 : vector<8x16xf32>
    %67 = math.exp %66 : vector<8x16xf32>
    %cst_30 = arith.constant dense<0.000000e+00> : vector<8xf32>
    %68 = vector.multi_reduction <add>, %67, %cst_30 [1] : vector<8x16xf32> to vector<8xf32>
    %69 = vector.shape_cast %68 : vector<8xf32> to vector<8x1xf32>
    %70 = vector.broadcast %69 : vector<8x1xf32> to vector<8x16xf32>
    %71 = arith.divf %67, %70 : vector<8x16xf32>
    %c1_31 = arith.constant 1 : index
    %c0_32 = arith.constant 0 : index
    %c0_33 = arith.constant 0 : index
    %72 = vector.load %arg15[%c1_31, %c0_32, %c0_33] : memref<4x16x8xf32, #tpu.memory_space<vmem>>, vector<1x16x8xf32>
    %73 = vector.shape_cast %72 : vector<1x16x8xf32> to vector<16x8xf32>
    %cst_34 = arith.constant dense<0.000000e+00> : vector<8x8xf32>
    %74 = tpu.matmul %71, %73, %cst_34 {dimension_numbers = #tpu.dot_dimension_numbers<[1], [0], [0], [1], [0, 0, 1, 1], [], []>} : vector<8x16xf32>, vector<16x8xf32>, vector<8x8xf32> -> vector<8x8xf32>
    %75 = vector.extract_strided_slice %33 {offsets = [0, 16], sizes = [8, 8], strides = [1, 1]} : vector<8x32xf32> to vector<8x8xf32>
    %c2 = arith.constant 2 : index
    %c0_35 = arith.constant 0 : index
    %c0_36 = arith.constant 0 : index
    %76 = vector.load %arg14[%c2, %c0_35, %c0_36] : memref<4x8x16xf32, #tpu.memory_space<vmem>>, vector<1x8x16xf32>
    %77 = vector.shape_cast %76 : vector<1x8x16xf32> to vector<8x16xf32>
    %cst_37 = arith.constant dense<0.000000e+00> : vector<8x16xf32>
    %78 = tpu.matmul %75, %77, %cst_37 {dimension_numbers = #tpu.dot_dimension_numbers<[1], [0], [0], [1], [0, 0, 1, 1], [], []>} : vector<8x8xf32>, vector<8x16xf32>, vector<8x16xf32> -> vector<8x16xf32>
    %cst_38 = arith.constant -1.70141173E+38 : f32
    %79 = vector.broadcast %cst_38 : f32 to vector<8x16xf32>
    %80 = arith.select %38, %79, %78 : vector<8x16xi1>, vector<8x16xf32>
    %cst_39 = arith.constant dense<0xFF800000> : vector<8xf32>
    %81 = vector.multi_reduction <maximumf>, %80, %cst_39 [1] : vector<8x16xf32> to vector<8xf32>
    %82 = vector.shape_cast %81 : vector<8xf32> to vector<8x1xf32>
    %83 = vector.broadcast %82 : vector<8x1xf32> to vector<8x16xf32>
    %84 = arith.subf %80, %83 : vector<8x16xf32>
    %85 = math.exp %84 : vector<8x16xf32>
    %cst_40 = arith.constant dense<0.000000e+00> : vector<8xf32>
    %86 = vector.multi_reduction <add>, %85, %cst_40 [1] : vector<8x16xf32> to vector<8xf32>
    %87 = vector.shape_cast %86 : vector<8xf32> to vector<8x1xf32>
    %88 = vector.broadcast %87 : vector<8x1xf32> to vector<8x16xf32>
    %89 = arith.divf %85, %88 : vector<8x16xf32>
    %c2_41 = arith.constant 2 : index
    %c0_42 = arith.constant 0 : index
    %c0_43 = arith.constant 0 : index
    %90 = vector.load %arg15[%c2_41, %c0_42, %c0_43] : memref<4x16x8xf32, #tpu.memory_space<vmem>>, vector<1x16x8xf32>
    %91 = vector.shape_cast %90 : vector<1x16x8xf32> to vector<16x8xf32>
    %cst_44 = arith.constant dense<0.000000e+00> : vector<8x8xf32>
    %92 = tpu.matmul %89, %91, %cst_44 {dimension_numbers = #tpu.dot_dimension_numbers<[1], [0], [0], [1], [0, 0, 1, 1], [], []>} : vector<8x16xf32>, vector<16x8xf32>, vector<8x8xf32> -> vector<8x8xf32>
    %93 = vector.extract_strided_slice %33 {offsets = [0, 24], sizes = [8, 8], strides = [1, 1]} : vector<8x32xf32> to vector<8x8xf32>
    %c3 = arith.constant 3 : index
    %c0_45 = arith.constant 0 : index
    %c0_46 = arith.constant 0 : index
    %94 = vector.load %arg14[%c3, %c0_45, %c0_46] : memref<4x8x16xf32, #tpu.memory_space<vmem>>, vector<1x8x16xf32>
    %95 = vector.shape_cast %94 : vector<1x8x16xf32> to vector<8x16xf32>
    %cst_47 = arith.constant dense<0.000000e+00> : vector<8x16xf32>
    %96 = tpu.matmul %93, %95, %cst_47 {dimension_numbers = #tpu.dot_dimension_numbers<[1], [0], [0], [1], [0, 0, 1, 1], [], []>} : vector<8x8xf32>, vector<8x16xf32>, vector<8x16xf32> -> vector<8x16xf32>
    %cst_48 = arith.constant -1.70141173E+38 : f32
    %97 = vector.broadcast %cst_48 : f32 to vector<8x16xf32>
    %98 = arith.select %38, %97, %96 : vector<8x16xi1>, vector<8x16xf32>
    %cst_49 = arith.constant dense<0xFF800000> : vector<8xf32>
    %99 = vector.multi_reduction <maximumf>, %98, %cst_49 [1] : vector<8x16xf32> to vector<8xf32>
    %100 = vector.shape_cast %99 : vector<8xf32> to vector<8x1xf32>
    %101 = vector.broadcast %100 : vector<8x1xf32> to vector<8x16xf32>
    %102 = arith.subf %98, %101 : vector<8x16xf32>
    %103 = math.exp %102 : vector<8x16xf32>
    %cst_50 = arith.constant dense<0.000000e+00> : vector<8xf32>
    %104 = vector.multi_reduction <add>, %103, %cst_50 [1] : vector<8x16xf32> to vector<8xf32>
    %105 = vector.shape_cast %104 : vector<8xf32> to vector<8x1xf32>
    %106 = vector.broadcast %105 : vector<8x1xf32> to vector<8x16xf32>
    %107 = arith.divf %103, %106 : vector<8x16xf32>
    %c3_51 = arith.constant 3 : index
    %c0_52 = arith.constant 0 : index
    %c0_53 = arith.constant 0 : index
    %108 = vector.load %arg15[%c3_51, %c0_52, %c0_53] : memref<4x16x8xf32, #tpu.memory_space<vmem>>, vector<1x16x8xf32>
    %109 = vector.shape_cast %108 : vector<1x16x8xf32> to vector<16x8xf32>
    %cst_54 = arith.constant dense<0.000000e+00> : vector<8x8xf32>
    %110 = tpu.matmul %107, %109, %cst_54 {dimension_numbers = #tpu.dot_dimension_numbers<[1], [0], [0], [1], [0, 0, 1, 1], [], []>} : vector<8x16xf32>, vector<16x8xf32>, vector<8x8xf32> -> vector<8x8xf32>
    %111 = tpu.concatenate %56, %74, %92, %110 in 1 : vector<8x8xf32>, vector<8x8xf32>, vector<8x8xf32>, vector<8x8xf32> -> vector<8x32xf32>
    %112 = arith.addf %9, %111 : vector<8x32xf32>
    %c0_55 = arith.constant 0 : index
    %c0_56 = arith.constant 0 : index
    %113 = vector.load %arg7[%c0_55, %c0_56] : memref<1x32xf32, #tpu.memory_space<vmem>>, vector<1x32xf32>
    %c0_57 = arith.constant 0 : index
    %c0_58 = arith.constant 0 : index
    %114 = vector.load %arg8[%c0_57, %c0_58] : memref<1x32xf32, #tpu.memory_space<vmem>>, vector<1x32xf32>
    %cst_59 = arith.constant dense<0.000000e+00> : vector<8xf32>
    %115 = vector.multi_reduction <add>, %112, %cst_59 [1] : vector<8x32xf32> to vector<8xf32>
    %116 = vector.shape_cast %115 : vector<8xf32> to vector<8x1xf32>
    %cst_60 = arith.constant 3.200000e+01 : f32
    %117 = vector.broadcast %cst_60 : f32 to vector<8x1xf32>
    %118 = arith.divf %116, %117 : vector<8x1xf32>
    %119 = vector.broadcast %118 : vector<8x1xf32> to vector<8x32xf32>
    %120 = arith.subf %112, %119 : vector<8x32xf32>
    %121 = arith.mulf %120, %120 : vector<8x32xf32>
    %cst_61 = arith.constant dense<0.000000e+00> : vector<8xf32>
    %122 = vector.multi_reduction <add>, %121, %cst_61 [1] : vector<8x32xf32> to vector<8xf32>
    %123 = vector.shape_cast %122 : vector<8xf32> to vector<8x1xf32>
    %cst_62 = arith.constant 3.100000e+01 : f32
    %124 = vector.broadcast %cst_62 : f32 to vector<8x1xf32>
    %125 = arith.divf %123, %124 : vector<8x1xf32>
    %cst_63 = arith.constant 9.99999974E-6 : f32
    %126 = vector.broadcast %cst_63 : f32 to vector<8x1xf32>
    %127 = arith.addf %125, %126 : vector<8x1xf32>
    %128 = math.sqrt %127 : vector<8x1xf32>
    %129 = vector.broadcast %128 : vector<8x1xf32> to vector<8x32xf32>
    %130 = arith.divf %120, %129 : vector<8x32xf32>
    %131 = vector.broadcast %113 : vector<1x32xf32> to vector<8x32xf32>
    %132 = arith.mulf %131, %130 : vector<8x32xf32>
    %133 = vector.broadcast %114 : vector<1x32xf32> to vector<8x32xf32>
    %134 = arith.addf %132, %133 : vector<8x32xf32>
    %c0_64 = arith.constant 0 : index
    %c0_65 = arith.constant 0 : index
    %135 = vector.load %arg9[%c0_64, %c0_65] : memref<32x128xf32, #tpu.memory_space<vmem>>, vector<32x128xf32>
    %cst_66 = arith.constant dense<0.000000e+00> : vector<8x128xf32>
    %136 = tpu.matmul %134, %135, %cst_66 {dimension_numbers = #tpu.dot_dimension_numbers<[1], [0], [0], [1], [0, 0, 1, 1], [], []>} : vector<8x32xf32>, vector<32x128xf32>, vector<8x128xf32> -> vector<8x128xf32>
    %c0_67 = arith.constant 0 : index
    %c0_68 = arith.constant 0 : index
    %137 = vector.load %arg10[%c0_67, %c0_68] : memref<1x128xf32, #tpu.memory_space<vmem>>, vector<1x128xf32>
    %138 = vector.broadcast %137 : vector<1x128xf32> to vector<8x128xf32>
    %139 = arith.addf %136, %138 : vector<8x128xf32>
    %cst_69 = arith.constant 5.000000e-01 : f32
    %140 = vector.broadcast %cst_69 : f32 to vector<8x128xf32>
    %141 = arith.mulf %140, %139 : vector<8x128xf32>
    %cst_70 = arith.constant 4.471500e-02 : f32
    %142 = vector.broadcast %cst_70 : f32 to vector<8x128xf32>
    %143 = arith.mulf %142, %139 : vector<8x128xf32>
    %144 = arith.mulf %143, %139 : vector<8x128xf32>
    %145 = arith.mulf %144, %139 : vector<8x128xf32>
    %146 = arith.addf %139, %145 : vector<8x128xf32>
    %cst_71 = arith.constant 0.797884583 : f32
    %147 = vector.broadcast %cst_71 : f32 to vector<8x128xf32>
    %148 = arith.mulf %147, %146 : vector<8x128xf32>
    %149 = math.tanh %148 : vector<8x128xf32>
    %cst_72 = arith.constant 1.000000e+00 : f32
    %150 = vector.broadcast %cst_72 : f32 to vector<8x128xf32>
    %151 = arith.addf %150, %149 : vector<8x128xf32>
    %152 = arith.mulf %141, %151 : vector<8x128xf32>
    %c0_73 = arith.constant 0 : index
    %c0_74 = arith.constant 0 : index
    %153 = vector.load %arg11[%c0_73, %c0_74] : memref<128x32xf32, #tpu.memory_space<vmem>>, vector<128x32xf32>
    %cst_75 = arith.constant dense<0.000000e+00> : vector<8x32xf32>
    %154 = tpu.matmul %152, %153, %cst_75 {dimension_numbers = #tpu.dot_dimension_numbers<[1], [0], [0], [1], [0, 0, 1, 1], [], []>} : vector<8x128xf32>, vector<128x32xf32>, vector<8x32xf32> -> vector<8x32xf32>
    %c0_76 = arith.constant 0 : index
    %c0_77 = arith.constant 0 : index
    %155 = vector.load %arg12[%c0_76, %c0_77] : memref<1x32xf32, #tpu.memory_space<vmem>>, vector<1x32xf32>
    %156 = vector.broadcast %155 : vector<1x32xf32> to vector<8x32xf32>
    %157 = arith.addf %154, %156 : vector<8x32xf32>
    %158 = arith.addf %112, %157 : vector<8x32xf32>
    %c0_78 = arith.constant 0 : index
    %c0_79 = arith.constant 0 : index
    %c0_80 = arith.constant 0 : index
    %159 = vector.load %arg13[%c0_78, %c0_79, %c0_80] : memref<1x8x32xf32, #tpu.memory_space<vmem>>, vector<1x8x32xf32>
    %160 = vector.shape_cast %159 : vector<1x8x32xf32> to vector<8x32xf32>
    %161 = vector.shape_cast %158 : vector<8x32xf32> to vector<1x8x32xf32>
    tpu.vector_store %arg13[%c0_78, %c0_79, %c0_80], %161 {strides = array<i32>} : memref<1x8x32xf32, #tpu.memory_space<vmem>>, vector<1x8x32xf32>,
    return
  }
  func.func @transform_0(%arg0: i32, %arg1: i32) -> (i32, i32, i32) {
    %c0_i32 = arith.constant 0 : i32
    %c0_i32_0 = arith.constant 0 : i32
    %c0_i32_1 = arith.constant 0 : i32
    return %arg0, %c0_i32, %c0_i32_0 : i32, i32, i32
  }
  func.func @transform_1(%arg0: i32, %arg1: i32) -> (i32, i32) {
    %c0_i32 = arith.constant 0 : i32
    %c0_i32_0 = arith.constant 0 : i32
    %c0_i32_1 = arith.constant 0 : i32
    return %c0_i32, %c0_i32_0 : i32, i32
  }
  func.func @transform_2(%arg0: i32, %arg1: i32) -> (i32, i32) {
    %c0_i32 = arith.constant 0 : i32
    %c0_i32_0 = arith.constant 0 : i32
    %c0_i32_1 = arith.constant 0 : i32
    return %c0_i32, %c0_i32_0 : i32, i32
  }
  func.func @transform_3(%arg0: i32, %arg1: i32) -> (i32, i32) {
    %c0_i32 = arith.constant 0 : i32
    %c0_i32_0 = arith.constant 0 : i32
    %c0_i32_1 = arith.constant 0 : i32
    return %c0_i32, %c0_i32_0 : i32, i32
  }
  func.func @transform_4(%arg0: i32, %arg1: i32) -> (i32, i32) {
    %c0_i32 = arith.constant 0 : i32
    %c0_i32_0 = arith.constant 0 : i32
    %c0_i32_1 = arith.constant 0 : i32
    return %c0_i32, %c0_i32_0 : i32, i32
  }
  func.func @transform_5(%arg0: i32, %arg1: i32) -> (i32, i32) {
    %c0_i32 = arith.constant 0 : i32
    %c0_i32_0 = arith.constant 0 : i32
    %c0_i32_1 = arith.constant 0 : i32
    return %c0_i32, %c0_i32_0 : i32, i32
  }
  func.func @transform_6(%arg0: i32, %arg1: i32) -> (i32, i32) {
    %c0_i32 = arith.constant 0 : i32
    %c0_i32_0 = arith.constant 0 : i32
    %c0_i32_1 = arith.constant 0 : i32
    return %c0_i32, %c0_i32_0 : i32, i32
  }
  func.func @transform_7(%arg0: i32, %arg1: i32) -> (i32, i32) {
    %c0_i32 = arith.constant 0 : i32
    %c0_i32_0 = arith.constant 0 : i32
    %c0_i32_1 = arith.constant 0 : i32
    return %c0_i32, %c0_i32_0 : i32, i32
  }
  func.func @transform_8(%arg0: i32, %arg1: i32) -> (i32, i32) {
    %c0_i32 = arith.constant 0 : i32
    %c0_i32_0 = arith.constant 0 : i32
    %c0_i32_1 = arith.constant 0 : i32
    return %c0_i32, %c0_i32_0 : i32, i32
  }
  func.func @transform_9(%arg0: i32, %arg1: i32) -> (i32, i32) {
    %c0_i32 = arith.constant 0 : i32
    %c0_i32_0 = arith.constant 0 : i32
    %c0_i32_1 = arith.constant 0 : i32
    return %c0_i32, %c0_i32_0 : i32, i32
  }
  func.func @transform_10(%arg0: i32, %arg1: i32) -> (i32, i32) {
    %c0_i32 = arith.constant 0 : i32
    %c0_i32_0 = arith.constant 0 : i32
    %c0_i32_1 = arith.constant 0 : i32
    return %c0_i32, %c0_i32_0 : i32, i32
  }
  func.func @transform_11(%arg0: i32, %arg1: i32) -> (i32, i32, i32) {
    %c0_i32 = arith.constant 0 : i32
    %c0_i32_0 = arith.constant 0 : i32
    return %arg0, %arg1, %c0_i32 : i32, i32, i32
  }
}

module attributes {stable_mosaic.version = 11 : i64} {
  func.func @transformer_block_kernel(%arg0: i32, %arg1: i32, %arg2: memref<1x16x32xf32, #tpu.memory_space<vmem>>, %arg3: memref<1x32xf32, #tpu.memory_space<vmem>>, %arg4: memref<1x32xf32, #tpu.memory_space<vmem>>, %arg5: memref<32x32xf32, #tpu.memory_space<vmem>>, %arg6: memref<32x64xf32, #tpu.memory_space<vmem>>, %arg7: memref<1x32xf32, #tpu.memory_space<vmem>>, %arg8: memref<1x32xf32, #tpu.memory_space<vmem>>, %arg9: memref<32x128xf32, #tpu.memory_space<vmem>>, %arg10: memref<1x128xf32, #tpu.memory_space<vmem>>, %arg11: memref<128x32xf32, #tpu.memory_space<vmem>>, %arg12: memref<1x32xf32, #tpu.memory_space<vmem>>, %arg13: memref<1x8x32xf32, #tpu.memory_space<vmem>>, %arg14: memref<4x8x16xf32, #tpu.memory_space<vmem>>, %arg15: memref<4x16x8xf32, #tpu.memory_space<vmem>>) attributes {dimension_semantics = [#tpu.dimension_semantics<parallel>, #tpu.dimension_semantics<arbitrary>], iteration_bounds = array<i64: 2, 2>, scalar_prefetch = 0 : i64, scratch_operands = 2 : i64, tpu.core_type = #tpu.core_type<tc>, window_params = [{transform_indices = @transform_0, window_bounds = array<i64: 1, 16, 32>}, {pipeline_mode = #tpu.pipeline_mode<synchronous>, transform_indices = @transform_1, window_bounds = array<i64: 1, 32>}, {pipeline_mode = #tpu.pipeline_mode<synchronous>, transform_indices = @transform_2, window_bounds = array<i64: 1, 32>}, {pipeline_mode = #tpu.pipeline_mode<synchronous>, transform_indices = @transform_3, window_bounds = array<i64: 32, 32>}, {pipeline_mode = #tpu.pipeline_mode<synchronous>, transform_indices = @transform_4, window_bounds = array<i64: 32, 64>}, {pipeline_mode = #tpu.pipeline_mode<synchronous>, transform_indices = @transform_5, window_bounds = array<i64: 1, 32>}, {pipeline_mode = #tpu.pipeline_mode<synchronous>, transform_indices = @transform_6, window_bounds = array<i64: 1, 32>}, {pipeline_mode = #tpu.pipeline_mode<synchronous>, transform_indices = @transform_7, window_bounds = array<i64: 32, 128>}, {pipeline_mode = #tpu.pipeline_mode<synchronous>, transform_indices = @transform_8, window_bounds = array<i64: 1, 128>}, {pipeline_mode = #tpu.pipeline_mode<synchronous>, transform_indices = @transform_9, window_bounds = array<i64: 128, 32>}, {pipeline_mode = #tpu.pipeline_mode<synchronous>, transform_indices = @transform_10, window_bounds = array<i64: 1, 32>}, {transform_indices = @transform_11, window_bounds = array<i64: 1, 8, 32>}]} {
    %c8_i32 = arith.constant 8 : i32
    %0 = arith.muli %arg1, %c8_i32 : i32
    %1 = tpu.assume_multiple %0, 8 : i32
    %c0 = arith.constant 0 : index
    %c0_0 = arith.constant 0 : index
    %2 = vector.load %arg3[%c0, %c0_0] : memref<1x32xf32, #tpu.memory_space<vmem>>, vector<1x32xf32>
    %c0_1 = arith.constant 0 : index
    %c0_2 = arith.constant 0 : index
    %3 = vector.load %arg4[%c0_1, %c0_2] : memref<1x32xf32, #tpu.memory_space<vmem>>, vector<1x32xf32>
    %c0_i32 = arith.constant 0 : i32
    %4 = arith.cmpi eq, %arg1, %c0_i32 : i32
    %5 = arith.extui %4 : i1 to i32
    %c0_i32_3 = arith.constant 0 : i32
    %6 = arith.cmpi ne, %5, %c0_i32_3 : i32
    scf.if %6 {
      %c0_81 = arith.constant 0 : index
      %c0_82 = arith.constant 0 : index
      %c0_83 = arith.constant 0 : index
      %162 = vector.load %arg2[%c0_81, %c0_82, %c0_83] : memref<1x16x32xf32, #tpu.memory_space<vmem>>, vector<1x16x32xf32>
      %163 = vector.shape_cast %162 : vector<1x16x32xf32> to vector<16x32xf32>
      %cst_84 = arith.constant dense<0.000000e+00> : vector<16xf32>
      %164 = vector.multi_reduction <add>, %163, %cst_84 [1] : vector<16x32xf32> to vector<16xf32>
      %165 = vector.shape_cast %164 : vector<16xf32> to vector<16x1xf32>
      %cst_85 = arith.constant 3.200000e+01 : f32
      %166 = vector.broadcast %cst_85 : f32 to vector<16x1xf32>
      %167 = arith.divf %165, %166 : vector<16x1xf32>
      %168 = vector.broadcast %167 : vector<16x1xf32> to vector<16x32xf32>
      %169 = arith.subf %163, %168 : vector<16x32xf32>
      %170 = arith.mulf %169, %169 : vector<16x32xf32>
      %cst_86 = arith.constant dense<0.000000e+00> : vector<16xf32>
      %171 = vector.multi_reduction <add>, %170, %cst_86 [1] : vector<16x32xf32> to vector<16xf32>
      %172 = vector.shape_cast %171 : vector<16xf32> to vector<16x1xf32>
      %cst_87 = arith.constant 3.100000e+01 : f32
      %173 = vector.broadcast %cst_87 : f32 to vector<16x1xf32>
      %174 = arith.divf %172, %173 : vector<16x1xf32>
      %cst_88 = arith.constant 9.99999974E-6 : f32
      %175 = vector.broadcast %cst_88 : f32 to vector<16x1xf32>
      %176 = arith.addf %174, %175 : vector<16x1xf32>
      %177 = math.sqrt %176 : vector<16x1xf32>
      %178 = vector.broadcast %177 : vector<16x1xf32> to vector<16x32xf32>
      %179 = arith.divf %169, %178 : vector<16x32xf32>
      %180 = vector.broadcast %2 : vector<1x32xf32> to vector<16x32xf32>
      %181 = arith.mulf %180, %179 : vector<16x32xf32>
      %182 = vector.broadcast %3 : vector<1x32xf32> to vector<16x32xf32>
      %183 = arith.addf %181, %182 : vector<16x32xf32>
      %c0_89 = arith.constant 0 : index
      %c0_90 = arith.constant 0 : index
      %184 = vector.load %arg6[%c0_89, %c0_90] : memref<32x64xf32, #tpu.memory_space<vmem>>, vector<32x64xf32>
      %cst_91 = arith.constant dense<0.000000e+00> : vector<16x64xf32>
      %185 = tpu.matmul %183, %184, %cst_91 {dimension_numbers = #tpu.dot_dimension_numbers<[1], [0], [0], [1], [0, 0, 1, 1], [], []>} : vector<16x32xf32>, vector<32x64xf32>, vector<16x64xf32> -> vector<16x64xf32>
      %186 = vector.extract_strided_slice %185 {offsets = [0, 0], sizes = [16, 8], strides = [1, 1]} : vector<16x64xf32> to vector<16x8xf32>
      %187 = tpu.transpose %186, [1, 0] : vector<16x8xf32> -> vector<8x16xf32>
      %c0_92 = arith.constant 0 : index
      %c0_93 = arith.constant 0 : index
      %c0_94 = arith.constant 0 : index
      %188 = vector.load %arg14[%c0_92, %c0_93, %c0_94] : memref<4x8x16xf32, #tpu.memory_space<vmem>>, vector<1x8x16xf32>
      %189 = vector.shape_cast %188 : vector<1x8x16xf32> to vector<8x16xf32>
      %190 = vector.shape_cast %187 : vector<8x16xf32> to vector<1x8x16xf32>
      tpu.vector_store %arg14[%c0_92, %c0_93, %c0_94], %190 {strides = array<i32>} : memref<4x8x16xf32, #tpu.memory_space<vmem>>, vector<1x8x16xf32>,
      %191 = vector.extract_strided_slice %185 {offsets = [0, 32], sizes = [16, 8], strides = [1, 1]} : vector<16x64xf32> to vector<16x8xf32>
      %c0_95 = arith.constant 0 : index
      %c0_96 = arith.constant 0 : index
      %c0_97 = arith.constant 0 : index
      %192 = vector.load %arg15[%c0_95, %c0_96, %c0_97] : memref<4x16x8xf32, #tpu.memory_space<vmem>>, vector<1x16x8xf32>
      %193 = vector.shape_cast %192 : vector<1x16x8xf32> to vector<16x8xf32>
      %194 = vector.shape_cast %191 : vector<16x8xf32> to vector<1x16x8xf32>
      tpu.vector_store %arg15[%c0_95, %c0_96, %c0_97], %194 {strides = array<i32>} : memref<4x16x8xf32, #tpu.memory_space<vmem>>, vector<1x16x8xf32>,
      %195 = vector.extract_strided_slice %185 {offsets = [0, 8], sizes = [16, 8], strides = [1, 1]} : vector<16x64xf32> to vector<16x8xf32>
      %196 = tpu.transpose %195, [1, 0] : vector<16x8xf32> -> vector<8x16xf32>
      %c1_98 = arith.constant 1 : index
      %c0_99 = arith.constant 0 : index
      %c0_100 = arith.constant 0 : index
      %197 = vector.load %arg14[%c1_98, %c0_99, %c0_100] : memref<4x8x16xf32, #tpu.memory_space<vmem>>, vector<1x8x16xf32>
      %198 = vector.shape_cast %197 : vector<1x8x16xf32> to vector<8x16xf32>
      %199 = vector.shape_cast %196 : vector<8x16xf32> to vector<1x8x16xf32>
      tpu.vector_store %arg14[%c1_98, %c0_99, %c0_100], %199 {strides = array<i32>} : memref<4x8x16xf32, #tpu.memory_space<vmem>>, vector<1x8x16xf32>,
      %200 = vector.extract_strided_slice %185 {offsets = [0, 40], sizes = [16, 8], strides = [1, 1]} : vector<16x64xf32> to vector<16x8xf32>
      %c1_101 = arith.constant 1 : index
      %c0_102 = arith.constant 0 : index
      %c0_103 = arith.constant 0 : index
      %201 = vector.load %arg15[%c1_101, %c0_102, %c0_103] : memref<4x16x8xf32, #tpu.memory_space<vmem>>, vector<1x16x8xf32>
      %202 = vector.shape_cast %201 : vector<1x16x8xf32> to vector<16x8xf32>
      %203 = vector.shape_cast %200 : vector<16x8xf32> to vector<1x16x8xf32>
      tpu.vector_store %arg15[%c1_101, %c0_102, %c0_103], %203 {strides = array<i32>} : memref<4x16x8xf32, #tpu.memory_space<vmem>>, vector<1x16x8xf32>,
      %204 = vector.extract_strided_slice %185 {offsets = [0, 16], sizes = [16, 8], strides = [1, 1]} : vector<16x64xf32> to vector<16x8xf32>
      %205 = tpu.transpose %204, [1, 0] : vector<16x8xf32> -> vector<8x16xf32>
      %c2_104 = arith.constant 2 : index
      %c0_105 = arith.constant 0 : index
      %c0_106 = arith.constant 0 : index
      %206 = vector.load %arg14[%c2_104, %c0_105, %c0_106] : memref<4x8x16xf32, #tpu.memory_space<vmem>>, vector<1x8x16xf32>
      %207 = vector.shape_cast %206 : vector<1x8x16xf32> to vector<8x16xf32>
      %208 = vector.shape_cast %205 : vector<8x16xf32> to vector<1x8x16xf32>
      tpu.vector_store %arg14[%c2_104, %c0_105, %c0_106], %208 {strides = array<i32>} : memref<4x8x16xf32, #tpu.memory_space<vmem>>, vector<1x8x16xf32>,
      %209 = vector.extract_strided_slice %185 {offsets = [0, 48], sizes = [16, 8], strides = [1, 1]} : vector<16x64xf32> to vector<16x8xf32>
      %c2_107 = arith.constant 2 : index
      %c0_108 = arith.constant 0 : index
      %c0_109 = arith.constant 0 : index
      %210 = vector.load %arg15[%c2_107, %c0_108, %c0_109] : memref<4x16x8xf32, #tpu.memory_space<vmem>>, vector<1x16x8xf32>
      %211 = vector.shape_cast %210 : vector<1x16x8xf32> to vector<16x8xf32>
      %212 = vector.shape_cast %209 : vector<16x8xf32> to vector<1x16x8xf32>
      tpu.vector_store %arg15[%c2_107, %c0_108, %c0_109], %212 {strides = array<i32>} : memref<4x16x8xf32, #tpu.memory_space<vmem>>, vector<1x16x8xf32>,
      %213 = vector.extract_strided_slice %185 {offsets = [0, 24], sizes = [16, 8], strides = [1, 1]} : vector<16x64xf32> to vector<16x8xf32>
      %214 = tpu.transpose %213, [1, 0] : vector<16x8xf32> -> vector<8x16xf32>
      %c3_110 = arith.constant 3 : index
      %c0_111 = arith.constant 0 : index
      %c0_112 = arith.constant 0 : index
      %215 = vector.load %arg14[%c3_110, %c0_111, %c0_112] : memref<4x8x16xf32, #tpu.memory_space<vmem>>, vector<1x8x16xf32>
      %216 = vector.shape_cast %215 : vector<1x8x16xf32> to vector<8x16xf32>
      %217 = vector.shape_cast %214 : vector<8x16xf32> to vector<1x8x16xf32>
      tpu.vector_store %arg14[%c3_110, %c0_111, %c0_112], %217 {strides = array<i32>} : memref<4x8x16xf32, #tpu.memory_space<vmem>>, vector<1x8x16xf32>,
      %218 = vector.extract_strided_slice %185 {offsets = [0, 56], sizes = [16, 8], strides = [1, 1]} : vector<16x64xf32> to vector<16x8xf32>
      %c3_113 = arith.constant 3 : index
      %c0_114 = arith.constant 0 : index
      %c0_115 = arith.constant 0 : index
      %219 = vector.load %arg15[%c3_113, %c0_114, %c0_115] : memref<4x16x8xf32, #tpu.memory_space<vmem>>, vector<1x16x8xf32>
      %220 = vector.shape_cast %219 : vector<1x16x8xf32> to vector<16x8xf32>
      %221 = vector.shape_cast %218 : vector<16x8xf32> to vector<1x16x8xf32>
      tpu.vector_store %arg15[%c3_113, %c0_114, %c0_115], %221 {strides = array<i32>} : memref<4x16x8xf32, #tpu.memory_space<vmem>>, vector<1x16x8xf32>,
    } else {
    }
    %c0_4 = arith.constant 0 : index
    %7 = arith.index_cast %1 : i32 to index
    %c0_5 = arith.constant 0 : index
    %8 = vector.load %arg2[%c0_4, %7, %c0_5] : memref<1x16x32xf32, #tpu.memory_space<vmem>>, vector<1x8x32xf32>
    %9 = vector.shape_cast %8 : vector<1x8x32xf32> to vector<8x32xf32>
    %cst = arith.constant dense<0.000000e+00> : vector<8xf32>
    %10 = vector.multi_reduction <add>, %9, %cst [1] : vector<8x32xf32> to vector<8xf32>
    %11 = vector.shape_cast %10 : vector<8xf32> to vector<8x1xf32>
    %cst_6 = arith.constant 3.200000e+01 : f32
    %12 = vector.broadcast %cst_6 : f32 to vector<8x1xf32>
    %13 = arith.divf %11, %12 : vector<8x1xf32>
    %14 = vector.broadcast %13 : vector<8x1xf32> to vector<8x32xf32>
    %15 = arith.subf %9, %14 : vector<8x32xf32>
    %16 = arith.mulf %15, %15 : vector<8x32xf32>
    %cst_7 = arith.constant dense<0.000000e+00> : vector<8xf32>
    %17 = vector.multi_reduction <add>, %16, %cst_7 [1] : vector<8x32xf32> to vector<8xf32>
    %18 = vector.shape_cast %17 : vector<8xf32> to vector<8x1xf32>
    %cst_8 = arith.constant 3.100000e+01 : f32
    %19 = vector.broadcast %cst_8 : f32 to vector<8x1xf32>
    %20 = arith.divf %18, %19 : vector<8x1xf32>
    %cst_9 = arith.constant 9.99999974E-6 : f32
    %21 = vector.broadcast %cst_9 : f32 to vector<8x1xf32>
    %22 = arith.addf %20, %21 : vector<8x1xf32>
    %23 = math.sqrt %22 : vector<8x1xf32>
    %24 = vector.broadcast %23 : vector<8x1xf32> to vector<8x32xf32>
    %25 = arith.divf %15, %24 : vector<8x32xf32>
    %26 = vector.broadcast %2 : vector<1x32xf32> to vector<8x32xf32>
    %27 = arith.mulf %26, %25 : vector<8x32xf32>
    %28 = vector.broadcast %3 : vector<1x32xf32> to vector<8x32xf32>
    %29 = arith.addf %27, %28 : vector<8x32xf32>
    %cst_10 = arith.constant 0.353553385 : f32
    %30 = vector.broadcast %cst_10 : f32 to vector<8x32xf32>
    %31 = arith.mulf %29, %30 : vector<8x32xf32>
    %c0_11 = arith.constant 0 : index
    %c0_12 = arith.constant 0 : index
    %32 = vector.load %arg5[%c0_11, %c0_12] : memref<32x32xf32, #tpu.memory_space<vmem>>, vector<32x32xf32>
    %cst_13 = arith.constant dense<0.000000e+00> : vector<8x32xf32>
    %33 = tpu.matmul %31, %32, %cst_13 {dimension_numbers = #tpu.dot_dimension_numbers<[1], [0], [0], [1], [0, 0, 1, 1], [], []>} : vector<8x32xf32>, vector<32x32xf32>, vector<8x32xf32> -> vector<8x32xf32>
    %34 = tpu.iota {dimensions = array<i32: 0>} : vector<8x16xi32>
    %35 = vector.broadcast %1 : i32 to vector<8x16xi32>
    %36 = arith.addi %35, %34 : vector<8x16xi32>
    %37 = tpu.iota {dimensions = array<i32: 1>} : vector<8x16xi32>
    %38 = arith.cmpi sgt, %37, %36 : vector<8x16xi32>
    %39 = vector.extract_strided_slice %33 {offsets = [0, 0], sizes = [8, 8], strides = [1, 1]} : vector<8x32xf32> to vector<8x8xf32>
    %c0_14 = arith.constant 0 : index
    %c0_15 = arith.constant 0 : index
    %c0_16 = arith.constant 0 : index
    %40 = vector.load %arg14[%c0_14, %c0_15, %c0_16] : memref<4x8x16xf32, #tpu.memory_space<vmem>>, vector<1x8x16xf32>
    %41 = vector.shape_cast %40 : vector<1x8x16xf32> to vector<8x16xf32>
    %cst_17 = arith.constant dense<0.000000e+00> : vector<8x16xf32>
    %42 = tpu.matmul %39, %41, %cst_17 {dimension_numbers = #tpu.dot_dimension_numbers<[1], [0], [0], [1], [0, 0, 1, 1], [], []>} : vector<8x8xf32>, vector<8x16xf32>, vector<8x16xf32> -> vector<8x16xf32>
    %cst_18 = arith.constant -1.70141173E+38 : f32
    %43 = vector.broadcast %cst_18 : f32 to vector<8x16xf32>
    %44 = arith.select %38, %43, %42 : vector<8x16xi1>, vector<8x16xf32>
    %cst_19 = arith.constant dense<0xFF800000> : vector<8xf32>
    %45 = vector.multi_reduction <maximumf>, %44, %cst_19 [1] : vector<8x16xf32> to vector<8xf32>
    %46 = vector.shape_cast %45 : vector<8xf32> to vector<8x1xf32>
    %47 = vector.broadcast %46 : vector<8x1xf32> to vector<8x16xf32>
    %48 = arith.subf %44, %47 : vector<8x16xf32>
    %49 = math.exp %48 : vector<8x16xf32>
    %cst_20 = arith.constant dense<0.000000e+00> : vector<8xf32>
    %50 = vector.multi_reduction <add>, %49, %cst_20 [1] : vector<8x16xf32> to vector<8xf32>
    %51 = vector.shape_cast %50 : vector<8xf32> to vector<8x1xf32>
    %52 = vector.broadcast %51 : vector<8x1xf32> to vector<8x16xf32>
    %53 = arith.divf %49, %52 : vector<8x16xf32>
    %c0_21 = arith.constant 0 : index
    %c0_22 = arith.constant 0 : index
    %c0_23 = arith.constant 0 : index
    %54 = vector.load %arg15[%c0_21, %c0_22, %c0_23] : memref<4x16x8xf32, #tpu.memory_space<vmem>>, vector<1x16x8xf32>
    %55 = vector.shape_cast %54 : vector<1x16x8xf32> to vector<16x8xf32>
    %cst_24 = arith.constant dense<0.000000e+00> : vector<8x8xf32>
    %56 = tpu.matmul %53, %55, %cst_24 {dimension_numbers = #tpu.dot_dimension_numbers<[1], [0], [0], [1], [0, 0, 1, 1], [], []>} : vector<8x16xf32>, vector<16x8xf32>, vector<8x8xf32> -> vector<8x8xf32>
    %57 = vector.extract_strided_slice %33 {offsets = [0, 8], sizes = [8, 8], strides = [1, 1]} : vector<8x32xf32> to vector<8x8xf32>
    %c1 = arith.constant 1 : index
    %c0_25 = arith.constant 0 : index
    %c0_26 = arith.constant 0 : index
    %58 = vector.load %arg14[%c1, %c0_25, %c0_26] : memref<4x8x16xf32, #tpu.memory_space<vmem>>, vector<1x8x16xf32>
    %59 = vector.shape_cast %58 : vector<1x8x16xf32> to vector<8x16xf32>
    %cst_27 = arith.constant dense<0.000000e+00> : vector<8x16xf32>
    %60 = tpu.matmul %57, %59, %cst_27 {dimension_numbers = #tpu.dot_dimension_numbers<[1], [0], [0], [1], [0, 0, 1, 1], [], []>} : vector<8x8xf32>, vector<8x16xf32>, vector<8x16xf32> -> vector<8x16xf32>
    %cst_28 = arith.constant -1.70141173E+38 : f32
    %61 = vector.broadcast %cst_28 : f32 to vector<8x16xf32>
    %62 = arith.select %38, %61, %60 : vector<8x16xi1>, vector<8x16xf32>
    %cst_29 = arith.constant dense<0xFF800000> : vector<8xf32>
    %63 = vector.multi_reduction <maximumf>, %62, %cst_29 [1] : vector<8x16xf32> to vector<8xf32>
    %64 = vector.shape_cast %63 : vector<8xf32> to vector<8x1xf32>
    %65 = vector.broadcast %64 : vector<8x1xf32> to vector<8x16xf32>
    %66 = arith.subf %62, %65 : vector<8x16xf32>
    %67 = math.exp %66 : vector<8x16xf32>
    %cst_30 = arith.constant dense<0.000000e+00> : vector<8xf32>
    %68 = vector.multi_reduction <add>, %67, %cst_30 [1] : vector<8x16xf32> to vector<8xf32>
    %69 = vector.shape_cast %68 : vector<8xf32> to vector<8x1xf32>
    %70 = vector.broadcast %69 : vector<8x1xf32> to vector<8x16xf32>
    %71 = arith.divf %67, %70 : vector<8x16xf32>
    %c1_31 = arith.constant 1 : index
    %c0_32 = arith.constant 0 : index
    %c0_33 = arith.constant 0 : index
    %72 = vector.load %arg15[%c1_31, %c0_32, %c0_33] : memref<4x16x8xf32, #tpu.memory_space<vmem>>, vector<1x16x8xf32>
    %73 = vector.shape_cast %72 : vector<1x16x8xf32> to vector<16x8xf32>
    %cst_34 = arith.constant dense<0.000000e+00> : vector<8x8xf32>
    %74 = tpu.matmul %71, %73, %cst_34 {dimension_numbers = #tpu.dot_dimension_numbers<[1], [0], [0], [1], [0, 0, 1, 1], [], []>} : vector<8x16xf32>, vector<16x8xf32>, vector<8x8xf32> -> vector<8x8xf32>
    %75 = vector.extract_strided_slice %33 {offsets = [0, 16], sizes = [8, 8], strides = [1, 1]} : vector<8x32xf32> to vector<8x8xf32>
    %c2 = arith.constant 2 : index
    %c0_35 = arith.constant 0 : index
    %c0_36 = arith.constant 0 : index
    %76 = vector.load %arg14[%c2, %c0_35, %c0_36] : memref<4x8x16xf32, #tpu.memory_space<vmem>>, vector<1x8x16xf32>
    %77 = vector.shape_cast %76 : vector<1x8x16xf32> to vector<8x16xf32>
    %cst_37 = arith.constant dense<0.000000e+00> : vector<8x16xf32>
    %78 = tpu.matmul %75, %77, %cst_37 {dimension_numbers = #tpu.dot_dimension_numbers<[1], [0], [0], [1], [0, 0, 1, 1], [], []>} : vector<8x8xf32>, vector<8x16xf32>, vector<8x16xf32> -> vector<8x16xf32>
    %cst_38 = arith.constant -1.70141173E+38 : f32
    %79 = vector.broadcast %cst_38 : f32 to vector<8x16xf32>
    %80 = arith.select %38, %79, %78 : vector<8x16xi1>, vector<8x16xf32>
    %cst_39 = arith.constant dense<0xFF800000> : vector<8xf32>
    %81 = vector.multi_reduction <maximumf>, %80, %cst_39 [1] : vector<8x16xf32> to vector<8xf32>
    %82 = vector.shape_cast %81 : vector<8xf32> to vector<8x1xf32>
    %83 = vector.broadcast %82 : vector<8x1xf32> to vector<8x16xf32>
    %84 = arith.subf %80, %83 : vector<8x16xf32>
    %85 = math.exp %84 : vector<8x16xf32>
    %cst_40 = arith.constant dense<0.000000e+00> : vector<8xf32>
    %86 = vector.multi_reduction <add>, %85, %cst_40 [1] : vector<8x16xf32> to vector<8xf32>
    %87 = vector.shape_cast %86 : vector<8xf32> to vector<8x1xf32>
    %88 = vector.broadcast %87 : vector<8x1xf32> to vector<8x16xf32>
    %89 = arith.divf %85, %88 : vector<8x16xf32>
    %c2_41 = arith.constant 2 : index
    %c0_42 = arith.constant 0 : index
    %c0_43 = arith.constant 0 : index
    %90 = vector.load %arg15[%c2_41, %c0_42, %c0_43] : memref<4x16x8xf32, #tpu.memory_space<vmem>>, vector<1x16x8xf32>
    %91 = vector.shape_cast %90 : vector<1x16x8xf32> to vector<16x8xf32>
    %cst_44 = arith.constant dense<0.000000e+00> : vector<8x8xf32>
    %92 = tpu.matmul %89, %91, %cst_44 {dimension_numbers = #tpu.dot_dimension_numbers<[1], [0], [0], [1], [0, 0, 1, 1], [], []>} : vector<8x16xf32>, vector<16x8xf32>, vector<8x8xf32> -> vector<8x8xf32>
    %93 = vector.extract_strided_slice %33 {offsets = [0, 24], sizes = [8, 8], strides = [1, 1]} : vector<8x32xf32> to vector<8x8xf32>
    %c3 = arith.constant 3 : index
    %c0_45 = arith.constant 0 : index
    %c0_46 = arith.constant 0 : index
    %94 = vector.load %arg14[%c3, %c0_45, %c0_46] : memref<4x8x16xf32, #tpu.memory_space<vmem>>, vector<1x8x16xf32>
    %95 = vector.shape_cast %94 : vector<1x8x16xf32> to vector<8x16xf32>
    %cst_47 = arith.constant dense<0.000000e+00> : vector<8x16xf32>
    %96 = tpu.matmul %93, %95, %cst_47 {dimension_numbers = #tpu.dot_dimension_numbers<[1], [0], [0], [1], [0, 0, 1, 1], [], []>} : vector<8x8xf32>, vector<8x16xf32>, vector<8x16xf32> -> vector<8x16xf32>
    %cst_48 = arith.constant -1.70141173E+38 : f32
    %97 = vector.broadcast %cst_48 : f32 to vector<8x16xf32>
    %98 = arith.select %38, %97, %96 : vector<8x16xi1>, vector<8x16xf32>
    %cst_49 = arith.constant dense<0xFF800000> : vector<8xf32>
    %99 = vector.multi_reduction <maximumf>, %98, %cst_49 [1] : vector<8x16xf32> to vector<8xf32>
    %100 = vector.shape_cast %99 : vector<8xf32> to vector<8x1xf32>
    %101 = vector.broadcast %100 : vector<8x1xf32> to vector<8x16xf32>
    %102 = arith.subf %98, %101 : vector<8x16xf32>
    %103 = math.exp %102 : vector<8x16xf32>
    %cst_50 = arith.constant dense<0.000000e+00> : vector<8xf32>
    %104 = vector.multi_reduction <add>, %103, %cst_50 [1] : vector<8x16xf32> to vector<8xf32>
    %105 = vector.shape_cast %104 : vector<8xf32> to vector<8x1xf32>
    %106 = vector.broadcast %105 : vector<8x1xf32> to vector<8x16xf32>
    %107 = arith.divf %103, %106 : vector<8x16xf32>
    %c3_51 = arith.constant 3 : index
    %c0_52 = arith.constant 0 : index
    %c0_53 = arith.constant 0 : index
    %108 = vector.load %arg15[%c3_51, %c0_52, %c0_53] : memref<4x16x8xf32, #tpu.memory_space<vmem>>, vector<1x16x8xf32>
    %109 = vector.shape_cast %108 : vector<1x16x8xf32> to vector<16x8xf32>
    %cst_54 = arith.constant dense<0.000000e+00> : vector<8x8xf32>
    %110 = tpu.matmul %107, %109, %cst_54 {dimension_numbers = #tpu.dot_dimension_numbers<[1], [0], [0], [1], [0, 0, 1, 1], [], []>} : vector<8x16xf32>, vector<16x8xf32>, vector<8x8xf32> -> vector<8x8xf32>
    %111 = tpu.concatenate %56, %74, %92, %110 in 1 : vector<8x8xf32>, vector<8x8xf32>, vector<8x8xf32>, vector<8x8xf32> -> vector<8x32xf32>
    %112 = arith.addf %9, %111 : vector<8x32xf32>
    %c0_55 = arith.constant 0 : index
    %c0_56 = arith.constant 0 : index
    %113 = vector.load %arg7[%c0_55, %c0_56] : memref<1x32xf32, #tpu.memory_space<vmem>>, vector<1x32xf32>
    %c0_57 = arith.constant 0 : index
    %c0_58 = arith.constant 0 : index
    %114 = vector.load %arg8[%c0_57, %c0_58] : memref<1x32xf32, #tpu.memory_space<vmem>>, vector<1x32xf32>
    %cst_59 = arith.constant dense<0.000000e+00> : vector<8xf32>
    %115 = vector.multi_reduction <add>, %112, %cst_59 [1] : vector<8x32xf32> to vector<8xf32>
    %116 = vector.shape_cast %115 : vector<8xf32> to vector<8x1xf32>
    %cst_60 = arith.constant 3.200000e+01 : f32
    %117 = vector.broadcast %cst_60 : f32 to vector<8x1xf32>
    %118 = arith.divf %116, %117 : vector<8x1xf32>
    %119 = vector.broadcast %118 : vector<8x1xf32> to vector<8x32xf32>
    %120 = arith.subf %112, %119 : vector<8x32xf32>
    %121 = arith.mulf %120, %120 : vector<8x32xf32>
    %cst_61 = arith.constant dense<0.000000e+00> : vector<8xf32>
    %122 = vector.multi_reduction <add>, %121, %cst_61 [1] : vector<8x32xf32> to vector<8xf32>
    %123 = vector.shape_cast %122 : vector<8xf32> to vector<8x1xf32>
    %cst_62 = arith.constant 3.100000e+01 : f32
    %124 = vector.broadcast %cst_62 : f32 to vector<8x1xf32>
    %125 = arith.divf %123, %124 : vector<8x1xf32>
    %cst_63 = arith.constant 9.99999974E-6 : f32
    %126 = vector.broadcast %cst_63 : f32 to vector<8x1xf32>
    %127 = arith.addf %125, %126 : vector<8x1xf32>
    %128 = math.sqrt %127 : vector<8x1xf32>
    %129 = vector.broadcast %128 : vector<8x1xf32> to vector<8x32xf32>
    %130 = arith.divf %120, %129 : vector<8x32xf32>
    %131 = vector.broadcast %113 : vector<1x32xf32> to vector<8x32xf32>
    %132 = arith.mulf %131, %130 : vector<8x32xf32>
    %133 = vector.broadcast %114 : vector<1x32xf32> to vector<8x32xf32>
    %134 = arith.addf %132, %133 : vector<8x32xf32>
    %c0_64 = arith.constant 0 : index
    %c0_65 = arith.constant 0 : index
    %135 = vector.load %arg9[%c0_64, %c0_65] : memref<32x128xf32, #tpu.memory_space<vmem>>, vector<32x128xf32>
    %cst_66 = arith.constant dense<0.000000e+00> : vector<8x128xf32>
    %136 = tpu.matmul %134, %135, %cst_66 {dimension_numbers = #tpu.dot_dimension_numbers<[1], [0], [0], [1], [0, 0, 1, 1], [], []>} : vector<8x32xf32>, vector<32x128xf32>, vector<8x128xf32> -> vector<8x128xf32>
    %c0_67 = arith.constant 0 : index
    %c0_68 = arith.constant 0 : index
    %137 = vector.load %arg10[%c0_67, %c0_68] : memref<1x128xf32, #tpu.memory_space<vmem>>, vector<1x128xf32>
    %138 = vector.broadcast %137 : vector<1x128xf32> to vector<8x128xf32>
    %139 = arith.addf %136, %138 : vector<8x128xf32>
    %cst_69 = arith.constant 5.000000e-01 : f32
    %140 = vector.broadcast %cst_69 : f32 to vector<8x128xf32>
    %141 = arith.mulf %140, %139 : vector<8x128xf32>
    %cst_70 = arith.constant 4.471500e-02 : f32
    %142 = vector.broadcast %cst_70 : f32 to vector<8x128xf32>
    %143 = arith.mulf %142, %139 : vector<8x128xf32>
    %144 = arith.mulf %143, %139 : vector<8x128xf32>
    %145 = arith.mulf %144, %139 : vector<8x128xf32>
    %146 = arith.addf %139, %145 : vector<8x128xf32>
    %cst_71 = arith.constant 0.797884583 : f32
    %147 = vector.broadcast %cst_71 : f32 to vector<8x128xf32>
    %148 = arith.mulf %147, %146 : vector<8x128xf32>
    %149 = math.tanh %148 : vector<8x128xf32>
    %cst_72 = arith.constant 1.000000e+00 : f32
    %150 = vector.broadcast %cst_72 : f32 to vector<8x128xf32>
    %151 = arith.addf %150, %149 : vector<8x128xf32>
    %152 = arith.mulf %141, %151 : vector<8x128xf32>
    %c0_73 = arith.constant 0 : index
    %c0_74 = arith.constant 0 : index
    %153 = vector.load %arg11[%c0_73, %c0_74] : memref<128x32xf32, #tpu.memory_space<vmem>>, vector<128x32xf32>
    %cst_75 = arith.constant dense<0.000000e+00> : vector<8x32xf32>
    %154 = tpu.matmul %152, %153, %cst_75 {dimension_numbers = #tpu.dot_dimension_numbers<[1], [0], [0], [1], [0, 0, 1, 1], [], []>} : vector<8x128xf32>, vector<128x32xf32>, vector<8x32xf32> -> vector<8x32xf32>
    %c0_76 = arith.constant 0 : index
    %c0_77 = arith.constant 0 : index
    %155 = vector.load %arg12[%c0_76, %c0_77] : memref<1x32xf32, #tpu.memory_space<vmem>>, vector<1x32xf32>
    %156 = vector.broadcast %155 : vector<1x32xf32> to vector<8x32xf32>
    %157 = arith.addf %154, %156 : vector<8x32xf32>
    %158 = arith.addf %112, %157 : vector<8x32xf32>
    %c0_78 = arith.constant 0 : index
    %c0_79 = arith.constant 0 : index
    %c0_80 = arith.constant 0 : index
    %159 = vector.load %arg13[%c0_78, %c0_79, %c0_80] : memref<1x8x32xf32, #tpu.memory_space<vmem>>, vector<1x8x32xf32>
    %160 = vector.shape_cast %159 : vector<1x8x32xf32> to vector<8x32xf32>
    %161 = vector.shape_cast %158 : vector<8x32xf32> to vector<1x8x32xf32>
    tpu.vector_store %arg13[%c0_78, %c0_79, %c0_80], %161 {strides = array<i32>} : memref<1x8x32xf32, #tpu.memory_space<vmem>>, vector<1x8x32xf32>,
    return
  }
  func.func @transform_0(%arg0: i32, %arg1: i32) -> (i32, i32, i32) {
    %c0_i32 = arith.constant 0 : i32
    %c0_i32_0 = arith.constant 0 : i32
    %c0_i32_1 = arith.constant 0 : i32
    return %arg0, %c0_i32, %c0_i32_0 : i32, i32, i32
  }
  func.func @transform_1(%arg0: i32, %arg1: i32) -> (i32, i32) {
    %c0_i32 = arith.constant 0 : i32
    %c0_i32_0 = arith.constant 0 : i32
    %c0_i32_1 = arith.constant 0 : i32
    return %c0_i32, %c0_i32_0 : i32, i32
  }
  func.func @transform_2(%arg0: i32, %arg1: i32) -> (i32, i32) {
    %c0_i32 = arith.constant 0 : i32
    %c0_i32_0 = arith.constant 0 : i32
    %c0_i32_1 = arith.constant 0 : i32
    return %c0_i32, %c0_i32_0 : i32, i32
  }
  func.func @transform_3(%arg0: i32, %arg1: i32) -> (i32, i32) {
    %c0_i32 = arith.constant 0 : i32
    %c0_i32_0 = arith.constant 0 : i32
    %c0_i32_1 = arith.constant 0 : i32
    return %c0_i32, %c0_i32_0 : i32, i32
  }
  func.func @transform_4(%arg0: i32, %arg1: i32) -> (i32, i32) {
    %c0_i32 = arith.constant 0 : i32
    %c0_i32_0 = arith.constant 0 : i32
    %c0_i32_1 = arith.constant 0 : i32
    return %c0_i32, %c0_i32_0 : i32, i32
  }
  func.func @transform_5(%arg0: i32, %arg1: i32) -> (i32, i32) {
    %c0_i32 = arith.constant 0 : i32
    %c0_i32_0 = arith.constant 0 : i32
    %c0_i32_1 = arith.constant 0 : i32
    return %c0_i32, %c0_i32_0 : i32, i32
  }
  func.func @transform_6(%arg0: i32, %arg1: i32) -> (i32, i32) {
    %c0_i32 = arith.constant 0 : i32
    %c0_i32_0 = arith.constant 0 : i32
    %c0_i32_1 = arith.constant 0 : i32
    return %c0_i32, %c0_i32_0 : i32, i32
  }
  func.func @transform_7(%arg0: i32, %arg1: i32) -> (i32, i32) {
    %c0_i32 = arith.constant 0 : i32
    %c0_i32_0 = arith.constant 0 : i32
    %c0_i32_1 = arith.constant 0 : i32
    return %c0_i32, %c0_i32_0 : i32, i32
  }
  func.func @transform_8(%arg0: i32, %arg1: i32) -> (i32, i32) {
    %c0_i32 = arith.constant 0 : i32
    %c0_i32_0 = arith.constant 0 : i32
    %c0_i32_1 = arith.constant 0 : i32
    return %c0_i32, %c0_i32_0 : i32, i32
  }
  func.func @transform_9(%arg0: i32, %arg1: i32) -> (i32, i32) {
    %c0_i32 = arith.constant 0 : i32
    %c0_i32_0 = arith.constant 0 : i32
    %c0_i32_1 = arith.constant 0 : i32
    return %c0_i32, %c0_i32_0 : i32, i32
  }
  func.func @transform_10(%arg0: i32, %arg1: i32) -> (i32, i32) {
    %c0_i32 = arith.constant 0 : i32
    %c0_i32_0 = arith.constant 0 : i32
    %c0_i32_1 = arith.constant 0 : i32
    return %c0_i32, %c0_i32_0 : i32, i32
  }
  func.func @transform_11(%arg0: i32, %arg1: i32) -> (i32, i32, i32) {
    %c0_i32 = arith.constant 0 : i32
    %c0_i32_0 = arith.constant 0 : i32
    return %arg0, %arg1, %c0_i32 : i32, i32, i32
  }
}

</mosaic_0001>

<llo_original>
// kernel: tpu_custom_call.1
$region0: #{tpu_custom_call.1}
  #allocation0 [shape = 'u32[]', space=smem, size = 0x4, offset = 0x4, fixed_abs, tag = 'smem constant byte address 0x4 - core index']
  #allocation1 [shape = 'u32[144,128]{1,0:T(1,128)}', space=vmem, size = 0x12000, scoped, tag = 'internal scratch']
  #allocation2 [shape = 'f32[4,8,16]{2,1,0:T(8,128)}', space=vmem, size = 0x4000, scoped, tag = 'scratch operand']
  #allocation3 [shape = 'f32[4,16,8]{2,1,0:T(8,128)}', space=vmem, size = 0x8000, scoped, tag = 'scratch operand']
  %s0 = inlined_call_operand.vmem [shape: f32[2,16,32], index: 0, kind: input, shape index: {}]
  %s1 = inlined_call_operand.vmem [shape: f32[1,32], index: 1, kind: input, shape index: {}]
  %s2 = inlined_call_operand.vmem [shape: f32[1,32], index: 2, kind: input, shape index: {}]
  %s3 = inlined_call_operand.vmem [shape: f32[32,32], index: 3, kind: input, shape index: {}]
  %s4 = inlined_call_operand.vmem [shape: f32[32,64], index: 4, kind: input, shape index: {}]
  %s5 = inlined_call_operand.vmem [shape: f32[1,32], index: 5, kind: input, shape index: {}]
  %s6 = inlined_call_operand.vmem [shape: f32[1,32], index: 6, kind: input, shape index: {}]
  %s7 = inlined_call_operand.vmem [shape: f32[32,128], index: 7, kind: input, shape index: {}]
  %s8 = inlined_call_operand.vmem [shape: f32[1,128], index: 8, kind: input, shape index: {}]
  %s9 = inlined_call_operand.vmem [shape: f32[128,32], index: 9, kind: input, shape index: {}]
  %s10 = inlined_call_operand.vmem [shape: f32[1,32], index: 10, kind: input, shape index: {}]
  %s11 = inlined_call_operand.hbm [shape: f32[2,16,32], index: 11, kind: output, shape index: {}]
  %s12 = sld [smem:[#allocation0]]
  $region81: #{tpu_custom_call.1} parent=0
    _
  %s14 = ssub.s32 1, %s12
  %s15 = scalar_select 0, %s14, %s12
  $region1: #{tpu_custom_call.1} parent=0
    #allocation4 [shape = 'u8[8192]{0}', space=vmem, size = 0x2000, scoped, tag = 'output window, operand 0']
    #allocation5 [shape = 's32[2]{0}', space=sflag, size = 0x8, scoped, tag = 'scoped memory for tpu_custom_call.1']
    %16 = vsyncpa [#allocation5], 0
    %s17 = scalar_lea.sflag [#allocation5], 1
    %18 = vsyncpa %s17, 0
    loop: start=0, step=1, limit=6
    $region2: #{tpu_custom_call.1} parent=1 // loop_pre_header
      _
    $region3: #{tpu_custom_call.1} parent=1 // loop_header
      %s20 = sphi 0, %s24
      %p21 = scmp.ge.s32.totalorder %s20, 6
      %s27 = sphi 0, %s39
      %s28 = sphi 0, %s35
      %s29 = sphi 0, %s27
      %s30 = sphi 0, %s28
      %s31 = sphi 0, %s29
      %s32 = sphi 0, %s30
      %s42 = sphi 0, %s44
      %s45 = sphi 0, %s42
      %s46 = sphi 0, %s45
      %s62 = sphi 0, %s46
      %s66 = sphi 0, %s66
      %s68 = sphi 0, %s66
      %s69 = sphi 0, %s68
      %s83 = sphi 0, %s69
      %s87 = sphi 0, %s87
      %s89 = sphi 0, %s87
      %s90 = sphi 0, %s89
      %s104 = sphi 0, %s90
      %s108 = sphi 0, %s108
      %s110 = sphi 0, %s108
      %s111 = sphi 0, %s110
      %s125 = sphi 0, %s111
      %s129 = sphi 0, %s129
      %s131 = sphi 0, %s129
      %s132 = sphi 0, %s131
      %s146 = sphi 0, %s132
      %s150 = sphi 0, %s150
      %s152 = sphi 0, %s150
      %s153 = sphi 0, %s152
      %s167 = sphi 0, %s153
      %s171 = sphi 0, %s171
      %s173 = sphi 0, %s171
      %s174 = sphi 0, %s173
      %s188 = sphi 0, %s174
      %s192 = sphi 0, %s192
      %s194 = sphi 0, %s192
      %s195 = sphi 0, %s194
      %s209 = sphi 0, %s195
      %s213 = sphi 0, %s213
      %s215 = sphi 0, %s213
      %s216 = sphi 0, %s215
      %s230 = sphi 0, %s216
      %s234 = sphi 0, %s234
      %s236 = sphi 0, %s234
      %s237 = sphi 0, %s236
      %s251 = sphi 0, %s237
      %s255 = sphi 0, %s255
      %s257 = sphi 0, %s255
      %s258 = sphi 0, %s257
      %s272 = sphi 0, %s258
      %s280 = sphi 0, %s282
      %s283 = sphi 0, %s280
      %s284 = sphi 0, %s283
      %s300 = sphi 0, %s284
    $region4: #{tpu_custom_call.1} parent=1 // loop_header_branch
      %23 = sbr.rel (%p21) target = $region8
    $region5: #{tpu_custom_call.1} parent=1 // loop_body
      %s25 = ssub.s32 %s20, 1
      %s26 = ssub.s32 %s20, 2
      %s33 = sadd.s32 1, %s28
      %p34 = scmp.ge.s32.totalorder %s33, 2
      %s35 = scalar_select %p34, 0, %s33
      %s36 = sadd.s32 1, %s27
      %s37 = scalar_select %p34, %s36, %s27
      %p38 = scmp.ge.s32.totalorder %s37, 2
      %s39 = scalar_select %p38, 0, %s37
      %s40 = ssub.s32 %s27, %s39
      %p41 = scmp.eq.s32.totalorder %s40, 0
      %s43 = sadd.s32 %s42, 1
      %s44 = scalar_select %p41, %s42, %s43
      %p47 = pneg %p41
      %p48 = scmp.eq.s32.totalorder %s20, 3
      %p49 = por %p47, %p48
      %p50 = scmp.ne.s32.totalorder %s42, %s45
      %p51 = scmp.eq.s32.totalorder %s20, 0
      %p52 = por %p50, %p51
      %p53 = scmp.ne.s32.totalorder %s42, %s45
      %p54 = scmp.eq.s32.totalorder %s25, 3
      %p55 = por %p53, %p54
      %p56 = scmp.ne.s32.totalorder %s45, %s46
      %p57 = scmp.eq.s32.totalorder %s25, 0
      %p58 = por %p56, %p57
      %p59 = scmp.ne.s32.totalorder %s45, %s46
      %p60 = scmp.eq.s32.totalorder %s26, 3
      %p61 = por %p59, %p60
      %p63 = scmp.ne.s32.totalorder %s46, %s62
      %p64 = scmp.eq.s32.totalorder %s26, 0
      %p65 = por %p63, %p64
      %s67 = sadd.s32 %s66, 1
      %p70 = scmp.eq.s32.totalorder %s20, 3
      %p71 = scmp.ne.s32.totalorder %s66, %s68
      %p72 = scmp.eq.s32.totalorder %s20, 0
      %p73 = por %p71, %p72
      %p74 = scmp.ne.s32.totalorder %s66, %s68
      %p75 = scmp.eq.s32.totalorder %s25, 3
      %p76 = por %p74, %p75
      %p77 = scmp.ne.s32.totalorder %s68, %s69
      %p78 = scmp.eq.s32.totalorder %s25, 0
      %p79 = por %p77, %p78
      %p80 = scmp.ne.s32.totalorder %s68, %s69
      %p81 = scmp.eq.s32.totalorder %s26, 3
      %p82 = por %p80, %p81
      %p84 = scmp.ne.s32.totalorder %s69, %s83
      %p85 = scmp.eq.s32.totalorder %s26, 0
      %p86 = por %p84, %p85
      %s88 = sadd.s32 %s87, 1
      %p91 = scmp.eq.s32.totalorder %s20, 3
      %p92 = scmp.ne.s32.totalorder %s87, %s89
      %p93 = scmp.eq.s32.totalorder %s20, 0
      %p94 = por %p92, %p93
      %p95 = scmp.ne.s32.totalorder %s87, %s89
      %p96 = scmp.eq.s32.totalorder %s25, 3
      %p97 = por %p95, %p96
      %p98 = scmp.ne.s32.totalorder %s89, %s90
      %p99 = scmp.eq.s32.totalorder %s25, 0
      %p100 = por %p98, %p99
      %p101 = scmp.ne.s32.totalorder %s89, %s90
      %p102 = scmp.eq.s32.totalorder %s26, 3
      %p103 = por %p101, %p102
      %p105 = scmp.ne.s32.totalorder %s90, %s104
      %p106 = scmp.eq.s32.totalorder %s26, 0
      %p107 = por %p105, %p106
      %s109 = sadd.s32 %s108, 1
      %p112 = scmp.eq.s32.totalorder %s20, 3
      %p113 = scmp.ne.s32.totalorder %s108, %s110
      %p114 = scmp.eq.s32.totalorder %s20, 0
      %p115 = por %p113, %p114
      %p116 = scmp.ne.s32.totalorder %s108, %s110
      %p117 = scmp.eq.s32.totalorder %s25, 3
      %p118 = por %p116, %p117
      %p119 = scmp.ne.s32.totalorder %s110, %s111
      %p120 = scmp.eq.s32.totalorder %s25, 0
      %p121 = por %p119, %p120
      %p122 = scmp.ne.s32.totalorder %s110, %s111
      %p123 = scmp.eq.s32.totalorder %s26, 3
      %p124 = por %p122, %p123
      %p126 = scmp.ne.s32.totalorder %s111, %s125
      %p127 = scmp.eq.s32.totalorder %s26, 0
      %p128 = por %p126, %p127
      %s130 = sadd.s32 %s129, 1
      %p133 = scmp.eq.s32.totalorder %s20, 3
      %p134 = scmp.ne.s32.totalorder %s129, %s131
      %p135 = scmp.eq.s32.totalorder %s20, 0
      %p136 = por %p134, %p135
      %p137 = scmp.ne.s32.totalorder %s129, %s131
      %p138 = scmp.eq.s32.totalorder %s25, 3
      %p139 = por %p137, %p138
      %p140 = scmp.ne.s32.totalorder %s131, %s132
      %p141 = scmp.eq.s32.totalorder %s25, 0
      %p142 = por %p140, %p141
      %p143 = scmp.ne.s32.totalorder %s131, %s132
      %p144 = scmp.eq.s32.totalorder %s26, 3
      %p145 = por %p143, %p144
      %p147 = scmp.ne.s32.totalorder %s132, %s146
      %p148 = scmp.eq.s32.totalorder %s26, 0
      %p149 = por %p147, %p148
      %s151 = sadd.s32 %s150, 1
      %p154 = scmp.eq.s32.totalorder %s20, 3
      %p155 = scmp.ne.s32.totalorder %s150, %s152
      %p156 = scmp.eq.s32.totalorder %s20, 0
      %p157 = por %p155, %p156
      %p158 = scmp.ne.s32.totalorder %s150, %s152
      %p159 = scmp.eq.s32.totalorder %s25, 3
      %p160 = por %p158, %p159
      %p161 = scmp.ne.s32.totalorder %s152, %s153
      %p162 = scmp.eq.s32.totalorder %s25, 0
      %p163 = por %p161, %p162
      %p164 = scmp.ne.s32.totalorder %s152, %s153
      %p165 = scmp.eq.s32.totalorder %s26, 3
      %p166 = por %p164, %p165
      %p168 = scmp.ne.s32.totalorder %s153, %s167
      %p169 = scmp.eq.s32.totalorder %s26, 0
      %p170 = por %p168, %p169
      %s172 = sadd.s32 %s171, 1
      %p175 = scmp.eq.s32.totalorder %s20, 3
      %p176 = scmp.ne.s32.totalorder %s171, %s173
      %p177 = scmp.eq.s32.totalorder %s20, 0
      %p178 = por %p176, %p177
      %p179 = scmp.ne.s32.totalorder %s171, %s173
      %p180 = scmp.eq.s32.totalorder %s25, 3
      %p181 = por %p179, %p180
      %p182 = scmp.ne.s32.totalorder %s173, %s174
      %p183 = scmp.eq.s32.totalorder %s25, 0
      %p184 = por %p182, %p183
      %p185 = scmp.ne.s32.totalorder %s173, %s174
      %p186 = scmp.eq.s32.totalorder %s26, 3
      %p187 = por %p185, %p186
      %p189 = scmp.ne.s32.totalorder %s174, %s188
      %p190 = scmp.eq.s32.totalorder %s26, 0
      %p191 = por %p189, %p190
      %s193 = sadd.s32 %s192, 1
      %p196 = scmp.eq.s32.totalorder %s20, 3
      %p197 = scmp.ne.s32.totalorder %s192, %s194
      %p198 = scmp.eq.s32.totalorder %s20, 0
      %p199 = por %p197, %p198
      %p200 = scmp.ne.s32.totalorder %s192, %s194
      %p201 = scmp.eq.s32.totalorder %s25, 3
      %p202 = por %p200, %p201
      %p203 = scmp.ne.s32.totalorder %s194, %s195
      %p204 = scmp.eq.s32.totalorder %s25, 0
      %p205 = por %p203, %p204
      %p206 = scmp.ne.s32.totalorder %s194, %s195
      %p207 = scmp.eq.s32.totalorder %s26, 3
      %p208 = por %p206, %p207
      %p210 = scmp.ne.s32.totalorder %s195, %s209
      %p211 = scmp.eq.s32.totalorder %s26, 0
      %p212 = por %p210, %p211
      %s214 = sadd.s32 %s213, 1
      %p217 = scmp.eq.s32.totalorder %s20, 3
      %p218 = scmp.ne.s32.totalorder %s213, %s215
      %p219 = scmp.eq.s32.totalorder %s20, 0
      %p220 = por %p218, %p219
      %p221 = scmp.ne.s32.totalorder %s213, %s215
      %p222 = scmp.eq.s32.totalorder %s25, 3
      %p223 = por %p221, %p222
      %p224 = scmp.ne.s32.totalorder %s215, %s216
      %p225 = scmp.eq.s32.totalorder %s25, 0
      %p226 = por %p224, %p225
      %p227 = scmp.ne.s32.totalorder %s215, %s216
      %p228 = scmp.eq.s32.totalorder %s26, 3
      %p229 = por %p227, %p228
      %p231 = scmp.ne.s32.totalorder %s216, %s230
      %p232 = scmp.eq.s32.totalorder %s26, 0
      %p233 = por %p231, %p232
      %s235 = sadd.s32 %s234, 1
      %p238 = scmp.eq.s32.totalorder %s20, 3
      %p239 = scmp.ne.s32.totalorder %s234, %s236
      %p240 = scmp.eq.s32.totalorder %s20, 0
      %p241 = por %p239, %p240
      %p242 = scmp.ne.s32.totalorder %s234, %s236
      %p243 = scmp.eq.s32.totalorder %s25, 3
      %p244 = por %p242, %p243
      %p245 = scmp.ne.s32.totalorder %s236, %s237
      %p246 = scmp.eq.s32.totalorder %s25, 0
      %p247 = por %p245, %p246
      %p248 = scmp.ne.s32.totalorder %s236, %s237
      %p249 = scmp.eq.s32.totalorder %s26, 3
      %p250 = por %p248, %p249
      %p252 = scmp.ne.s32.totalorder %s237, %s251
      %p253 = scmp.eq.s32.totalorder %s26, 0
      %p254 = por %p252, %p253
      %s256 = sadd.s32 %s255, 1
      %p259 = scmp.eq.s32.totalorder %s20, 3
      %p260 = scmp.ne.s32.totalorder %s255, %s257
      %p261 = scmp.eq.s32.totalorder %s20, 0
      %p262 = por %p260, %p261
      %p263 = scmp.ne.s32.totalorder %s255, %s257
      %p264 = scmp.eq.s32.totalorder %s25, 3
      %p265 = por %p263, %p264
      %p266 = scmp.ne.s32.totalorder %s257, %s258
      %p267 = scmp.eq.s32.totalorder %s25, 0
      %p268 = por %p266, %p267
      %p269 = scmp.ne.s32.totalorder %s257, %s258
      %p270 = scmp.eq.s32.totalorder %s26, 3
      %p271 = por %p269, %p270
      %p273 = scmp.ne.s32.totalorder %s258, %s272
      %p274 = scmp.eq.s32.totalorder %s26, 0
      %p275 = por %p273, %p274
      %s276 = ssub.s32 %s27, %s39
      %s277 = ssub.s32 %s28, %s35
      %s278 = sor.u32 %s276, %s277
      %p279 = scmp.eq.s32.totalorder %s278, 0
      %s281 = sadd.s32 %s280, 1
      %s282 = scalar_select %p279, %s280, %s281
      %p285 = pneg %p279
      %p286 = scmp.eq.s32.totalorder %s20, 3
      %p287 = por %p285, %p286
      %p288 = scmp.ne.s32.totalorder %s280, %s283
      %p289 = scmp.eq.s32.totalorder %s20, 0
      %p290 = por %p288, %p289
      %p291 = scmp.ne.s32.totalorder %s280, %s283
      %p292 = scmp.eq.s32.totalorder %s25, 3
      %p293 = por %p291, %p292
      %p294 = scmp.ne.s32.totalorder %s283, %s284
      %p295 = scmp.eq.s32.totalorder %s25, 0
      %p296 = por %p294, %p295
      %p297 = scmp.ne.s32.totalorder %s283, %s284
      %p298 = scmp.eq.s32.totalorder %s26, 3
      %p299 = por %p297, %p298
      %p301 = scmp.ne.s32.totalorder %s284, %s300
      %p302 = scmp.eq.s32.totalorder %s26, 0
      %p303 = por %p301, %p302
      %p304 = scmp.le.s32.totalorder 1, %s20
      %p305 = scmp.lt.s32.totalorder %s20, 5
      %p306 = pnand %p304, %p305
      %p307 = pneg %p306
      // Predicated region
      $region9: #{tpu_custom_call.1} parent=5 // pred_check
        _
      $region10: #{tpu_custom_call.1} parent=5 // pred_check_branch
        %309 = sbr.rel (%p306) target = $region12
      $region11: #{tpu_custom_call.1} parent=5 // pred_region
        %s310 = ssub.s32 %s20, 1
        // Predicated region
        $region13: #{tpu_custom_call.1} parent=11 // pred_check
          %p311 = pneg %p79
        $region14: #{tpu_custom_call.1} parent=11 // pred_check_branch
          %313 = sbr.rel (%p311) target = $region16
        $region15: #{tpu_custom_call.1} parent=11 // pred_region
          _
        $region16: #{tpu_custom_call.1} parent=11 // pred_fallthru
          _
        // Predicated region
        $region17: #{tpu_custom_call.1} parent=11 // pred_check
          %p314 = pneg %p100
        $region18: #{tpu_custom_call.1} parent=11 // pred_check_branch
          %316 = sbr.rel (%p314) target = $region20
        $region19: #{tpu_custom_call.1} parent=11 // pred_region
          _
        $region20: #{tpu_custom_call.1} parent=11 // pred_fallthru
          _
        // Predicated region
        $region21: #{tpu_custom_call.1} parent=11 // pred_check
          %p317 = pneg %p121
        $region22: #{tpu_custom_call.1} parent=11 // pred_check_branch
          %319 = sbr.rel (%p317) target = $region24
        $region23: #{tpu_custom_call.1} parent=11 // pred_region
          _
        $region24: #{tpu_custom_call.1} parent=11 // pred_fallthru
          _
        // Predicated region
        $region25: #{tpu_custom_call.1} parent=11 // pred_check
          %p320 = pneg %p142
        $region26: #{tpu_custom_call.1} parent=11 // pred_check_branch
          %322 = sbr.rel (%p320) target = $region28
        $region27: #{tpu_custom_call.1} parent=11 // pred_region
          _
        $region28: #{tpu_custom_call.1} parent=11 // pred_fallthru
          _
        // Predicated region
        $region29: #{tpu_custom_call.1} parent=11 // pred_check
          %p323 = pneg %p163
        $region30: #{tpu_custom_call.1} parent=11 // pred_check_branch
          %325 = sbr.rel (%p323) target = $region32
        $region31: #{tpu_custom_call.1} parent=11 // pred_region
          _
        $region32: #{tpu_custom_call.1} parent=11 // pred_fallthru
          _
        // Predicated region
        $region33: #{tpu_custom_call.1} parent=11 // pred_check
          %p326 = pneg %p184
        $region34: #{tpu_custom_call.1} parent=11 // pred_check_branch
          %328 = sbr.rel (%p326) target = $region36
        $region35: #{tpu_custom_call.1} parent=11 // pred_region
          _
        $region36: #{tpu_custom_call.1} parent=11 // pred_fallthru
          _
        // Predicated region
        $region37: #{tpu_custom_call.1} parent=11 // pred_check
          %p329 = pneg %p205
        $region38: #{tpu_custom_call.1} parent=11 // pred_check_branch
          %331 = sbr.rel (%p329) target = $region40
        $region39: #{tpu_custom_call.1} parent=11 // pred_region
          _
        $region40: #{tpu_custom_call.1} parent=11 // pred_fallthru
          _
        // Predicated region
        $region41: #{tpu_custom_call.1} parent=11 // pred_check
          %p332 = pneg %p226
        $region42: #{tpu_custom_call.1} parent=11 // pred_check_branch
          %334 = sbr.rel (%p332) target = $region44
        $region43: #{tpu_custom_call.1} parent=11 // pred_region
          _
        $region44: #{tpu_custom_call.1} parent=11 // pred_fallthru
          _
        // Predicated region
        $region45: #{tpu_custom_call.1} parent=11 // pred_check
          %p335 = pneg %p247
        $region46: #{tpu_custom_call.1} parent=11 // pred_check_branch
          %337 = sbr.rel (%p335) target = $region48
        $region47: #{tpu_custom_call.1} parent=11 // pred_region
          _
        $region48: #{tpu_custom_call.1} parent=11 // pred_fallthru
          _
        // Predicated region
        $region49: #{tpu_custom_call.1} parent=11 // pred_check
          %p338 = pneg %p268
        $region50: #{tpu_custom_call.1} parent=11 // pred_check_branch
          %340 = sbr.rel (%p338) target = $region52
        $region51: #{tpu_custom_call.1} parent=11 // pred_region
          _
        $region52: #{tpu_custom_call.1} parent=11 // pred_fallthru
          _
      $region12: #{tpu_custom_call.1} parent=5 // pred_fallthru
        _
      %p341 = scmp.lt.s32.totalorder %s20, 4
      // Predicated region
      $region53: #{tpu_custom_call.1} parent=5 // pred_check
        %p342 = pneg %p341
      $region54: #{tpu_custom_call.1} parent=5 // pred_check_branch
        %344 = sbr.rel (%p342) target = $region56
      $region55: #{tpu_custom_call.1} parent=5 // pred_region
        // Predicated region
        $region57: #{tpu_custom_call.1} parent=55 // pred_check
          %p345 = pneg %p52
        $region58: #{tpu_custom_call.1} parent=55 // pred_check_branch
          %347 = sbr.rel (%p345) target = $region60
        $region59: #{tpu_custom_call.1} parent=55 // pred_region
          %p348 = scmp.lt.s32.totalorder %s27, 1
          %s349 = scalar_select %p348, %s27, 1
          %s350 = smul.addr %s349, 2
          %s351 = smul.addr %s350, 8
          %s352 = scalar_lea.vmem %s0, %s351
        $region60: #{tpu_custom_call.1} parent=55 // pred_fallthru
          _
      $region56: #{tpu_custom_call.1} parent=5 // pred_fallthru
        _
      %p353 = scmp.le.s32.totalorder 1, %s20
      %p354 = scmp.lt.s32.totalorder %s20, 5
      %p355 = pnand %p353, %p354
      %p356 = pneg %p355
      // Predicated region
      $region61: #{tpu_custom_call.1} parent=5 // pred_check
        _
      $region62: #{tpu_custom_call.1} parent=5 // pred_check_branch
        %358 = sbr.rel (%p355) target = $region64
      $region63: #{tpu_custom_call.1} parent=5 // pred_region
        %s359 = ssub.s32 %s20, 1
        %p360 = scmp.lt.s32.totalorder %s29, 1
        %s361 = scalar_select %p360, %s29, 1
        %s362 = smul.addr %s361, 2
        %s363 = smul.addr %s362, 8
        %s364 = scalar_lea.vmem %s0, %s363
        %p365 = pneg %p58
        %p366 = pneg %p55
        %p367 = pneg %p79
        %p368 = pneg %p76
        %p369 = pneg %p100
        %p370 = pneg %p97
        %p371 = pneg %p121
        %p372 = pneg %p118
        %p373 = pneg %p142
        %p374 = pneg %p139
        %p375 = pneg %p163
        %p376 = pneg %p160
        %p377 = pneg %p184
        %p378 = pneg %p181
        %p379 = pneg %p205
        %p380 = pneg %p202
        %p381 = pneg %p226
        %p382 = pneg %p223
        %p383 = pneg %p247
        %p384 = pneg %p244
        %p385 = pneg %p268
        %p386 = pneg %p265
        %p387 = pneg %p296
        %p388 = pneg %p293
        %s389 = sand.u32 %s283, 1
        %s390 = scalar_lea.sflag [#allocation5], %s389
        %s391 = sand.u32 %s283, 1
        %s392 = smul.addr %s391, 8
        %s393 = scalar_lea.vmem [#allocation4], %s392
        %p394 = scmp.lt.s32.totalorder %s29, 1
        %s395 = scalar_select %p394, %s29, 1
        %s396 = smul.addr %s395, 2
        %s397 = smul.addr %s396, 8
        %s398 = scalar_lea.vmem %s0, %s397
        %s399 = smul.u32 %s30, 8
        %v400 = vld [vmem:[%s1] sm:$0x1]
        %v401 = vld [vmem:[%s2] sm:$0x1]
        %p402 = scmp.eq.s32.totalorder %s30, 0
        // Predicated region
        $region65: #{tpu_custom_call.1} parent=63 // pred_check
          %p403 = pneg %p402
        $region66: #{tpu_custom_call.1} parent=63 // pred_check_branch
          %405 = sbr.rel (%p403) target = $region68
        $region67: #{tpu_custom_call.1} parent=63 // pred_region
          %v406 = vld [vmem:[%s398] sm:$0xff]
          %v407 = vld [vmem:[%s398 + $0x8] sm:$0xff]
          %vm408 = vcmask 261120
          %v409 = vsel %vm408, %v406, 0.0
          %410 = vadd.xlane.f32.xlu0 %v409
          %v411 = vpop.xlane.xlu0 %410
          %v412 = vsel %vm408, %v407, 0.0
          %413 = vadd.xlane.f32.xlu0 %v412
          %v414 = vpop.xlane.xlu0 %413
          %v415 = vrcp.pop 32.0
          %v416 = vmul.f32 %v411, %v415
          %v417 = vmul.f32 %v414, %v415
          %v418 = vsub.f32 %v406, %v416
          %v419 = vsub.f32 %v407, %v417
          %v420 = vmul.f32 %v418, %v418
          %v421 = vmul.f32 %v419, %v419
          %v422 = vsel %vm408, %v420, 0.0
          %423 = vadd.xlane.f32.xlu0 %v422
          %v424 = vpop.xlane.xlu0 %423
          %v425 = vsel %vm408, %v421, 0.0
          %426 = vadd.xlane.f32.xlu0 %v425
          %v427 = vpop.xlane.xlu0 %426
          %v428 = vrcp.pop 31.0
          %v429 = vmul.f32 %v424, %v428
          %v430 = vmul.f32 %v427, %v428
          %v431 = vadd.f32 %v429, 1e-05
          %v432 = vadd.f32 %v430, 1e-05
          %v433 = vrsqrt.pop %v431
          %v434 = vmul.f32 %v431, %v433
          %vm435 = vcmp.eq.f32.partialorder %v431, inf
          %v436 = vsel %vm435, %v431, %v434
          %vm437 = vcmp.eq.f32.partialorder %v431, 0.0
          %v438 = vand.u32 %v431, 2147483648
          %v439 = vsel %vm437, %v438, %v436
          %v440 = vrsqrt.pop %v432
          %v441 = vmul.f32 %v432, %v440
          %vm442 = vcmp.eq.f32.partialorder %v432, inf
          %v443 = vsel %vm442, %v432, %v441
          %vm444 = vcmp.eq.f32.partialorder %v432, 0.0
          %v445 = vand.u32 %v432, 2147483648
          %v446 = vsel %vm444, %v445, %v443
          %v447 = vrcp.pop %v439
          %v448 = vmul.f32 %v418, %v447
          %v449 = vrcp.pop %v446
          %v450 = vmul.f32 %v419, %v449
          %v452 = vlaneseq
          %v453 = vshrl.u32 %v452, 7
          %v454 = vsub.s32 0, %v453
          %v455 = vrot.slane %v400, %v454
          %v457 = vmul.f32 %v455, %v448
          %v458 = vmul.f32 %v455, %v450
          %v460 = vlaneseq
          %v461 = vshrl.u32 %v460, 7
          %v462 = vsub.s32 0, %v461
          %v463 = vrot.slane %v401, %v462
          %v465 = vadd.f32 %v457, %v463
          %v466 = vadd.f32 %v458, %v463
          %v467 = vld [vmem:[%s4] sm:$0xff]
          %v468 = vld [vmem:[%s4 + $0x8] sm:$0xff]
          %v469 = vld [vmem:[%s4 + $0x10] sm:$0xff]
          %v470 = vld [vmem:[%s4 + $0x18] sm:$0xff]
          %v472 = vsel %vm408, %v465, 0
          %v475 = vsel %vm408, %v466, 0
          %477 = vmatprep.subr.mxu0 0.0
          %478 = vmatpush1.msra.mxu0 %v467
          %479 = vmatprep.subr.mxu0 0.0
          %480 = vmatpush1.msra.mxu0 %v468
          %481 = vmatprep.subr.mxu0 0.0
          %482 = vmatpush1.msra.mxu0 %v469
          %483 = vmatprep.subr.mxu0 0.0
          %484 = vmatpush1.msra.mxu0 %v470
          %485 = vmatprep.subr.mxu0 0.0
          %486 = vmatpush1.msra.mxu0 0.0
          %487 = vmatprep.subr.mxu0 0.0
          %488 = vmatpush1.msra.mxu0 0.0
          %489 = vmatprep.subr.mxu0 0.0
          %490 = vmatpush1.msra.mxu0 0.0
          %491 = vmatprep.subr.mxu0 0.0
          %492 = vmatpush1.msra.mxu0 0.0
          %493 = vmatprep.subr.mxu0 0.0
          %494 = vmatpush1.msra.mxu0 0.0
          %495 = vmatprep.subr.mxu0 0.0
          %496 = vmatpush1.msra.mxu0 0.0
          %497 = vmatprep.subr.mxu0 0.0
          %498 = vmatpush1.msra.mxu0 0.0
          %499 = vmatprep.subr.mxu0 0.0
          %500 = vmatpush1.msra.mxu0 0.0
          %501 = vmatprep.subr.mxu0 0.0
          %502 = vmatpush1.msra.mxu0 0.0
          %503 = vmatprep.subr.mxu0 0.0
          %504 = vmatpush1.msra.mxu0 0.0
          %505 = vmatprep.subr.mxu0 0.0
          %506 = vmatpush1.msra.mxu0 0.0
          %507 = vmatprep.subr.mxu0 0.0
          %508 = vmatpush1.msra.mxu0 0.0
          %509 = vmatprep.subr.mxu0 0.0
          %510 = vmatpush1.msra.mxu0 0.0
          %511 = vmatprep.subr.mxu0 0.0
          %512 = vmatpush1.msra.mxu0 0.0
          %513 = vmatprep.subr.mxu0 0.0
          %514 = vmatpush1.msra.mxu0 0.0
          %515 = vmatprep.subr.mxu0 0.0
          %516 = vmatpush1.msra.mxu0 0.0
          %517 = vmatprep.subr.mxu0 0.0
          %518 = vmatpush1.msra.mxu0 0.0
          %519 = vmatprep.subr.mxu0 0.0
          %520 = vmatpush1.msra.mxu0 0.0
          %521 = vmatprep.subr.mxu0 0.0
          %522 = vmatpush1.msra.mxu0 0.0
          %523 = vmatprep.subr.mxu0 0.0
          %524 = vmatpush1.msra.mxu0 0.0
          %525 = vmatprep.subr.mxu0 0.0
          %526 = vmatpush1.msra.mxu0 0.0
          %527 = vmatprep.subr.mxu0 0.0
          %528 = vmatpush1.msra.mxu0 0.0
          %529 = vmatprep.subr.mxu0 0.0
          %530 = vmatpush1.msra.mxu0 0.0
          %531 = vmatprep.subr.mxu0 0.0
          %532 = vmatpush1.msra.mxu0 0.0
          %533 = vmatprep.subr.mxu0 0.0
          %534 = vmatpush1.msra.mxu0 0.0
          %535 = vmatprep.subr.mxu0 0.0
          %536 = vmatpush1.msra.mxu0 0.0
          %537 = vmatprep.subr.mxu0 0.0
          %538 = vmatpush1.msra.mxu0 0.0
          %539 = vmatprep.subr.mxu0 0.0
          %540 = vmatpush1.msra.mxu0 0.0
          %541 = vmatprep.mubr.f32.mxu0 0.0
          %542 = vmatmul.mubr.f32.gmra.mrb[0].mxu0 %v472
          %v543 = vpop.f32.mrb[0].mxu0
          %v544 = vadd.f32 0.0, %v543
          %v545 = vpop.f32.mrb[0].mxu0
          %546 = vmatprep.mubr.f32.mxu0 0.0
          %547 = vmatmul.mubr.f32.gmra.mrb[0].mxu0 %v475
          %v548 = vpop.f32.mrb[0].mxu0
          %v549 = vadd.f32 0.0, %v548
          %v550 = vpop.f32.mrb[0].mxu0
          %551 = vdwg.mxu0
          %552 = vxpose.xlu0.b32.start [1/16] %v544, 128
          %553 = vxpose.xlu0.b32.cont [2/16] %v549, 128
          %554 = vxpose.xlu0.b32.cont [3/16] 0.0, 128
          %555 = vxpose.xlu0.b32.cont [4/16] 0.0, 128
          %556 = vxpose.xlu0.b32.cont [5/16] 0.0, 128
          %557 = vxpose.xlu0.b32.cont [6/16] 0.0, 128
          %558 = vxpose.xlu0.b32.cont [7/16] 0.0, 128
          %559 = vxpose.xlu0.b32.cont [8/16] 0.0, 128
          %560 = vxpose.xlu0.b32.cont [9/16] 0.0, 128
          %561 = vxpose.xlu0.b32.cont [10/16] 0.0, 128
          %562 = vxpose.xlu0.b32.cont [11/16] 0.0, 128
          %563 = vxpose.xlu0.b32.cont [12/16] 0.0, 128
          %564 = vxpose.xlu0.b32.cont [13/16] 0.0, 128
          %565 = vxpose.xlu0.b32.cont [14/16] 0.0, 128
          %566 = vxpose.xlu0.b32.cont [15/16] 0.0, 128
          %567 = vxpose.xlu0.b32.end [16/16] 0.0, 128
          %v568 = vpop.trf.xlu0
          %v569 = vpop.trf.xlu0
          %v570 = vpop.trf.xlu0
          %v571 = vpop.trf.xlu0
          %v572 = vpop.trf.xlu0
          %v573 = vpop.trf.xlu0
          %v574 = vpop.trf.xlu0
          %v575 = vpop.trf.xlu0
          %v576 = vpop.trf.xlu0
          %v577 = vpop.trf.xlu0
          %v578 = vpop.trf.xlu0
          %v579 = vpop.trf.xlu0
          %v580 = vpop.trf.xlu0
          %v581 = vpop.trf.xlu0
          %v582 = vpop.trf.xlu0
          %v583 = vpop.trf.xlu0
          %vm584 = vcmask 130048
          %585 = vst.msk [vmem:[#allocation2] sm:$0xff] %vm584, %v568
          %588 = vrot.lane.b32.xlu0 %v544, 96
          %v589 = vpop.permute.xlu0 %588
          %590 = vrot.lane.b32.xlu0 %v549, 96
          %v591 = vpop.permute.xlu0 %590
          %vm594 = vcmask 64512
          %595 = vst.msk [vmem:[#allocation3] sm:$0xff] %vm594, %v589
          %596 = vst.msk [vmem:[#allocation3 + $0x8] sm:$0xff] %vm594, %v591
          %597 = vrot.lane.b32.xlu0 %v544, 120
          %v598 = vpop.permute.xlu0 %597
          %599 = vrot.lane.b32.xlu0 %v549, 120
          %v600 = vpop.permute.xlu0 %599
          %603 = vxpose.xlu0.b32.start [1/16] %v598, 128
          %604 = vxpose.xlu0.b32.cont [2/16] %v600, 128
          %605 = vxpose.xlu0.b32.cont [3/16] 0.0, 128
          %606 = vxpose.xlu0.b32.cont [4/16] 0.0, 128
          %607 = vxpose.xlu0.b32.cont [5/16] 0.0, 128
          %608 = vxpose.xlu0.b32.cont [6/16] 0.0, 128
          %609 = vxpose.xlu0.b32.cont [7/16] 0.0, 128
          %610 = vxpose.xlu0.b32.cont [8/16] 0.0, 128
          %611 = vxpose.xlu0.b32.cont [9/16] 0.0, 128
          %612 = vxpose.xlu0.b32.cont [10/16] 0.0, 128
          %613 = vxpose.xlu0.b32.cont [11/16] 0.0, 128
          %614 = vxpose.xlu0.b32.cont [12/16] 0.0, 128
          %615 = vxpose.xlu0.b32.cont [13/16] 0.0, 128
          %616 = vxpose.xlu0.b32.cont [14/16] 0.0, 128
          %617 = vxpose.xlu0.b32.cont [15/16] 0.0, 128
          %618 = vxpose.xlu0.b32.end [16/16] 0.0, 128
          %v619 = vpop.trf.xlu0
          %v620 = vpop.trf.xlu0
          %v621 = vpop.trf.xlu0
          %v622 = vpop.trf.xlu0
          %v623 = vpop.trf.xlu0
          %v624 = vpop.trf.xlu0
          %v625 = vpop.trf.xlu0
          %v626 = vpop.trf.xlu0
          %v627 = vpop.trf.xlu0
          %v628 = vpop.trf.xlu0
          %v629 = vpop.trf.xlu0
          %v630 = vpop.trf.xlu0
          %v631 = vpop.trf.xlu0
          %v632 = vpop.trf.xlu0
          %v633 = vpop.trf.xlu0
          %v634 = vpop.trf.xlu0
          %s635 = scalar_lea.vmem [#allocation2], 8
          %636 = vst.msk [vmem:[%s635] sm:$0xff] %vm584, %v619
          %637 = vrot.lane.b32.xlu0 %v544, 88
          %v638 = vpop.permute.xlu0 %637
          %639 = vrot.lane.b32.xlu0 %v549, 88
          %v640 = vpop.permute.xlu0 %639
          %s643 = scalar_lea.vmem [#allocation3], 16
          %644 = vst.msk [vmem:[%s643] sm:$0xff] %vm594, %v638
          %645 = vst.msk [vmem:[%s643 + $0x8] sm:$0xff] %vm594, %v640
          %646 = vrot.lane.b32.xlu0 %v544, 112
          %v647 = vpop.permute.xlu0 %646
          %648 = vrot.lane.b32.xlu0 %v549, 112
          %v649 = vpop.permute.xlu0 %648
          %652 = vxpose.xlu0.b32.start [1/16] %v647, 128
          %653 = vxpose.xlu0.b32.cont [2/16] %v649, 128
          %654 = vxpose.xlu0.b32.cont [3/16] 0.0, 128
          %655 = vxpose.xlu0.b32.cont [4/16] 0.0, 128
          %656 = vxpose.xlu0.b32.cont [5/16] 0.0, 128
          %657 = vxpose.xlu0.b32.cont [6/16] 0.0, 128
          %658 = vxpose.xlu0.b32.cont [7/16] 0.0, 128
          %659 = vxpose.xlu0.b32.cont [8/16] 0.0, 128
          %660 = vxpose.xlu0.b32.cont [9/16] 0.0, 128
          %661 = vxpose.xlu0.b32.cont [10/16] 0.0, 128
          %662 = vxpose.xlu0.b32.cont [11/16] 0.0, 128
          %663 = vxpose.xlu0.b32.cont [12/16] 0.0, 128
          %664 = vxpose.xlu0.b32.cont [13/16] 0.0, 128
          %665 = vxpose.xlu0.b32.cont [14/16] 0.0, 128
          %666 = vxpose.xlu0.b32.cont [15/16] 0.0, 128
          %667 = vxpose.xlu0.b32.end [16/16] 0.0, 128
          %v668 = vpop.trf.xlu0
          %v669 = vpop.trf.xlu0
          %v670 = vpop.trf.xlu0
          %v671 = vpop.trf.xlu0
          %v672 = vpop.trf.xlu0
          %v673 = vpop.trf.xlu0
          %v674 = vpop.trf.xlu0
          %v675 = vpop.trf.xlu0
          %v676 = vpop.trf.xlu0
          %v677 = vpop.trf.xlu0
          %v678 = vpop.trf.xlu0
          %v679 = vpop.trf.xlu0
          %v680 = vpop.trf.xlu0
          %v681 = vpop.trf.xlu0
          %v682 = vpop.trf.xlu0
          %v683 = vpop.trf.xlu0
          %s684 = scalar_lea.vmem [#allocation2], 16
          %685 = vst.msk [vmem:[%s684] sm:$0xff] %vm584, %v668
          %686 = vrot.lane.b32.xlu0 %v544, 80
          %v687 = vpop.permute.xlu0 %686
          %688 = vrot.lane.b32.xlu0 %v549, 80
          %v689 = vpop.permute.xlu0 %688
          %s692 = scalar_lea.vmem [#allocation3], 32
          %693 = vst.msk [vmem:[%s692] sm:$0xff] %vm594, %v687
          %694 = vst.msk [vmem:[%s692 + $0x8] sm:$0xff] %vm594, %v689
          %695 = vrot.lane.b32.xlu0 %v544, 104
          %v696 = vpop.permute.xlu0 %695
          %697 = vrot.lane.b32.xlu0 %v549, 104
          %v698 = vpop.permute.xlu0 %697
          %701 = vxpose.xlu0.b32.start [1/16] %v696, 128
          %702 = vxpose.xlu0.b32.cont [2/16] %v698, 128
          %703 = vxpose.xlu0.b32.cont [3/16] 0.0, 128
          %704 = vxpose.xlu0.b32.cont [4/16] 0.0, 128
          %705 = vxpose.xlu0.b32.cont [5/16] 0.0, 128
          %706 = vxpose.xlu0.b32.cont [6/16] 0.0, 128
          %707 = vxpose.xlu0.b32.cont [7/16] 0.0, 128
          %708 = vxpose.xlu0.b32.cont [8/16] 0.0, 128
          %709 = vxpose.xlu0.b32.cont [9/16] 0.0, 128
          %710 = vxpose.xlu0.b32.cont [10/16] 0.0, 128
          %711 = vxpose.xlu0.b32.cont [11/16] 0.0, 128
          %712 = vxpose.xlu0.b32.cont [12/16] 0.0, 128
          %713 = vxpose.xlu0.b32.cont [13/16] 0.0, 128
          %714 = vxpose.xlu0.b32.cont [14/16] 0.0, 128
          %715 = vxpose.xlu0.b32.cont [15/16] 0.0, 128
          %716 = vxpose.xlu0.b32.end [16/16] 0.0, 128
          %v717 = vpop.trf.xlu0
          %v718 = vpop.trf.xlu0
          %v719 = vpop.trf.xlu0
          %v720 = vpop.trf.xlu0
          %v721 = vpop.trf.xlu0
          %v722 = vpop.trf.xlu0
          %v723 = vpop.trf.xlu0
          %v724 = vpop.trf.xlu0
          %v725 = vpop.trf.xlu0
          %v726 = vpop.trf.xlu0
          %v727 = vpop.trf.xlu0
          %v728 = vpop.trf.xlu0
          %v729 = vpop.trf.xlu0
          %v730 = vpop.trf.xlu0
          %v731 = vpop.trf.xlu0
          %v732 = vpop.trf.xlu0
          %s733 = scalar_lea.vmem [#allocation2], 24
          %734 = vst.msk [vmem:[%s733] sm:$0xff] %vm584, %v717
          %735 = vrot.lane.b32.xlu0 %v544, 72
          %v736 = vpop.permute.xlu0 %735
          %737 = vrot.lane.b32.xlu0 %v549, 72
          %v738 = vpop.permute.xlu0 %737
          %s741 = scalar_lea.vmem [#allocation3], 48
          %742 = vst.msk [vmem:[%s741] sm:$0xff] %vm594, %v736
          %743 = vst.msk [vmem:[%s741 + $0x8] sm:$0xff] %vm594, %v738
        $region68: #{tpu_custom_call.1} parent=63 // pred_fallthru
          _
        %s744 = scalar_lea.vmem %s398, %s399
        %v745 = vld [vmem:[%s744] sm:$0xff]
        %vm746 = vcmask 261120
        %v747 = vsel %vm746, %v745, 0.0
        %748 = vadd.xlane.f32.xlu0 %v747
        %v749 = vpop.xlane.xlu0 %748
        %v750 = vrcp.pop 32.0
        %v751 = vmul.f32 %v749, %v750
        %v752 = vsub.f32 %v745, %v751
        %v753 = vmul.f32 %v752, %v752
        %v754 = vsel %vm746, %v753, 0.0
        %755 = vadd.xlane.f32.xlu0 %v754
        %v756 = vpop.xlane.xlu0 %755
        %v757 = vrcp.pop 31.0
        %v758 = vmul.f32 %v756, %v757
        %v759 = vadd.f32 %v758, 1e-05
        %v760 = vrsqrt.pop %v759
        %v761 = vmul.f32 %v759, %v760
        %vm762 = vcmp.eq.f32.partialorder %v759, inf
        %v763 = vsel %vm762, %v759, %v761
        %vm764 = vcmp.eq.f32.partialorder %v759, 0.0
        %v765 = vand.u32 %v759, 2147483648
        %v766 = vsel %vm764, %v765, %v763
        %v767 = vrcp.pop %v766
        %v768 = vmul.f32 %v752, %v767
        %v770 = vlaneseq
        %v771 = vshrl.u32 %v770, 7
        %v772 = vsub.s32 0, %v771
        %v773 = vrot.slane %v400, %v772
        %v775 = vmul.f32 %v773, %v768
        %v777 = vlaneseq
        %v778 = vshrl.u32 %v777, 7
        %v779 = vsub.s32 0, %v778
        %v780 = vrot.slane %v401, %v779
        %v782 = vadd.f32 %v775, %v780
        %v783 = vmul.f32 %v782, 0.35355338
        %v784 = vld [vmem:[%s3] sm:$0xff]
        %v785 = vld [vmem:[%s3 + $0x8] sm:$0xff]
        %v786 = vld [vmem:[%s3 + $0x10] sm:$0xff]
        %v787 = vld [vmem:[%s3 + $0x18] sm:$0xff]
        %v789 = vsel %vm746, %v783, 0
        %791 = vmatprep.subr.mxu0 0.0
        %792 = vmatpush1.msra.mxu0 %v784
        %793 = vmatprep.subr.mxu0 0.0
        %794 = vmatpush1.msra.mxu0 %v785
        %795 = vmatprep.subr.mxu0 0.0
        %796 = vmatpush1.msra.mxu0 %v786
        %797 = vmatprep.subr.mxu0 0.0
        %798 = vmatpush1.msra.mxu0 %v787
        %799 = vmatprep.subr.mxu0 0.0
        %800 = vmatpush1.msra.mxu0 0.0
        %801 = vmatprep.subr.mxu0 0.0
        %802 = vmatpush1.msra.mxu0 0.0
        %803 = vmatprep.subr.mxu0 0.0
        %804 = vmatpush1.msra.mxu0 0.0
        %805 = vmatprep.subr.mxu0 0.0
        %806 = vmatpush1.msra.mxu0 0.0
        %807 = vmatprep.subr.mxu0 0.0
        %808 = vmatpush1.msra.mxu0 0.0
        %809 = vmatprep.subr.mxu0 0.0
        %810 = vmatpush1.msra.mxu0 0.0
        %811 = vmatprep.subr.mxu0 0.0
        %812 = vmatpush1.msra.mxu0 0.0
        %813 = vmatprep.subr.mxu0 0.0
        %814 = vmatpush1.msra.mxu0 0.0
        %815 = vmatprep.subr.mxu0 0.0
        %816 = vmatpush1.msra.mxu0 0.0
        %817 = vmatprep.subr.mxu0 0.0
        %818 = vmatpush1.msra.mxu0 0.0
        %819 = vmatprep.subr.mxu0 0.0
        %820 = vmatpush1.msra.mxu0 0.0
        %821 = vmatprep.subr.mxu0 0.0
        %822 = vmatpush1.msra.mxu0 0.0
        %823 = vmatprep.subr.mxu0 0.0
        %824 = vmatpush1.msra.mxu0 0.0
        %825 = vmatprep.subr.mxu0 0.0
        %826 = vmatpush1.msra.mxu0 0.0
        %827 = vmatprep.subr.mxu0 0.0
        %828 = vmatpush1.msra.mxu0 0.0
        %829 = vmatprep.subr.mxu0 0.0
        %830 = vmatpush1.msra.mxu0 0.0
        %831 = vmatprep.subr.mxu0 0.0
        %832 = vmatpush1.msra.mxu0 0.0
        %833 = vmatprep.subr.mxu0 0.0
        %834 = vmatpush1.msra.mxu0 0.0
        %835 = vmatprep.subr.mxu0 0.0
        %836 = vmatpush1.msra.mxu0 0.0
        %837 = vmatprep.subr.mxu0 0.0
        %838 = vmatpush1.msra.mxu0 0.0
        %839 = vmatprep.subr.mxu0 0.0
        %840 = vmatpush1.msra.mxu0 0.0
        %841 = vmatprep.subr.mxu0 0.0
        %842 = vmatpush1.msra.mxu0 0.0
        %843 = vmatprep.subr.mxu0 0.0
        %844 = vmatpush1.msra.mxu0 0.0
        %845 = vmatprep.subr.mxu0 0.0
        %846 = vmatpush1.msra.mxu0 0.0
        %847 = vmatprep.subr.mxu0 0.0
        %848 = vmatpush1.msra.mxu0 0.0
        %849 = vmatprep.subr.mxu0 0.0
        %850 = vmatpush1.msra.mxu0 0.0
        %851 = vmatprep.subr.mxu0 0.0
        %852 = vmatpush1.msra.mxu0 0.0
        %853 = vmatprep.subr.mxu0 0.0
        %854 = vmatpush1.msra.mxu0 0.0
        %855 = vmatprep.mubr.f32.mxu0 0.0
        %856 = vmatmul.mubr.f32.gmra.mrb[0].mxu0 %v789
        %v857 = vpop.f32.mrb[0].mxu0
        %v858 = vadd.f32 0.0, %v857
        %v859 = vpop.f32.mrb[0].mxu0
        %860 = vdwg.mxu0
        %v861 = vlaneseq
        %v862 = vshrl.u32 %v861, 7
        %v863 = vstv %s399
        %v864 = vadd.s32 %v863, %v862
        %v865 = vlaneseq
        %v866 = vand.u32 %v865, 127
        %vm867 = vcmp.gt.s32.totalorder %v866, %v864
        %v868 = vld [vmem:[#allocation2] sm:$0xff]
        %vm869 = vcmask 64512
        %v871 = vsel %vm869, %v858, 0
        %873 = vmatprep.subr.mxu0 0.0
        %874 = vmatpush1.msra.mxu0 %v868
        %875 = vmatprep.subr.mxu0 0.0
        %876 = vmatpush1.msra.mxu0 0.0
        %877 = vmatprep.subr.mxu0 0.0
        %878 = vmatpush1.msra.mxu0 0.0
        %879 = vmatprep.subr.mxu0 0.0
        %880 = vmatpush1.msra.mxu0 0.0
        %881 = vmatprep.subr.mxu0 0.0
        %882 = vmatpush1.msra.mxu0 0.0
        %883 = vmatprep.subr.mxu0 0.0
        %884 = vmatpush1.msra.mxu0 0.0
        %885 = vmatprep.subr.mxu0 0.0
        %886 = vmatpush1.msra.mxu0 0.0
        %887 = vmatprep.subr.mxu0 0.0
        %888 = vmatpush1.msra.mxu0 0.0
        %889 = vmatprep.subr.mxu0 0.0
        %890 = vmatpush1.msra.mxu0 0.0
        %891 = vmatprep.subr.mxu0 0.0
        %892 = vmatpush1.msra.mxu0 0.0
        %893 = vmatprep.subr.mxu0 0.0
        %894 = vmatpush1.msra.mxu0 0.0
        %895 = vmatprep.subr.mxu0 0.0
        %896 = vmatpush1.msra.mxu0 0.0
        %897 = vmatprep.subr.mxu0 0.0
        %898 = vmatpush1.msra.mxu0 0.0
        %899 = vmatprep.subr.mxu0 0.0
        %900 = vmatpush1.msra.mxu0 0.0
        %901 = vmatprep.subr.mxu0 0.0
        %902 = vmatpush1.msra.mxu0 0.0
        %903 = vmatprep.subr.mxu0 0.0
        %904 = vmatpush1.msra.mxu0 0.0
        %905 = vmatprep.subr.mxu0 0.0
        %906 = vmatpush1.msra.mxu0 0.0
        %907 = vmatprep.subr.mxu0 0.0
        %908 = vmatpush1.msra.mxu0 0.0
        %909 = vmatprep.subr.mxu0 0.0
        %910 = vmatpush1.msra.mxu0 0.0
        %911 = vmatprep.subr.mxu0 0.0
        %912 = vmatpush1.msra.mxu0 0.0
        %913 = vmatprep.subr.mxu0 0.0
        %914 = vmatpush1.msra.mxu0 0.0
        %915 = vmatprep.subr.mxu0 0.0
        %916 = vmatpush1.msra.mxu0 0.0
        %917 = vmatprep.subr.mxu0 0.0
        %918 = vmatpush1.msra.mxu0 0.0
        %919 = vmatprep.subr.mxu0 0.0
        %920 = vmatpush1.msra.mxu0 0.0
        %921 = vmatprep.subr.mxu0 0.0
        %922 = vmatpush1.msra.mxu0 0.0
        %923 = vmatprep.subr.mxu0 0.0
        %924 = vmatpush1.msra.mxu0 0.0
        %925 = vmatprep.subr.mxu0 0.0
        %926 = vmatpush1.msra.mxu0 0.0
        %927 = vmatprep.subr.mxu0 0.0
        %928 = vmatpush1.msra.mxu0 0.0
        %929 = vmatprep.subr.mxu0 0.0
        %930 = vmatpush1.msra.mxu0 0.0
        %931 = vmatprep.subr.mxu0 0.0
        %932 = vmatpush1.msra.mxu0 0.0
        %933 = vmatprep.subr.mxu0 0.0
        %934 = vmatpush1.msra.mxu0 0.0
        %935 = vmatprep.subr.mxu0 0.0
        %936 = vmatpush1.msra.mxu0 0.0
        %937 = vmatprep.mubr.f32.mxu0 0.0
        %938 = vmatmul.mubr.f32.gmra.mrb[0].mxu0 %v871
        %v939 = vpop.f32.mrb[0].mxu0
        %v940 = vadd.f32 0.0, %v939
        %v941 = vpop.f32.mrb[0].mxu0
        %942 = vdwg.mxu0
        %v943 = vsel %vm867, -1.7014117e+38, %v940
        %vm944 = vcmask 130048
        %v945 = vsel %vm944, %v943, -inf
        %946 = vmax.xlane.f32.xlu0 %v945
        %v947 = vpop.xlane.xlu0 %946
        %v948 = vsub.f32 %v943, %v947
        %v949 = vmul.f32 %v948, 1.442695
        %v950 = vpow.pop %v949
        %v951 = vsel %vm944, %v950, 0.0
        %952 = vadd.xlane.f32.xlu0 %v951
        %v953 = vpop.xlane.xlu0 %952
        %v954 = vrcp.pop %v953
        %v955 = vmul.f32 %v950, %v954
        %v956 = vld [vmem:[#allocation3] sm:$0xff]
        %v957 = vld [vmem:[#allocation3 + $0x8] sm:$0xff]
        %v959 = vsel %vm944, %v955, 0
        %961 = vmatprep.subr.mxu0 0.0
        %962 = vmatpush1.msra.mxu0 %v956
        %963 = vmatprep.subr.mxu0 0.0
        %964 = vmatpush1.msra.mxu0 %v957
        %965 = vmatprep.subr.mxu0 0.0
        %966 = vmatpush1.msra.mxu0 0.0
        %967 = vmatprep.subr.mxu0 0.0
        %968 = vmatpush1.msra.mxu0 0.0
        %969 = vmatprep.subr.mxu0 0.0
        %970 = vmatpush1.msra.mxu0 0.0
        %971 = vmatprep.subr.mxu0 0.0
        %972 = vmatpush1.msra.mxu0 0.0
        %973 = vmatprep.subr.mxu0 0.0
        %974 = vmatpush1.msra.mxu0 0.0
        %975 = vmatprep.subr.mxu0 0.0
        %976 = vmatpush1.msra.mxu0 0.0
        %977 = vmatprep.subr.mxu0 0.0
        %978 = vmatpush1.msra.mxu0 0.0
        %979 = vmatprep.subr.mxu0 0.0
        %980 = vmatpush1.msra.mxu0 0.0
        %981 = vmatprep.subr.mxu0 0.0
        %982 = vmatpush1.msra.mxu0 0.0
        %983 = vmatprep.subr.mxu0 0.0
        %984 = vmatpush1.msra.mxu0 0.0
        %985 = vmatprep.subr.mxu0 0.0
        %986 = vmatpush1.msra.mxu0 0.0
        %987 = vmatprep.subr.mxu0 0.0
        %988 = vmatpush1.msra.mxu0 0.0
        %989 = vmatprep.subr.mxu0 0.0
        %990 = vmatpush1.msra.mxu0 0.0
        %991 = vmatprep.subr.mxu0 0.0
        %992 = vmatpush1.msra.mxu0 0.0
        %993 = vmatprep.subr.mxu0 0.0
        %994 = vmatpush1.msra.mxu0 0.0
        %995 = vmatprep.subr.mxu0 0.0
        %996 = vmatpush1.msra.mxu0 0.0
        %997 = vmatprep.subr.mxu0 0.0
        %998 = vmatpush1.msra.mxu0 0.0
        %999 = vmatprep.subr.mxu0 0.0
        %1000 = vmatpush1.msra.mxu0 0.0
        %1001 = vmatprep.subr.mxu0 0.0
        %1002 = vmatpush1.msra.mxu0 0.0
        %1003 = vmatprep.subr.mxu0 0.0
        %1004 = vmatpush1.msra.mxu0 0.0
        %1005 = vmatprep.subr.mxu0 0.0
        %1006 = vmatpush1.msra.mxu0 0.0
        %1007 = vmatprep.subr.mxu0 0.0
        %1008 = vmatpush1.msra.mxu0 0.0
        %1009 = vmatprep.subr.mxu0 0.0
        %1010 = vmatpush1.msra.mxu0 0.0
        %1011 = vmatprep.subr.mxu0 0.0
        %1012 = vmatpush1.msra.mxu0 0.0
        %1013 = vmatprep.subr.mxu0 0.0
        %1014 = vmatpush1.msra.mxu0 0.0
        %1015 = vmatprep.subr.mxu0 0.0
        %1016 = vmatpush1.msra.mxu0 0.0
        %1017 = vmatprep.subr.mxu0 0.0
        %1018 = vmatpush1.msra.mxu0 0.0
        %1019 = vmatprep.subr.mxu0 0.0
        %1020 = vmatpush1.msra.mxu0 0.0
        %1021 = vmatprep.subr.mxu0 0.0
        %1022 = vmatpush1.msra.mxu0 0.0
        %1023 = vmatprep.subr.mxu0 0.0
        %1024 = vmatpush1.msra.mxu0 0.0
        %1025 = vmatprep.mubr.f32.mxu0 0.0
        %1026 = vmatmul.mubr.f32.gmra.mrb[0].mxu0 %v959
        %v1027 = vpop.f32.mrb[0].mxu0
        %v1028 = vadd.f32 0.0, %v1027
        %v1029 = vpop.f32.mrb[0].mxu0
        %1030 = vdwg.mxu0
        %s1031 = scalar_lea.vmem [#allocation2], 8
        %v1032 = vld [vmem:[%s1031] sm:$0xff]
        %1033 = vrot.lane.b32.xlu0 %v858, 120
        %v1034 = vpop.permute.xlu0 %1033
        %v1035 = vsel %vm869, %v1034, 0
        %1037 = vmatprep.subr.mxu0 0.0
        %1038 = vmatpush1.msra.mxu0 %v1032
        %1039 = vmatprep.subr.mxu0 0.0
        %1040 = vmatpush1.msra.mxu0 0.0
        %1041 = vmatprep.subr.mxu0 0.0
        %1042 = vmatpush1.msra.mxu0 0.0
        %1043 = vmatprep.subr.mxu0 0.0
        %1044 = vmatpush1.msra.mxu0 0.0
        %1045 = vmatprep.subr.mxu0 0.0
        %1046 = vmatpush1.msra.mxu0 0.0
        %1047 = vmatprep.subr.mxu0 0.0
        %1048 = vmatpush1.msra.mxu0 0.0
        %1049 = vmatprep.subr.mxu0 0.0
        %1050 = vmatpush1.msra.mxu0 0.0
        %1051 = vmatprep.subr.mxu0 0.0
        %1052 = vmatpush1.msra.mxu0 0.0
        %1053 = vmatprep.subr.mxu0 0.0
        %1054 = vmatpush1.msra.mxu0 0.0
        %1055 = vmatprep.subr.mxu0 0.0
        %1056 = vmatpush1.msra.mxu0 0.0
        %1057 = vmatprep.subr.mxu0 0.0
        %1058 = vmatpush1.msra.mxu0 0.0
        %1059 = vmatprep.subr.mxu0 0.0
        %1060 = vmatpush1.msra.mxu0 0.0
        %1061 = vmatprep.subr.mxu0 0.0
        %1062 = vmatpush1.msra.mxu0 0.0
        %1063 = vmatprep.subr.mxu0 0.0
        %1064 = vmatpush1.msra.mxu0 0.0
        %1065 = vmatprep.subr.mxu0 0.0
        %1066 = vmatpush1.msra.mxu0 0.0
        %1067 = vmatprep.subr.mxu0 0.0
        %1068 = vmatpush1.msra.mxu0 0.0
        %1069 = vmatprep.subr.mxu0 0.0
        %1070 = vmatpush1.msra.mxu0 0.0
        %1071 = vmatprep.subr.mxu0 0.0
        %1072 = vmatpush1.msra.mxu0 0.0
        %1073 = vmatprep.subr.mxu0 0.0
        %1074 = vmatpush1.msra.mxu0 0.0
        %1075 = vmatprep.subr.mxu0 0.0
        %1076 = vmatpush1.msra.mxu0 0.0
        %1077 = vmatprep.subr.mxu0 0.0
        %1078 = vmatpush1.msra.mxu0 0.0
        %1079 = vmatprep.subr.mxu0 0.0
        %1080 = vmatpush1.msra.mxu0 0.0
        %1081 = vmatprep.subr.mxu0 0.0
        %1082 = vmatpush1.msra.mxu0 0.0
        %1083 = vmatprep.subr.mxu0 0.0
        %1084 = vmatpush1.msra.mxu0 0.0
        %1085 = vmatprep.subr.mxu0 0.0
        %1086 = vmatpush1.msra.mxu0 0.0
        %1087 = vmatprep.subr.mxu0 0.0
        %1088 = vmatpush1.msra.mxu0 0.0
        %1089 = vmatprep.subr.mxu0 0.0
        %1090 = vmatpush1.msra.mxu0 0.0
        %1091 = vmatprep.subr.mxu0 0.0
        %1092 = vmatpush1.msra.mxu0 0.0
        %1093 = vmatprep.subr.mxu0 0.0
        %1094 = vmatpush1.msra.mxu0 0.0
        %1095 = vmatprep.subr.mxu0 0.0
        %1096 = vmatpush1.msra.mxu0 0.0
        %1097 = vmatprep.subr.mxu0 0.0
        %1098 = vmatpush1.msra.mxu0 0.0
        %1099 = vmatprep.subr.mxu0 0.0
        %1100 = vmatpush1.msra.mxu0 0.0
        %1101 = vmatprep.mubr.f32.mxu0 0.0
        %1102 = vmatmul.mubr.f32.gmra.mrb[0].mxu0 %v1035
        %v1103 = vpop.f32.mrb[0].mxu0
        %v1104 = vadd.f32 0.0, %v1103
        %v1105 = vpop.f32.mrb[0].mxu0
        %1106 = vdwg.mxu0
        %v1107 = vsel %vm867, -1.7014117e+38, %v1104
        %v1108 = vsel %vm944, %v1107, -inf
        %1109 = vmax.xlane.f32.xlu0 %v1108
        %v1110 = vpop.xlane.xlu0 %1109
        %v1111 = vsub.f32 %v1107, %v1110
        %v1112 = vmul.f32 %v1111, 1.442695
        %v1113 = vpow.pop %v1112
        %v1114 = vsel %vm944, %v1113, 0.0
        %1115 = vadd.xlane.f32.xlu0 %v1114
        %v1116 = vpop.xlane.xlu0 %1115
        %v1117 = vrcp.pop %v1116
        %v1118 = vmul.f32 %v1113, %v1117
        %s1119 = scalar_lea.vmem [#allocation3], 16
        %v1120 = vld [vmem:[%s1119] sm:$0xff]
        %v1121 = vld [vmem:[%s1119 + $0x8] sm:$0xff]
        %v1123 = vsel %vm944, %v1118, 0
        %1125 = vmatprep.subr.mxu0 0.0
        %1126 = vmatpush1.msra.mxu0 %v1120
        %1127 = vmatprep.subr.mxu0 0.0
        %1128 = vmatpush1.msra.mxu0 %v1121
        %1129 = vmatprep.subr.mxu0 0.0
        %1130 = vmatpush1.msra.mxu0 0.0
        %1131 = vmatprep.subr.mxu0 0.0
        %1132 = vmatpush1.msra.mxu0 0.0
        %1133 = vmatprep.subr.mxu0 0.0
        %1134 = vmatpush1.msra.mxu0 0.0
        %1135 = vmatprep.subr.mxu0 0.0
        %1136 = vmatpush1.msra.mxu0 0.0
        %1137 = vmatprep.subr.mxu0 0.0
        %1138 = vmatpush1.msra.mxu0 0.0
        %1139 = vmatprep.subr.mxu0 0.0
        %1140 = vmatpush1.msra.mxu0 0.0
        %1141 = vmatprep.subr.mxu0 0.0
        %1142 = vmatpush1.msra.mxu0 0.0
        %1143 = vmatprep.subr.mxu0 0.0
        %1144 = vmatpush1.msra.mxu0 0.0
        %1145 = vmatprep.subr.mxu0 0.0
        %1146 = vmatpush1.msra.mxu0 0.0
        %1147 = vmatprep.subr.mxu0 0.0
        %1148 = vmatpush1.msra.mxu0 0.0
        %1149 = vmatprep.subr.mxu0 0.0
        %1150 = vmatpush1.msra.mxu0 0.0
        %1151 = vmatprep.subr.mxu0 0.0
        %1152 = vmatpush1.msra.mxu0 0.0
        %1153 = vmatprep.subr.mxu0 0.0
        %1154 = vmatpush1.msra.mxu0 0.0
        %1155 = vmatprep.subr.mxu0 0.0
        %1156 = vmatpush1.msra.mxu0 0.0
        %1157 = vmatprep.subr.mxu0 0.0
        %1158 = vmatpush1.msra.mxu0 0.0
        %1159 = vmatprep.subr.mxu0 0.0
        %1160 = vmatpush1.msra.mxu0 0.0
        %1161 = vmatprep.subr.mxu0 0.0
        %1162 = vmatpush1.msra.mxu0 0.0
        %1163 = vmatprep.subr.mxu0 0.0
        %1164 = vmatpush1.msra.mxu0 0.0
        %1165 = vmatprep.subr.mxu0 0.0
        %1166 = vmatpush1.msra.mxu0 0.0
        %1167 = vmatprep.subr.mxu0 0.0
        %1168 = vmatpush1.msra.mxu0 0.0
        %1169 = vmatprep.subr.mxu0 0.0
        %1170 = vmatpush1.msra.mxu0 0.0
        %1171 = vmatprep.subr.mxu0 0.0
        %1172 = vmatpush1.msra.mxu0 0.0
        %1173 = vmatprep.subr.mxu0 0.0
        %1174 = vmatpush1.msra.mxu0 0.0
        %1175 = vmatprep.subr.mxu0 0.0
        %1176 = vmatpush1.msra.mxu0 0.0
        %1177 = vmatprep.subr.mxu0 0.0
        %1178 = vmatpush1.msra.mxu0 0.0
        %1179 = vmatprep.subr.mxu0 0.0
        %1180 = vmatpush1.msra.mxu0 0.0
        %1181 = vmatprep.subr.mxu0 0.0
        %1182 = vmatpush1.msra.mxu0 0.0
        %1183 = vmatprep.subr.mxu0 0.0
        %1184 = vmatpush1.msra.mxu0 0.0
        %1185 = vmatprep.subr.mxu0 0.0
        %1186 = vmatpush1.msra.mxu0 0.0
        %1187 = vmatprep.subr.mxu0 0.0
        %1188 = vmatpush1.msra.mxu0 0.0
        %1189 = vmatprep.mubr.f32.mxu0 0.0
        %1190 = vmatmul.mubr.f32.gmra.mrb[0].mxu0 %v1123
        %v1191 = vpop.f32.mrb[0].mxu0
        %v1192 = vadd.f32 0.0, %v1191
        %v1193 = vpop.f32.mrb[0].mxu0
        %1194 = vdwg.mxu0
        %s1195 = scalar_lea.vmem [#allocation2], 16
        %v1196 = vld [vmem:[%s1195] sm:$0xff]
        %1197 = vrot.lane.b32.xlu0 %v858, 112
        %v1198 = vpop.permute.xlu0 %1197
        %v1199 = vsel %vm869, %v1198, 0
        %1201 = vmatprep.subr.mxu0 0.0
        %1202 = vmatpush1.msra.mxu0 %v1196
        %1203 = vmatprep.subr.mxu0 0.0
        %1204 = vmatpush1.msra.mxu0 0.0
        %1205 = vmatprep.subr.mxu0 0.0
        %1206 = vmatpush1.msra.mxu0 0.0
        %1207 = vmatprep.subr.mxu0 0.0
        %1208 = vmatpush1.msra.mxu0 0.0
        %1209 = vmatprep.subr.mxu0 0.0
        %1210 = vmatpush1.msra.mxu0 0.0
        %1211 = vmatprep.subr.mxu0 0.0
        %1212 = vmatpush1.msra.mxu0 0.0
        %1213 = vmatprep.subr.mxu0 0.0
        %1214 = vmatpush1.msra.mxu0 0.0
        %1215 = vmatprep.subr.mxu0 0.0
        %1216 = vmatpush1.msra.mxu0 0.0
        %1217 = vmatprep.subr.mxu0 0.0
        %1218 = vmatpush1.msra.mxu0 0.0
        %1219 = vmatprep.subr.mxu0 0.0
        %1220 = vmatpush1.msra.mxu0 0.0
        %1221 = vmatprep.subr.mxu0 0.0
        %1222 = vmatpush1.msra.mxu0 0.0
        %1223 = vmatprep.subr.mxu0 0.0
        %1224 = vmatpush1.msra.mxu0 0.0
        %1225 = vmatprep.subr.mxu0 0.0
        %1226 = vmatpush1.msra.mxu0 0.0
        %1227 = vmatprep.subr.mxu0 0.0
        %1228 = vmatpush1.msra.mxu0 0.0
        %1229 = vmatprep.subr.mxu0 0.0
        %1230 = vmatpush1.msra.mxu0 0.0
        %1231 = vmatprep.subr.mxu0 0.0
        %1232 = vmatpush1.msra.mxu0 0.0
        %1233 = vmatprep.subr.mxu0 0.0
        %1234 = vmatpush1.msra.mxu0 0.0
        %1235 = vmatprep.subr.mxu0 0.0
        %1236 = vmatpush1.msra.mxu0 0.0
        %1237 = vmatprep.subr.mxu0 0.0
        %1238 = vmatpush1.msra.mxu0 0.0
        %1239 = vmatprep.subr.mxu0 0.0
        %1240 = vmatpush1.msra.mxu0 0.0
        %1241 = vmatprep.subr.mxu0 0.0
        %1242 = vmatpush1.msra.mxu0 0.0
        %1243 = vmatprep.subr.mxu0 0.0
        %1244 = vmatpush1.msra.mxu0 0.0
        %1245 = vmatprep.subr.mxu0 0.0
        %1246 = vmatpush1.msra.mxu0 0.0
        %1247 = vmatprep.subr.mxu0 0.0
        %1248 = vmatpush1.msra.mxu0 0.0
        %1249 = vmatprep.subr.mxu0 0.0
        %1250 = vmatpush1.msra.mxu0 0.0
        %1251 = vmatprep.subr.mxu0 0.0
        %1252 = vmatpush1.msra.mxu0 0.0
        %1253 = vmatprep.subr.mxu0 0.0
        %1254 = vmatpush1.msra.mxu0 0.0
        %1255 = vmatprep.subr.mxu0 0.0
        %1256 = vmatpush1.msra.mxu0 0.0
        %1257 = vmatprep.subr.mxu0 0.0
        %1258 = vmatpush1.msra.mxu0 0.0
        %1259 = vmatprep.subr.mxu0 0.0
        %1260 = vmatpush1.msra.mxu0 0.0
        %1261 = vmatprep.subr.mxu0 0.0
        %1262 = vmatpush1.msra.mxu0 0.0
        %1263 = vmatprep.subr.mxu0 0.0
        %1264 = vmatpush1.msra.mxu0 0.0
        %1265 = vmatprep.mubr.f32.mxu0 0.0
        %1266 = vmatmul.mubr.f32.gmra.mrb[0].mxu0 %v1199
        %v1267 = vpop.f32.mrb[0].mxu0
        %v1268 = vadd.f32 0.0, %v1267
        %v1269 = vpop.f32.mrb[0].mxu0
        %1270 = vdwg.mxu0
        %v1271 = vsel %vm867, -1.7014117e+38, %v1268
        %v1272 = vsel %vm944, %v1271, -inf
        %1273 = vmax.xlane.f32.xlu0 %v1272
        %v1274 = vpop.xlane.xlu0 %1273
        %v1275 = vsub.f32 %v1271, %v1274
        %v1276 = vmul.f32 %v1275, 1.442695
        %v1277 = vpow.pop %v1276
        %v1278 = vsel %vm944, %v1277, 0.0
        %1279 = vadd.xlane.f32.xlu0 %v1278
        %v1280 = vpop.xlane.xlu0 %1279
        %v1281 = vrcp.pop %v1280
        %v1282 = vmul.f32 %v1277, %v1281
        %s1283 = scalar_lea.vmem [#allocation3], 32
        %v1284 = vld [vmem:[%s1283] sm:$0xff]
        %v1285 = vld [vmem:[%s1283 + $0x8] sm:$0xff]
        %v1287 = vsel %vm944, %v1282, 0
        %1289 = vmatprep.subr.mxu0 0.0
        %1290 = vmatpush1.msra.mxu0 %v1284
        %1291 = vmatprep.subr.mxu0 0.0
        %1292 = vmatpush1.msra.mxu0 %v1285
        %1293 = vmatprep.subr.mxu0 0.0
        %1294 = vmatpush1.msra.mxu0 0.0
        %1295 = vmatprep.subr.mxu0 0.0
        %1296 = vmatpush1.msra.mxu0 0.0
        %1297 = vmatprep.subr.mxu0 0.0
        %1298 = vmatpush1.msra.mxu0 0.0
        %1299 = vmatprep.subr.mxu0 0.0
        %1300 = vmatpush1.msra.mxu0 0.0
        %1301 = vmatprep.subr.mxu0 0.0
        %1302 = vmatpush1.msra.mxu0 0.0
        %1303 = vmatprep.subr.mxu0 0.0
        %1304 = vmatpush1.msra.mxu0 0.0
        %1305 = vmatprep.subr.mxu0 0.0
        %1306 = vmatpush1.msra.mxu0 0.0
        %1307 = vmatprep.subr.mxu0 0.0
        %1308 = vmatpush1.msra.mxu0 0.0
        %1309 = vmatprep.subr.mxu0 0.0
        %1310 = vmatpush1.msra.mxu0 0.0
        %1311 = vmatprep.subr.mxu0 0.0
        %1312 = vmatpush1.msra.mxu0 0.0
        %1313 = vmatprep.subr.mxu0 0.0
        %1314 = vmatpush1.msra.mxu0 0.0
        %1315 = vmatprep.subr.mxu0 0.0
        %1316 = vmatpush1.msra.mxu0 0.0
        %1317 = vmatprep.subr.mxu0 0.0
        %1318 = vmatpush1.msra.mxu0 0.0
        %1319 = vmatprep.subr.mxu0 0.0
        %1320 = vmatpush1.msra.mxu0 0.0
        %1321 = vmatprep.subr.mxu0 0.0
        %1322 = vmatpush1.msra.mxu0 0.0
        %1323 = vmatprep.subr.mxu0 0.0
        %1324 = vmatpush1.msra.mxu0 0.0
        %1325 = vmatprep.subr.mxu0 0.0
        %1326 = vmatpush1.msra.mxu0 0.0
        %1327 = vmatprep.subr.mxu0 0.0
        %1328 = vmatpush1.msra.mxu0 0.0
        %1329 = vmatprep.subr.mxu0 0.0
        %1330 = vmatpush1.msra.mxu0 0.0
        %1331 = vmatprep.subr.mxu0 0.0
        %1332 = vmatpush1.msra.mxu0 0.0
        %1333 = vmatprep.subr.mxu0 0.0
        %1334 = vmatpush1.msra.mxu0 0.0
        %1335 = vmatprep.subr.mxu0 0.0
        %1336 = vmatpush1.msra.mxu0 0.0
        %1337 = vmatprep.subr.mxu0 0.0
        %1338 = vmatpush1.msra.mxu0 0.0
        %1339 = vmatprep.subr.mxu0 0.0
        %1340 = vmatpush1.msra.mxu0 0.0
        %1341 = vmatprep.subr.mxu0 0.0
        %1342 = vmatpush1.msra.mxu0 0.0
        %1343 = vmatprep.subr.mxu0 0.0
        %1344 = vmatpush1.msra.mxu0 0.0
        %1345 = vmatprep.subr.mxu0 0.0
        %1346 = vmatpush1.msra.mxu0 0.0
        %1347 = vmatprep.subr.mxu0 0.0
        %1348 = vmatpush1.msra.mxu0 0.0
        %1349 = vmatprep.subr.mxu0 0.0
        %1350 = vmatpush1.msra.mxu0 0.0
        %1351 = vmatprep.subr.mxu0 0.0
        %1352 = vmatpush1.msra.mxu0 0.0
        %1353 = vmatprep.mubr.f32.mxu0 0.0
        %1354 = vmatmul.mubr.f32.gmra.mrb[0].mxu0 %v1287
        %v1355 = vpop.f32.mrb[0].mxu0
        %v1356 = vadd.f32 0.0, %v1355
        %v1357 = vpop.f32.mrb[0].mxu0
        %1358 = vdwg.mxu0
        %s1359 = scalar_lea.vmem [#allocation2], 24
        %v1360 = vld [vmem:[%s1359] sm:$0xff]
        %1361 = vrot.lane.b32.xlu0 %v858, 104
        %v1362 = vpop.permute.xlu0 %1361
        %v1363 = vsel %vm869, %v1362, 0
        %1365 = vmatprep.subr.mxu0 0.0
        %1366 = vmatpush1.msra.mxu0 %v1360
        %1367 = vmatprep.subr.mxu0 0.0
        %1368 = vmatpush1.msra.mxu0 0.0
        %1369 = vmatprep.subr.mxu0 0.0
        %1370 = vmatpush1.msra.mxu0 0.0
        %1371 = vmatprep.subr.mxu0 0.0
        %1372 = vmatpush1.msra.mxu0 0.0
        %1373 = vmatprep.subr.mxu0 0.0
        %1374 = vmatpush1.msra.mxu0 0.0
        %1375 = vmatprep.subr.mxu0 0.0
        %1376 = vmatpush1.msra.mxu0 0.0
        %1377 = vmatprep.subr.mxu0 0.0
        %1378 = vmatpush1.msra.mxu0 0.0
        %1379 = vmatprep.subr.mxu0 0.0
        %1380 = vmatpush1.msra.mxu0 0.0
        %1381 = vmatprep.subr.mxu0 0.0
        %1382 = vmatpush1.msra.mxu0 0.0
        %1383 = vmatprep.subr.mxu0 0.0
        %1384 = vmatpush1.msra.mxu0 0.0
        %1385 = vmatprep.subr.mxu0 0.0
        %1386 = vmatpush1.msra.mxu0 0.0
        %1387 = vmatprep.subr.mxu0 0.0
        %1388 = vmatpush1.msra.mxu0 0.0
        %1389 = vmatprep.subr.mxu0 0.0
        %1390 = vmatpush1.msra.mxu0 0.0
        %1391 = vmatprep.subr.mxu0 0.0
        %1392 = vmatpush1.msra.mxu0 0.0
        %1393 = vmatprep.subr.mxu0 0.0
        %1394 = vmatpush1.msra.mxu0 0.0
        %1395 = vmatprep.subr.mxu0 0.0
        %1396 = vmatpush1.msra.mxu0 0.0
        %1397 = vmatprep.subr.mxu0 0.0
        %1398 = vmatpush1.msra.mxu0 0.0
        %1399 = vmatprep.subr.mxu0 0.0
        %1400 = vmatpush1.msra.mxu0 0.0
        %1401 = vmatprep.subr.mxu0 0.0
        %1402 = vmatpush1.msra.mxu0 0.0
        %1403 = vmatprep.subr.mxu0 0.0
        %1404 = vmatpush1.msra.mxu0 0.0
        %1405 = vmatprep.subr.mxu0 0.0
        %1406 = vmatpush1.msra.mxu0 0.0
        %1407 = vmatprep.subr.mxu0 0.0
        %1408 = vmatpush1.msra.mxu0 0.0
        %1409 = vmatprep.subr.mxu0 0.0
        %1410 = vmatpush1.msra.mxu0 0.0
        %1411 = vmatprep.subr.mxu0 0.0
        %1412 = vmatpush1.msra.mxu0 0.0
        %1413 = vmatprep.subr.mxu0 0.0
        %1414 = vmatpush1.msra.mxu0 0.0
        %1415 = vmatprep.subr.mxu0 0.0
        %1416 = vmatpush1.msra.mxu0 0.0
        %1417 = vmatprep.subr.mxu0 0.0
        %1418 = vmatpush1.msra.mxu0 0.0
        %1419 = vmatprep.subr.mxu0 0.0
        %1420 = vmatpush1.msra.mxu0 0.0
        %1421 = vmatprep.subr.mxu0 0.0
        %1422 = vmatpush1.msra.mxu0 0.0
        %1423 = vmatprep.subr.mxu0 0.0
        %1424 = vmatpush1.msra.mxu0 0.0
        %1425 = vmatprep.subr.mxu0 0.0
        %1426 = vmatpush1.msra.mxu0 0.0
        %1427 = vmatprep.subr.mxu0 0.0
        %1428 = vmatpush1.msra.mxu0 0.0
        %1429 = vmatprep.mubr.f32.mxu0 0.0
        %1430 = vmatmul.mubr.f32.gmra.mrb[0].mxu0 %v1363
        %v1431 = vpop.f32.mrb[0].mxu0
        %v1432 = vadd.f32 0.0, %v1431
        %v1433 = vpop.f32.mrb[0].mxu0
        %1434 = vdwg.mxu0
        %v1435 = vsel %vm867, -1.7014117e+38, %v1432
        %v1436 = vsel %vm944, %v1435, -inf
        %1437 = vmax.xlane.f32.xlu0 %v1436
        %v1438 = vpop.xlane.xlu0 %1437
        %v1439 = vsub.f32 %v1435, %v1438
        %v1440 = vmul.f32 %v1439, 1.442695
        %v1441 = vpow.pop %v1440
        %v1442 = vsel %vm944, %v1441, 0.0
        %1443 = vadd.xlane.f32.xlu0 %v1442
        %v1444 = vpop.xlane.xlu0 %1443
        %v1445 = vrcp.pop %v1444
        %v1446 = vmul.f32 %v1441, %v1445
        %s1447 = scalar_lea.vmem [#allocation3], 48
        %v1448 = vld [vmem:[%s1447] sm:$0xff]
        %v1449 = vld [vmem:[%s1447 + $0x8] sm:$0xff]
        %v1451 = vsel %vm944, %v1446, 0
        %1453 = vmatprep.subr.mxu0 0.0
        %1454 = vmatpush1.msra.mxu0 %v1448
        %1455 = vmatprep.subr.mxu0 0.0
        %1456 = vmatpush1.msra.mxu0 %v1449
        %1457 = vmatprep.subr.mxu0 0.0
        %1458 = vmatpush1.msra.mxu0 0.0
        %1459 = vmatprep.subr.mxu0 0.0
        %1460 = vmatpush1.msra.mxu0 0.0
        %1461 = vmatprep.subr.mxu0 0.0
        %1462 = vmatpush1.msra.mxu0 0.0
        %1463 = vmatprep.subr.mxu0 0.0
        %1464 = vmatpush1.msra.mxu0 0.0
        %1465 = vmatprep.subr.mxu0 0.0
        %1466 = vmatpush1.msra.mxu0 0.0
        %1467 = vmatprep.subr.mxu0 0.0
        %1468 = vmatpush1.msra.mxu0 0.0
        %1469 = vmatprep.subr.mxu0 0.0
        %1470 = vmatpush1.msra.mxu0 0.0
        %1471 = vmatprep.subr.mxu0 0.0
        %1472 = vmatpush1.msra.mxu0 0.0
        %1473 = vmatprep.subr.mxu0 0.0
        %1474 = vmatpush1.msra.mxu0 0.0
        %1475 = vmatprep.subr.mxu0 0.0
        %1476 = vmatpush1.msra.mxu0 0.0
        %1477 = vmatprep.subr.mxu0 0.0
        %1478 = vmatpush1.msra.mxu0 0.0
        %1479 = vmatprep.subr.mxu0 0.0
        %1480 = vmatpush1.msra.mxu0 0.0
        %1481 = vmatprep.subr.mxu0 0.0
        %1482 = vmatpush1.msra.mxu0 0.0
        %1483 = vmatprep.subr.mxu0 0.0
        %1484 = vmatpush1.msra.mxu0 0.0
        %1485 = vmatprep.subr.mxu0 0.0
        %1486 = vmatpush1.msra.mxu0 0.0
        %1487 = vmatprep.subr.mxu0 0.0
        %1488 = vmatpush1.msra.mxu0 0.0
        %1489 = vmatprep.subr.mxu0 0.0
        %1490 = vmatpush1.msra.mxu0 0.0
        %1491 = vmatprep.subr.mxu0 0.0
        %1492 = vmatpush1.msra.mxu0 0.0
        %1493 = vmatprep.subr.mxu0 0.0
        %1494 = vmatpush1.msra.mxu0 0.0
        %1495 = vmatprep.subr.mxu0 0.0
        %1496 = vmatpush1.msra.mxu0 0.0
        %1497 = vmatprep.subr.mxu0 0.0
        %1498 = vmatpush1.msra.mxu0 0.0
        %1499 = vmatprep.subr.mxu0 0.0
        %1500 = vmatpush1.msra.mxu0 0.0
        %1501 = vmatprep.subr.mxu0 0.0
        %1502 = vmatpush1.msra.mxu0 0.0
        %1503 = vmatprep.subr.mxu0 0.0
        %1504 = vmatpush1.msra.mxu0 0.0
        %1505 = vmatprep.subr.mxu0 0.0
        %1506 = vmatpush1.msra.mxu0 0.0
        %1507 = vmatprep.subr.mxu0 0.0
        %1508 = vmatpush1.msra.mxu0 0.0
        %1509 = vmatprep.subr.mxu0 0.0
        %1510 = vmatpush1.msra.mxu0 0.0
        %1511 = vmatprep.subr.mxu0 0.0
        %1512 = vmatpush1.msra.mxu0 0.0
        %1513 = vmatprep.subr.mxu0 0.0
        %1514 = vmatpush1.msra.mxu0 0.0
        %1515 = vmatprep.subr.mxu0 0.0
        %1516 = vmatpush1.msra.mxu0 0.0
        %1517 = vmatprep.mubr.f32.mxu0 0.0
        %1518 = vmatmul.mubr.f32.gmra.mrb[0].mxu0 %v1451
        %v1519 = vpop.f32.mrb[0].mxu0
        %v1520 = vadd.f32 0.0, %v1519
        %v1521 = vpop.f32.mrb[0].mxu0
        %1522 = vdwg.mxu0
        %1524 = vrot.lane.b32.xlu0 %v1192, 8
        %v1525 = vpop.permute.xlu0 %1524
        %1528 = vrot.lane.b32.xlu0 %v1356, 16
        %v1529 = vpop.permute.xlu0 %1528
        %1532 = vrot.lane.b32.xlu0 %v1520, 24
        %v1533 = vpop.permute.xlu0 %1532
        %v1535 = vsel %vm869, %v1028, %v1525
        %v1536 = vsel %vm944, %v1535, %v1529
        %vm1537 = vcmask 195584
        %v1538 = vsel %vm1537, %v1536, %v1533
        %v1539 = vadd.f32 %v745, %v1538
        %v1540 = vld [vmem:[%s5] sm:$0x1]
        %v1541 = vld [vmem:[%s6] sm:$0x1]
        %v1542 = vsel %vm746, %v1539, 0.0
        %1543 = vadd.xlane.f32.xlu0 %v1542
        %v1544 = vpop.xlane.xlu0 %1543
        %v1545 = vmul.f32 %v1544, %v750
        %v1546 = vsub.f32 %v1539, %v1545
        %v1547 = vmul.f32 %v1546, %v1546
        %v1548 = vsel %vm746, %v1547, 0.0
        %1549 = vadd.xlane.f32.xlu0 %v1548
        %v1550 = vpop.xlane.xlu0 %1549
        %v1551 = vmul.f32 %v1550, %v757
        %v1552 = vadd.f32 %v1551, 1e-05
        %v1553 = vrsqrt.pop %v1552
        %v1554 = vmul.f32 %v1552, %v1553
        %vm1555 = vcmp.eq.f32.partialorder %v1552, inf
        %v1556 = vsel %vm1555, %v1552, %v1554
        %vm1557 = vcmp.eq.f32.partialorder %v1552, 0.0
        %v1558 = vand.u32 %v1552, 2147483648
        %v1559 = vsel %vm1557, %v1558, %v1556
        %v1560 = vrcp.pop %v1559
        %v1561 = vmul.f32 %v1546, %v1560
        %v1563 = vlaneseq
        %v1564 = vshrl.u32 %v1563, 7
        %v1565 = vsub.s32 0, %v1564
        %v1566 = vrot.slane %v1540, %v1565
        %v1568 = vmul.f32 %v1566, %v1561
        %v1570 = vlaneseq
        %v1571 = vshrl.u32 %v1570, 7
        %v1572 = vsub.s32 0, %v1571
        %v1573 = vrot.slane %v1541, %v1572
        %v1575 = vadd.f32 %v1568, %v1573
        %v1576 = vld [vmem:[%s7] sm:$0xff]
        %v1577 = vld [vmem:[%s7 + $0x8] sm:$0xff]
        %v1578 = vld [vmem:[%s7 + $0x10] sm:$0xff]
        %v1579 = vld [vmem:[%s7 + $0x18] sm:$0xff]
        %v1580 = vld [vmem:[%s8] sm:$0x1]
        %v1582 = vlaneseq
        %v1583 = vshrl.u32 %v1582, 7
        %v1584 = vsub.s32 0, %v1583
        %v1585 = vrot.slane %v1580, %v1584
        %v1588 = vsel %vm746, %v1575, 0
        %1590 = vmatprep.subr.mxu0 0.0
        %1591 = vmatpush1.msra.mxu0 %v1576
        %1592 = vmatprep.subr.mxu0 0.0
        %1593 = vmatpush1.msra.mxu0 %v1577
        %1594 = vmatprep.subr.mxu0 0.0
        %1595 = vmatpush1.msra.mxu0 %v1578
        %1596 = vmatprep.subr.mxu0 0.0
        %1597 = vmatpush1.msra.mxu0 %v1579
        %1598 = vmatprep.subr.mxu0 0.0
        %1599 = vmatpush1.msra.mxu0 0.0
        %1600 = vmatprep.subr.mxu0 0.0
        %1601 = vmatpush1.msra.mxu0 0.0
        %1602 = vmatprep.subr.mxu0 0.0
        %1603 = vmatpush1.msra.mxu0 0.0
        %1604 = vmatprep.subr.mxu0 0.0
        %1605 = vmatpush1.msra.mxu0 0.0
        %1606 = vmatprep.subr.mxu0 0.0
        %1607 = vmatpush1.msra.mxu0 0.0
        %1608 = vmatprep.subr.mxu0 0.0
        %1609 = vmatpush1.msra.mxu0 0.0
        %1610 = vmatprep.subr.mxu0 0.0
        %1611 = vmatpush1.msra.mxu0 0.0
        %1612 = vmatprep.subr.mxu0 0.0
        %1613 = vmatpush1.msra.mxu0 0.0
        %1614 = vmatprep.subr.mxu0 0.0
        %1615 = vmatpush1.msra.mxu0 0.0
        %1616 = vmatprep.subr.mxu0 0.0
        %1617 = vmatpush1.msra.mxu0 0.0
        %1618 = vmatprep.subr.mxu0 0.0
        %1619 = vmatpush1.msra.mxu0 0.0
        %1620 = vmatprep.subr.mxu0 0.0
        %1621 = vmatpush1.msra.mxu0 0.0
        %1622 = vmatprep.subr.mxu0 0.0
        %1623 = vmatpush1.msra.mxu0 0.0
        %1624 = vmatprep.subr.mxu0 0.0
        %1625 = vmatpush1.msra.mxu0 0.0
        %1626 = vmatprep.subr.mxu0 0.0
        %1627 = vmatpush1.msra.mxu0 0.0
        %1628 = vmatprep.subr.mxu0 0.0
        %1629 = vmatpush1.msra.mxu0 0.0
        %1630 = vmatprep.subr.mxu0 0.0
        %1631 = vmatpush1.msra.mxu0 0.0
        %1632 = vmatprep.subr.mxu0 0.0
        %1633 = vmatpush1.msra.mxu0 0.0
        %1634 = vmatprep.subr.mxu0 0.0
        %1635 = vmatpush1.msra.mxu0 0.0
        %1636 = vmatprep.subr.mxu0 0.0
        %1637 = vmatpush1.msra.mxu0 0.0
        %1638 = vmatprep.subr.mxu0 0.0
        %1639 = vmatpush1.msra.mxu0 0.0
        %1640 = vmatprep.subr.mxu0 0.0
        %1641 = vmatpush1.msra.mxu0 0.0
        %1642 = vmatprep.subr.mxu0 0.0
        %1643 = vmatpush1.msra.mxu0 0.0
        %1644 = vmatprep.subr.mxu0 0.0
        %1645 = vmatpush1.msra.mxu0 0.0
        %1646 = vmatprep.subr.mxu0 0.0
        %1647 = vmatpush1.msra.mxu0 0.0
        %1648 = vmatprep.subr.mxu0 0.0
        %1649 = vmatpush1.msra.mxu0 0.0
        %1650 = vmatprep.subr.mxu0 0.0
        %1651 = vmatpush1.msra.mxu0 0.0
        %1652 = vmatprep.subr.mxu0 0.0
        %1653 = vmatpush1.msra.mxu0 0.0
        %1654 = vmatprep.mubr.f32.mxu0 0.0
        %1655 = vmatmul.mubr.f32.gmra.mrb[0].mxu0 %v1588
        %v1656 = vpop.f32.mrb[0].mxu0
        %v1657 = vadd.f32 %v1585, %v1656
        %v1658 = vpop.f32.mrb[0].mxu0
        %1659 = vdwg.mxu0
        %v1660 = vmul.f32 %v1657, 0.5
        %v1661 = vmul.f32 %v1657, 0.044715
        %v1662 = vmul.f32 %v1661, %v1657
        %v1663 = vmul.f32 %v1662, %v1657
        %v1664 = vadd.f32 %v1657, %v1663
        %v1665 = vmul.f32 %v1664, 0.7978846
        %v1666 = vtanh.pop %v1665
        %v1667 = vadd.f32 %v1666, 1.0
        %v1668 = vmul.f32 %v1660, %v1667
        %v1669 = vld [vmem:[%s9] sm:$0xff]
        %v1670 = vld [vmem:[%s9 + $0x8] sm:$0xff]
        %v1671 = vld [vmem:[%s9 + $0x10] sm:$0xff]
        %v1672 = vld [vmem:[%s9 + $0x18] sm:$0xff]
        %v1673 = vld [vmem:[%s9 + $0x20] sm:$0xff]
        %v1674 = vld [vmem:[%s9 + $0x28] sm:$0xff]
        %v1675 = vld [vmem:[%s9 + $0x30] sm:$0xff]
        %v1676 = vld [vmem:[%s9 + $0x38] sm:$0xff]
        %v1677 = vld [vmem:[%s9 + $0x40] sm:$0xff]
        %v1678 = vld [vmem:[%s9 + $0x48] sm:$0xff]
        %v1679 = vld [vmem:[%s9 + $0x50] sm:$0xff]
        %v1680 = vld [vmem:[%s9 + $0x58] sm:$0xff]
        %v1681 = vld [vmem:[%s9 + $0x60] sm:$0xff]
        %v1682 = vld [vmem:[%s9 + $0x68] sm:$0xff]
        %v1683 = vld [vmem:[%s9 + $0x70] sm:$0xff]
        %v1684 = vld [vmem:[%s9 + $0x78] sm:$0xff]
        %v1685 = vld [vmem:[%s10] sm:$0x1]
        %v1687 = vlaneseq
        %v1688 = vshrl.u32 %v1687, 7
        %v1689 = vsub.s32 0, %v1688
        %v1690 = vrot.slane %v1685, %v1689
        %1692 = vmatprep.subr.mxu0 0.0
        %1693 = vmatpush1.msra.mxu0 %v1669
        %1694 = vmatprep.subr.mxu0 0.0
        %1695 = vmatpush1.msra.mxu0 %v1670
        %1696 = vmatprep.subr.mxu0 0.0
        %1697 = vmatpush1.msra.mxu0 %v1671
        %1698 = vmatprep.subr.mxu0 0.0
        %1699 = vmatpush1.msra.mxu0 %v1672
        %1700 = vmatprep.subr.mxu0 0.0
        %1701 = vmatpush1.msra.mxu0 %v1673
        %1702 = vmatprep.subr.mxu0 0.0
        %1703 = vmatpush1.msra.mxu0 %v1674
        %1704 = vmatprep.subr.mxu0 0.0
        %1705 = vmatpush1.msra.mxu0 %v1675
        %1706 = vmatprep.subr.mxu0 0.0
        %1707 = vmatpush1.msra.mxu0 %v1676
        %1708 = vmatprep.subr.mxu0 0.0
        %1709 = vmatpush1.msra.mxu0 %v1677
        %1710 = vmatprep.subr.mxu0 0.0
        %1711 = vmatpush1.msra.mxu0 %v1678
        %1712 = vmatprep.subr.mxu0 0.0
        %1713 = vmatpush1.msra.mxu0 %v1679
        %1714 = vmatprep.subr.mxu0 0.0
        %1715 = vmatpush1.msra.mxu0 %v1680
        %1716 = vmatprep.subr.mxu0 0.0
        %1717 = vmatpush1.msra.mxu0 %v1681
        %1718 = vmatprep.subr.mxu0 0.0
        %1719 = vmatpush1.msra.mxu0 %v1682
        %1720 = vmatprep.subr.mxu0 0.0
        %1721 = vmatpush1.msra.mxu0 %v1683
        %1722 = vmatprep.subr.mxu0 0.0
        %1723 = vmatpush1.msra.mxu0 %v1684
        %1724 = vmatprep.subr.mxu0 0.0
        %1725 = vmatpush1.msra.mxu0 0.0
        %1726 = vmatprep.subr.mxu0 0.0
        %1727 = vmatpush1.msra.mxu0 0.0
        %1728 = vmatprep.subr.mxu0 0.0
        %1729 = vmatpush1.msra.mxu0 0.0
        %1730 = vmatprep.subr.mxu0 0.0
        %1731 = vmatpush1.msra.mxu0 0.0
        %1732 = vmatprep.subr.mxu0 0.0
        %1733 = vmatpush1.msra.mxu0 0.0
        %1734 = vmatprep.subr.mxu0 0.0
        %1735 = vmatpush1.msra.mxu0 0.0
        %1736 = vmatprep.subr.mxu0 0.0
        %1737 = vmatpush1.msra.mxu0 0.0
        %1738 = vmatprep.subr.mxu0 0.0
        %1739 = vmatpush1.msra.mxu0 0.0
        %1740 = vmatprep.subr.mxu0 0.0
        %1741 = vmatpush1.msra.mxu0 0.0
        %1742 = vmatprep.subr.mxu0 0.0
        %1743 = vmatpush1.msra.mxu0 0.0
        %1744 = vmatprep.subr.mxu0 0.0
        %1745 = vmatpush1.msra.mxu0 0.0
        %1746 = vmatprep.subr.mxu0 0.0
        %1747 = vmatpush1.msra.mxu0 0.0
        %1748 = vmatprep.subr.mxu0 0.0
        %1749 = vmatpush1.msra.mxu0 0.0
        %1750 = vmatprep.subr.mxu0 0.0
        %1751 = vmatpush1.msra.mxu0 0.0
        %1752 = vmatprep.subr.mxu0 0.0
        %1753 = vmatpush1.msra.mxu0 0.0
        %1754 = vmatprep.subr.mxu0 0.0
        %1755 = vmatpush1.msra.mxu0 0.0
        %1756 = vmatprep.mubr.f32.mxu0 0.0
        %1757 = vmatmul.mubr.f32.gmra.mrb[0].mxu0 %v1668
        %v1758 = vpop.f32.mrb[0].mxu0
        %v1759 = vadd.f32 %v1690, %v1758
        %v1760 = vpop.f32.mrb[0].mxu0
        %1761 = vdwg.mxu0
        %v1762 = vadd.f32 %v1539, %v1759
        %1763 = vst.msk [vmem:[%s393] sm:$0xff] %vm746, %v1762
        %s1764 = sand.u32 %s283, 1
        %s1765 = scalar_lea.sflag [#allocation5], %s1764
        %s1766 = sand.u32 %s283, 1
        %s1767 = smul.addr %s1766, 8
        %s1768 = scalar_lea.vmem [#allocation4], %s1767
        // Predicated region
        $region69: #{tpu_custom_call.1} parent=63 // pred_check
          %p1769 = pneg %p293
        $region70: #{tpu_custom_call.1} parent=63 // pred_check_branch
          %1771 = sbr.rel (%p1769) target = $region72
        $region71: #{tpu_custom_call.1} parent=63 // pred_region
          %s1773 = ssub.s32 128, 128
          %1774 = vsyncadd %s1765, %s1773
          %s1775 = smul.addr %s29, 2
          %s1776 = sadd.s32 %s30, %s1775
          %s1777 = smul.addr %s1776, 128
          %s1778 = scalar_lea.hbm %s11, %s1777
          %s1780 = sshll.u32 %s1768, 4
          %s1781 = int_to_ptr.vmem [resolvable:$true] %s1780
          %1783 = dma.vmem_to_hbm [thread:$0]  %s1781, 128, %s1778, %s1765
        $region72: #{tpu_custom_call.1} parent=63 // pred_fallthru
          _
      $region64: #{tpu_custom_call.1} parent=5 // pred_fallthru
        _
      %p1784 = scmp.le.s32.totalorder 2, %s20
      // Predicated region
      $region73: #{tpu_custom_call.1} parent=5 // pred_check
        %p1785 = pneg %p1784
      $region74: #{tpu_custom_call.1} parent=5 // pred_check_branch
        %1787 = sbr.rel (%p1785) target = $region76
      $region75: #{tpu_custom_call.1} parent=5 // pred_region
        %s1788 = ssub.s32 %s20, 2
        // Predicated region
        $region77: #{tpu_custom_call.1} parent=75 // pred_check
          %p1789 = pneg %p299
        $region78: #{tpu_custom_call.1} parent=75 // pred_check_branch
          %1791 = sbr.rel (%p1789) target = $region80
        $region79: #{tpu_custom_call.1} parent=75 // pred_region
          %s1792 = sand.u32 %s284, 1
          %s1793 = scalar_lea.sflag [#allocation5], %s1792
          %s1794 = sand.u32 %s284, 1
          %s1795 = smul.addr %s1794, 8
          %s1796 = scalar_lea.vmem [#allocation4], %s1795
          %1797 = dma.done %s1793, 128
        $region80: #{tpu_custom_call.1} parent=75 // pred_fallthru
          _
      $region76: #{tpu_custom_call.1} parent=5 // pred_fallthru
        _
    $region6: #{tpu_custom_call.1} parent=1 // loop_footer
      %s24 = sadd.s32 1, %s20
    $region7: #{tpu_custom_call.1} parent=1 // loop_footer_branch
      %19 = sbr.rel target = $region3
    $region8: #{tpu_custom_call.1} parent=1 // loop_exit
      _
    %1798 = vsyncpa [#allocation5], 1
    %s1799 = scalar_lea.sflag [#allocation5], 1
    %1800 = vsyncpa %s1799, 1

// kernel: tpu_custom_call.1
$region0: #{tpu_custom_call.1}
  #allocation0 [shape = 'u32[]', space=smem, size = 0x4, offset = 0x4, fixed_abs, tag = 'smem constant byte address 0x4 - core index']
  #allocation1 [shape = 'u32[144,128]{1,0:T(1,128)}', space=vmem, size = 0x12000, scoped, tag = 'internal scratch']
  #allocation2 [shape = 'f32[4,8,16]{2,1,0:T(8,128)}', space=vmem, size = 0x4000, scoped, tag = 'scratch operand']
  #allocation3 [shape = 'f32[4,16,8]{2,1,0:T(8,128)}', space=vmem, size = 0x8000, scoped, tag = 'scratch operand']
  %s0 = inlined_call_operand.vmem [shape: f32[2,16,32], index: 0, kind: input, shape index: {}]
  %s1 = inlined_call_operand.vmem [shape: f32[1,32], index: 1, kind: input, shape index: {}]
  %s2 = inlined_call_operand.vmem [shape: f32[1,32], index: 2, kind: input, shape index: {}]
  %s3 = inlined_call_operand.vmem [shape: f32[32,32], index: 3, kind: input, shape index: {}]
  %s4 = inlined_call_operand.vmem [shape: f32[32,64], index: 4, kind: input, shape index: {}]
  %s5 = inlined_call_operand.vmem [shape: f32[1,32], index: 5, kind: input, shape index: {}]
  %s6 = inlined_call_operand.vmem [shape: f32[1,32], index: 6, kind: input, shape index: {}]
  %s7 = inlined_call_operand.vmem [shape: f32[32,128], index: 7, kind: input, shape index: {}]
  %s8 = inlined_call_operand.vmem [shape: f32[1,128], index: 8, kind: input, shape index: {}]
  %s9 = inlined_call_operand.vmem [shape: f32[128,32], index: 9, kind: input, shape index: {}]
  %s10 = inlined_call_operand.vmem [shape: f32[1,32], index: 10, kind: input, shape index: {}]
  %s11 = inlined_call_operand.hbm [shape: f32[2,16,32], index: 11, kind: output, shape index: {}]
  %s12 = sld [smem:[#allocation0]]
  $region81: #{tpu_custom_call.1} parent=0
    _
  %s14 = ssub.s32 1, %s12
  %s15 = scalar_select 0, %s14, %s12
  $region1: #{tpu_custom_call.1} parent=0
    #allocation4 [shape = 'u8[8192]{0}', space=vmem, size = 0x2000, scoped, tag = 'output window, operand 0']
    #allocation5 [shape = 's32[2]{0}', space=sflag, size = 0x8, scoped, tag = 'scoped memory for tpu_custom_call.1']
    %16 = vsyncpa [#allocation5], 0
    %s17 = scalar_lea.sflag [#allocation5], 1
    %18 = vsyncpa %s17, 0
    loop: start=0, step=1, limit=6
    $region2: #{tpu_custom_call.1} parent=1 // loop_pre_header
      _
    $region3: #{tpu_custom_call.1} parent=1 // loop_header
      %s20 = sphi 0, %s24
      %p21 = scmp.ge.s32.totalorder %s20, 6
      %s27 = sphi 0, %s39
      %s28 = sphi 0, %s35
      %s29 = sphi 0, %s27
      %s30 = sphi 0, %s28
      %s31 = sphi 0, %s29
      %s32 = sphi 0, %s30
      %s42 = sphi 0, %s44
      %s45 = sphi 0, %s42
      %s46 = sphi 0, %s45
      %s62 = sphi 0, %s46
      %s66 = sphi 0, %s66
      %s68 = sphi 0, %s66
      %s69 = sphi 0, %s68
      %s83 = sphi 0, %s69
      %s87 = sphi 0, %s87
      %s89 = sphi 0, %s87
      %s90 = sphi 0, %s89
      %s104 = sphi 0, %s90
      %s108 = sphi 0, %s108
      %s110 = sphi 0, %s108
      %s111 = sphi 0, %s110
      %s125 = sphi 0, %s111
      %s129 = sphi 0, %s129
      %s131 = sphi 0, %s129
      %s132 = sphi 0, %s131
      %s146 = sphi 0, %s132
      %s150 = sphi 0, %s150
      %s152 = sphi 0, %s150
      %s153 = sphi 0, %s152
      %s167 = sphi 0, %s153
      %s171 = sphi 0, %s171
      %s173 = sphi 0, %s171
      %s174 = sphi 0, %s173
      %s188 = sphi 0, %s174
      %s192 = sphi 0, %s192
      %s194 = sphi 0, %s192
      %s195 = sphi 0, %s194
      %s209 = sphi 0, %s195
      %s213 = sphi 0, %s213
      %s215 = sphi 0, %s213
      %s216 = sphi 0, %s215
      %s230 = sphi 0, %s216
      %s234 = sphi 0, %s234
      %s236 = sphi 0, %s234
      %s237 = sphi 0, %s236
      %s251 = sphi 0, %s237
      %s255 = sphi 0, %s255
      %s257 = sphi 0, %s255
      %s258 = sphi 0, %s257
      %s272 = sphi 0, %s258
      %s280 = sphi 0, %s282
      %s283 = sphi 0, %s280
      %s284 = sphi 0, %s283
      %s300 = sphi 0, %s284
    $region4: #{tpu_custom_call.1} parent=1 // loop_header_branch
      %23 = sbr.rel (%p21) target = $region8
    $region5: #{tpu_custom_call.1} parent=1 // loop_body
      %s25 = ssub.s32 %s20, 1
      %s26 = ssub.s32 %s20, 2
      %s33 = sadd.s32 1, %s28
      %p34 = scmp.ge.s32.totalorder %s33, 2
      %s35 = scalar_select %p34, 0, %s33
      %s36 = sadd.s32 1, %s27
      %s37 = scalar_select %p34, %s36, %s27
      %p38 = scmp.ge.s32.totalorder %s37, 2
      %s39 = scalar_select %p38, 0, %s37
      %s40 = ssub.s32 %s27, %s39
      %p41 = scmp.eq.s32.totalorder %s40, 0
      %s43 = sadd.s32 %s42, 1
      %s44 = scalar_select %p41, %s42, %s43
      %p47 = pneg %p41
      %p48 = scmp.eq.s32.totalorder %s20, 3
      %p49 = por %p47, %p48
      %p50 = scmp.ne.s32.totalorder %s42, %s45
      %p51 = scmp.eq.s32.totalorder %s20, 0
      %p52 = por %p50, %p51
      %p53 = scmp.ne.s32.totalorder %s42, %s45
      %p54 = scmp.eq.s32.totalorder %s25, 3
      %p55 = por %p53, %p54
      %p56 = scmp.ne.s32.totalorder %s45, %s46
      %p57 = scmp.eq.s32.totalorder %s25, 0
      %p58 = por %p56, %p57
      %p59 = scmp.ne.s32.totalorder %s45, %s46
      %p60 = scmp.eq.s32.totalorder %s26, 3
      %p61 = por %p59, %p60
      %p63 = scmp.ne.s32.totalorder %s46, %s62
      %p64 = scmp.eq.s32.totalorder %s26, 0
      %p65 = por %p63, %p64
      %s67 = sadd.s32 %s66, 1
      %p70 = scmp.eq.s32.totalorder %s20, 3
      %p71 = scmp.ne.s32.totalorder %s66, %s68
      %p72 = scmp.eq.s32.totalorder %s20, 0
      %p73 = por %p71, %p72
      %p74 = scmp.ne.s32.totalorder %s66, %s68
      %p75 = scmp.eq.s32.totalorder %s25, 3
      %p76 = por %p74, %p75
      %p77 = scmp.ne.s32.totalorder %s68, %s69
      %p78 = scmp.eq.s32.totalorder %s25, 0
      %p79 = por %p77, %p78
      %p80 = scmp.ne.s32.totalorder %s68, %s69
      %p81 = scmp.eq.s32.totalorder %s26, 3
      %p82 = por %p80, %p81
      %p84 = scmp.ne.s32.totalorder %s69, %s83
      %p85 = scmp.eq.s32.totalorder %s26, 0
      %p86 = por %p84, %p85
      %s88 = sadd.s32 %s87, 1
      %p91 = scmp.eq.s32.totalorder %s20, 3
      %p92 = scmp.ne.s32.totalorder %s87, %s89
      %p93 = scmp.eq.s32.totalorder %s20, 0
      %p94 = por %p92, %p93
      %p95 = scmp.ne.s32.totalorder %s87, %s89
      %p96 = scmp.eq.s32.totalorder %s25, 3
      %p97 = por %p95, %p96
      %p98 = scmp.ne.s32.totalorder %s89, %s90
      %p99 = scmp.eq.s32.totalorder %s25, 0
      %p100 = por %p98, %p99
      %p101 = scmp.ne.s32.totalorder %s89, %s90
      %p102 = scmp.eq.s32.totalorder %s26, 3
      %p103 = por %p101, %p102
      %p105 = scmp.ne.s32.totalorder %s90, %s104
      %p106 = scmp.eq.s32.totalorder %s26, 0
      %p107 = por %p105, %p106
      %s109 = sadd.s32 %s108, 1
      %p112 = scmp.eq.s32.totalorder %s20, 3
      %p113 = scmp.ne.s32.totalorder %s108, %s110
      %p114 = scmp.eq.s32.totalorder %s20, 0
      %p115 = por %p113, %p114
      %p116 = scmp.ne.s32.totalorder %s108, %s110
      %p117 = scmp.eq.s32.totalorder %s25, 3
      %p118 = por %p116, %p117
      %p119 = scmp.ne.s32.totalorder %s110, %s111
      %p120 = scmp.eq.s32.totalorder %s25, 0
      %p121 = por %p119, %p120
      %p122 = scmp.ne.s32.totalorder %s110, %s111
      %p123 = scmp.eq.s32.totalorder %s26, 3
      %p124 = por %p122, %p123
      %p126 = scmp.ne.s32.totalorder %s111, %s125
      %p127 = scmp.eq.s32.totalorder %s26, 0
      %p128 = por %p126, %p127
      %s130 = sadd.s32 %s129, 1
      %p133 = scmp.eq.s32.totalorder %s20, 3
      %p134 = scmp.ne.s32.totalorder %s129, %s131
      %p135 = scmp.eq.s32.totalorder %s20, 0
      %p136 = por %p134, %p135
      %p137 = scmp.ne.s32.totalorder %s129, %s131
      %p138 = scmp.eq.s32.totalorder %s25, 3
      %p139 = por %p137, %p138
      %p140 = scmp.ne.s32.totalorder %s131, %s132
      %p141 = scmp.eq.s32.totalorder %s25, 0
      %p142 = por %p140, %p141
      %p143 = scmp.ne.s32.totalorder %s131, %s132
      %p144 = scmp.eq.s32.totalorder %s26, 3
      %p145 = por %p143, %p144
      %p147 = scmp.ne.s32.totalorder %s132, %s146
      %p148 = scmp.eq.s32.totalorder %s26, 0
      %p149 = por %p147, %p148
      %s151 = sadd.s32 %s150, 1
      %p154 = scmp.eq.s32.totalorder %s20, 3
      %p155 = scmp.ne.s32.totalorder %s150, %s152
      %p156 = scmp.eq.s32.totalorder %s20, 0
      %p157 = por %p155, %p156
      %p158 = scmp.ne.s32.totalorder %s150, %s152
      %p159 = scmp.eq.s32.totalorder %s25, 3
      %p160 = por %p158, %p159
      %p161 = scmp.ne.s32.totalorder %s152, %s153
      %p162 = scmp.eq.s32.totalorder %s25, 0
      %p163 = por %p161, %p162
      %p164 = scmp.ne.s32.totalorder %s152, %s153
      %p165 = scmp.eq.s32.totalorder %s26, 3
      %p166 = por %p164, %p165
      %p168 = scmp.ne.s32.totalorder %s153, %s167
      %p169 = scmp.eq.s32.totalorder %s26, 0
      %p170 = por %p168, %p169
      %s172 = sadd.s32 %s171, 1
      %p175 = scmp.eq.s32.totalorder %s20, 3
      %p176 = scmp.ne.s32.totalorder %s171, %s173
      %p177 = scmp.eq.s32.totalorder %s20, 0
      %p178 = por %p176, %p177
      %p179 = scmp.ne.s32.totalorder %s171, %s173
      %p180 = scmp.eq.s32.totalorder %s25, 3
      %p181 = por %p179, %p180
      %p182 = scmp.ne.s32.totalorder %s173, %s174
      %p183 = scmp.eq.s32.totalorder %s25, 0
      %p184 = por %p182, %p183
      %p185 = scmp.ne.s32.totalorder %s173, %s174
      %p186 = scmp.eq.s32.totalorder %s26, 3
      %p187 = por %p185, %p186
      %p189 = scmp.ne.s32.totalorder %s174, %s188
      %p190 = scmp.eq.s32.totalorder %s26, 0
      %p191 = por %p189, %p190
      %s193 = sadd.s32 %s192, 1
      %p196 = scmp.eq.s32.totalorder %s20, 3
      %p197 = scmp.ne.s32.totalorder %s192, %s194
      %p198 = scmp.eq.s32.totalorder %s20, 0
      %p199 = por %p197, %p198
      %p200 = scmp.ne.s32.totalorder %s192, %s194
      %p201 = scmp.eq.s32.totalorder %s25, 3
      %p202 = por %p200, %p201
      %p203 = scmp.ne.s32.totalorder %s194, %s195
      %p204 = scmp.eq.s32.totalorder %s25, 0
      %p205 = por %p203, %p204
      %p206 = scmp.ne.s32.totalorder %s194, %s195
      %p207 = scmp.eq.s32.totalorder %s26, 3
      %p208 = por %p206, %p207
      %p210 = scmp.ne.s32.totalorder %s195, %s209
      %p211 = scmp.eq.s32.totalorder %s26, 0
      %p212 = por %p210, %p211
      %s214 = sadd.s32 %s213, 1
      %p217 = scmp.eq.s32.totalorder %s20, 3
      %p218 = scmp.ne.s32.totalorder %s213, %s215
      %p219 = scmp.eq.s32.totalorder %s20, 0
      %p220 = por %p218, %p219
      %p221 = scmp.ne.s32.totalorder %s213, %s215
      %p222 = scmp.eq.s32.totalorder %s25, 3
      %p223 = por %p221, %p222
      %p224 = scmp.ne.s32.totalorder %s215, %s216
      %p225 = scmp.eq.s32.totalorder %s25, 0
      %p226 = por %p224, %p225
      %p227 = scmp.ne.s32.totalorder %s215, %s216
      %p228 = scmp.eq.s32.totalorder %s26, 3
      %p229 = por %p227, %p228
      %p231 = scmp.ne.s32.totalorder %s216, %s230
      %p232 = scmp.eq.s32.totalorder %s26, 0
      %p233 = por %p231, %p232
      %s235 = sadd.s32 %s234, 1
      %p238 = scmp.eq.s32.totalorder %s20, 3
      %p239 = scmp.ne.s32.totalorder %s234, %s236
      %p240 = scmp.eq.s32.totalorder %s20, 0
      %p241 = por %p239, %p240
      %p242 = scmp.ne.s32.totalorder %s234, %s236
      %p243 = scmp.eq.s32.totalorder %s25, 3
      %p244 = por %p242, %p243
      %p245 = scmp.ne.s32.totalorder %s236, %s237
      %p246 = scmp.eq.s32.totalorder %s25, 0
      %p247 = por %p245, %p246
      %p248 = scmp.ne.s32.totalorder %s236, %s237
      %p249 = scmp.eq.s32.totalorder %s26, 3
      %p250 = por %p248, %p249
      %p252 = scmp.ne.s32.totalorder %s237, %s251
      %p253 = scmp.eq.s32.totalorder %s26, 0
      %p254 = por %p252, %p253
      %s256 = sadd.s32 %s255, 1
      %p259 = scmp.eq.s32.totalorder %s20, 3
      %p260 = scmp.ne.s32.totalorder %s255, %s257
      %p261 = scmp.eq.s32.totalorder %s20, 0
      %p262 = por %p260, %p261
      %p263 = scmp.ne.s32.totalorder %s255, %s257
      %p264 = scmp.eq.s32.totalorder %s25, 3
      %p265 = por %p263, %p264
      %p266 = scmp.ne.s32.totalorder %s257, %s258
      %p267 = scmp.eq.s32.totalorder %s25, 0
      %p268 = por %p266, %p267
      %p269 = scmp.ne.s32.totalorder %s257, %s258
      %p270 = scmp.eq.s32.totalorder %s26, 3
      %p271 = por %p269, %p270
      %p273 = scmp.ne.s32.totalorder %s258, %s272
      %p274 = scmp.eq.s32.totalorder %s26, 0
      %p275 = por %p273, %p274
      %s276 = ssub.s32 %s27, %s39
      %s277 = ssub.s32 %s28, %s35
      %s278 = sor.u32 %s276, %s277
      %p279 = scmp.eq.s32.totalorder %s278, 0
      %s281 = sadd.s32 %s280, 1
      %s282 = scalar_select %p279, %s280, %s281
      %p285 = pneg %p279
      %p286 = scmp.eq.s32.totalorder %s20, 3
      %p287 = por %p285, %p286
      %p288 = scmp.ne.s32.totalorder %s280, %s283
      %p289 = scmp.eq.s32.totalorder %s20, 0
      %p290 = por %p288, %p289
      %p291 = scmp.ne.s32.totalorder %s280, %s283
      %p292 = scmp.eq.s32.totalorder %s25, 3
      %p293 = por %p291, %p292
      %p294 = scmp.ne.s32.totalorder %s283, %s284
      %p295 = scmp.eq.s32.totalorder %s25, 0
      %p296 = por %p294, %p295
      %p297 = scmp.ne.s32.totalorder %s283, %s284
      %p298 = scmp.eq.s32.totalorder %s26, 3
      %p299 = por %p297, %p298
      %p301 = scmp.ne.s32.totalorder %s284, %s300
      %p302 = scmp.eq.s32.totalorder %s26, 0
      %p303 = por %p301, %p302
      %p304 = scmp.le.s32.totalorder 1, %s20
      %p305 = scmp.lt.s32.totalorder %s20, 5
      %p306 = pnand %p304, %p305
      %p307 = pneg %p306
      // Predicated region
      $region9: #{tpu_custom_call.1} parent=5 // pred_check
        _
      $region10: #{tpu_custom_call.1} parent=5 // pred_check_branch
        %309 = sbr.rel (%p306) target = $region12
      $region11: #{tpu_custom_call.1} parent=5 // pred_region
        %s310 = ssub.s32 %s20, 1
        // Predicated region
        $region13: #{tpu_custom_call.1} parent=11 // pred_check
          %p311 = pneg %p79
        $region14: #{tpu_custom_call.1} parent=11 // pred_check_branch
          %313 = sbr.rel (%p311) target = $region16
        $region15: #{tpu_custom_call.1} parent=11 // pred_region
          _
        $region16: #{tpu_custom_call.1} parent=11 // pred_fallthru
          _
        // Predicated region
        $region17: #{tpu_custom_call.1} parent=11 // pred_check
          %p314 = pneg %p100
        $region18: #{tpu_custom_call.1} parent=11 // pred_check_branch
          %316 = sbr.rel (%p314) target = $region20
        $region19: #{tpu_custom_call.1} parent=11 // pred_region
          _
        $region20: #{tpu_custom_call.1} parent=11 // pred_fallthru
          _
        // Predicated region
        $region21: #{tpu_custom_call.1} parent=11 // pred_check
          %p317 = pneg %p121
        $region22: #{tpu_custom_call.1} parent=11 // pred_check_branch
          %319 = sbr.rel (%p317) target = $region24
        $region23: #{tpu_custom_call.1} parent=11 // pred_region
          _
        $region24: #{tpu_custom_call.1} parent=11 // pred_fallthru
          _
        // Predicated region
        $region25: #{tpu_custom_call.1} parent=11 // pred_check
          %p320 = pneg %p142
        $region26: #{tpu_custom_call.1} parent=11 // pred_check_branch
          %322 = sbr.rel (%p320) target = $region28
        $region27: #{tpu_custom_call.1} parent=11 // pred_region
          _
        $region28: #{tpu_custom_call.1} parent=11 // pred_fallthru
          _
        // Predicated region
        $region29: #{tpu_custom_call.1} parent=11 // pred_check
          %p323 = pneg %p163
        $region30: #{tpu_custom_call.1} parent=11 // pred_check_branch
          %325 = sbr.rel (%p323) target = $region32
        $region31: #{tpu_custom_call.1} parent=11 // pred_region
          _
        $region32: #{tpu_custom_call.1} parent=11 // pred_fallthru
          _
        // Predicated region
        $region33: #{tpu_custom_call.1} parent=11 // pred_check
          %p326 = pneg %p184
        $region34: #{tpu_custom_call.1} parent=11 // pred_check_branch
          %328 = sbr.rel (%p326) target = $region36
        $region35: #{tpu_custom_call.1} parent=11 // pred_region
          _
        $region36: #{tpu_custom_call.1} parent=11 // pred_fallthru
          _
        // Predicated region
        $region37: #{tpu_custom_call.1} parent=11 // pred_check
          %p329 = pneg %p205
        $region38: #{tpu_custom_call.1} parent=11 // pred_check_branch
          %331 = sbr.rel (%p329) target = $region40
        $region39: #{tpu_custom_call.1} parent=11 // pred_region
          _
        $region40: #{tpu_custom_call.1} parent=11 // pred_fallthru
          _
        // Predicated region
        $region41: #{tpu_custom_call.1} parent=11 // pred_check
          %p332 = pneg %p226
        $region42: #{tpu_custom_call.1} parent=11 // pred_check_branch
          %334 = sbr.rel (%p332) target = $region44
        $region43: #{tpu_custom_call.1} parent=11 // pred_region
          _
        $region44: #{tpu_custom_call.1} parent=11 // pred_fallthru
          _
        // Predicated region
        $region45: #{tpu_custom_call.1} parent=11 // pred_check
          %p335 = pneg %p247
        $region46: #{tpu_custom_call.1} parent=11 // pred_check_branch
          %337 = sbr.rel (%p335) target = $region48
        $region47: #{tpu_custom_call.1} parent=11 // pred_region
          _
        $region48: #{tpu_custom_call.1} parent=11 // pred_fallthru
          _
        // Predicated region
        $region49: #{tpu_custom_call.1} parent=11 // pred_check
          %p338 = pneg %p268
        $region50: #{tpu_custom_call.1} parent=11 // pred_check_branch
          %340 = sbr.rel (%p338) target = $region52
        $region51: #{tpu_custom_call.1} parent=11 // pred_region
          _
        $region52: #{tpu_custom_call.1} parent=11 // pred_fallthru
          _
      $region12: #{tpu_custom_call.1} parent=5 // pred_fallthru
        _
      %p341 = scmp.lt.s32.totalorder %s20, 4
      // Predicated region
      $region53: #{tpu_custom_call.1} parent=5 // pred_check
        %p342 = pneg %p341
      $region54: #{tpu_custom_call.1} parent=5 // pred_check_branch
        %344 = sbr.rel (%p342) target = $region56
      $region55: #{tpu_custom_call.1} parent=5 // pred_region
        // Predicated region
        $region57: #{tpu_custom_call.1} parent=55 // pred_check
          %p345 = pneg %p52
        $region58: #{tpu_custom_call.1} parent=55 // pred_check_branch
          %347 = sbr.rel (%p345) target = $region60
        $region59: #{tpu_custom_call.1} parent=55 // pred_region
          %p348 = scmp.lt.s32.totalorder %s27, 1
          %s349 = scalar_select %p348, %s27, 1
          %s350 = smul.addr %s349, 2
          %s351 = smul.addr %s350, 8
          %s352 = scalar_lea.vmem %s0, %s351
        $region60: #{tpu_custom_call.1} parent=55 // pred_fallthru
          _
      $region56: #{tpu_custom_call.1} parent=5 // pred_fallthru
        _
      %p353 = scmp.le.s32.totalorder 1, %s20
      %p354 = scmp.lt.s32.totalorder %s20, 5
      %p355 = pnand %p353, %p354
      %p356 = pneg %p355
      // Predicated region
      $region61: #{tpu_custom_call.1} parent=5 // pred_check
        _
      $region62: #{tpu_custom_call.1} parent=5 // pred_check_branch
        %358 = sbr.rel (%p355) target = $region64
      $region63: #{tpu_custom_call.1} parent=5 // pred_region
        %s359 = ssub.s32 %s20, 1
        %p360 = scmp.lt.s32.totalorder %s29, 1
        %s361 = scalar_select %p360, %s29, 1
        %s362 = smul.addr %s361, 2
        %s363 = smul.addr %s362, 8
        %s364 = scalar_lea.vmem %s0, %s363
        %p365 = pneg %p58
        %p366 = pneg %p55
        %p367 = pneg %p79
        %p368 = pneg %p76
        %p369 = pneg %p100
        %p370 = pneg %p97
        %p371 = pneg %p121
        %p372 = pneg %p118
        %p373 = pneg %p142
        %p374 = pneg %p139
        %p375 = pneg %p163
        %p376 = pneg %p160
        %p377 = pneg %p184
        %p378 = pneg %p181
        %p379 = pneg %p205
        %p380 = pneg %p202
        %p381 = pneg %p226
        %p382 = pneg %p223
        %p383 = pneg %p247
        %p384 = pneg %p244
        %p385 = pneg %p268
        %p386 = pneg %p265
        %p387 = pneg %p296
        %p388 = pneg %p293
        %s389 = sand.u32 %s283, 1
        %s390 = scalar_lea.sflag [#allocation5], %s389
        %s391 = sand.u32 %s283, 1
        %s392 = smul.addr %s391, 8
        %s393 = scalar_lea.vmem [#allocation4], %s392
        %p394 = scmp.lt.s32.totalorder %s29, 1
        %s395 = scalar_select %p394, %s29, 1
        %s396 = smul.addr %s395, 2
        %s397 = smul.addr %s396, 8
        %s398 = scalar_lea.vmem %s0, %s397
        %s399 = smul.u32 %s30, 8
        %v400 = vld [vmem:[%s1] sm:$0x1]
        %v401 = vld [vmem:[%s2] sm:$0x1]
        %p402 = scmp.eq.s32.totalorder %s30, 0
        // Predicated region
        $region65: #{tpu_custom_call.1} parent=63 // pred_check
          %p403 = pneg %p402
        $region66: #{tpu_custom_call.1} parent=63 // pred_check_branch
          %405 = sbr.rel (%p403) target = $region68
        $region67: #{tpu_custom_call.1} parent=63 // pred_region
          %v406 = vld [vmem:[%s398] sm:$0xff]
          %v407 = vld [vmem:[%s398 + $0x8] sm:$0xff]
          %vm408 = vcmask 261120
          %v409 = vsel %vm408, %v406, 0.0
          %410 = vadd.xlane.f32.xlu0 %v409
          %v411 = vpop.xlane.xlu0 %410
          %v412 = vsel %vm408, %v407, 0.0
          %413 = vadd.xlane.f32.xlu0 %v412
          %v414 = vpop.xlane.xlu0 %413
          %v415 = vrcp.pop 32.0
          %v416 = vmul.f32 %v411, %v415
          %v417 = vmul.f32 %v414, %v415
          %v418 = vsub.f32 %v406, %v416
          %v419 = vsub.f32 %v407, %v417
          %v420 = vmul.f32 %v418, %v418
          %v421 = vmul.f32 %v419, %v419
          %v422 = vsel %vm408, %v420, 0.0
          %423 = vadd.xlane.f32.xlu0 %v422
          %v424 = vpop.xlane.xlu0 %423
          %v425 = vsel %vm408, %v421, 0.0
          %426 = vadd.xlane.f32.xlu0 %v425
          %v427 = vpop.xlane.xlu0 %426
          %v428 = vrcp.pop 31.0
          %v429 = vmul.f32 %v424, %v428
          %v430 = vmul.f32 %v427, %v428
          %v431 = vadd.f32 %v429, 1e-05
          %v432 = vadd.f32 %v430, 1e-05
          %v433 = vrsqrt.pop %v431
          %v434 = vmul.f32 %v431, %v433
          %vm435 = vcmp.eq.f32.partialorder %v431, inf
          %v436 = vsel %vm435, %v431, %v434
          %vm437 = vcmp.eq.f32.partialorder %v431, 0.0
          %v438 = vand.u32 %v431, 2147483648
          %v439 = vsel %vm437, %v438, %v436
          %v440 = vrsqrt.pop %v432
          %v441 = vmul.f32 %v432, %v440
          %vm442 = vcmp.eq.f32.partialorder %v432, inf
          %v443 = vsel %vm442, %v432, %v441
          %vm444 = vcmp.eq.f32.partialorder %v432, 0.0
          %v445 = vand.u32 %v432, 2147483648
          %v446 = vsel %vm444, %v445, %v443
          %v447 = vrcp.pop %v439
          %v448 = vmul.f32 %v418, %v447
          %v449 = vrcp.pop %v446
          %v450 = vmul.f32 %v419, %v449
          %v452 = vlaneseq
          %v453 = vshrl.u32 %v452, 7
          %v454 = vsub.s32 0, %v453
          %v455 = vrot.slane %v400, %v454
          %v457 = vmul.f32 %v455, %v448
          %v458 = vmul.f32 %v455, %v450
          %v460 = vlaneseq
          %v461 = vshrl.u32 %v460, 7
          %v462 = vsub.s32 0, %v461
          %v463 = vrot.slane %v401, %v462
          %v465 = vadd.f32 %v457, %v463
          %v466 = vadd.f32 %v458, %v463
          %v467 = vld [vmem:[%s4] sm:$0xff]
          %v468 = vld [vmem:[%s4 + $0x8] sm:$0xff]
          %v469 = vld [vmem:[%s4 + $0x10] sm:$0xff]
          %v470 = vld [vmem:[%s4 + $0x18] sm:$0xff]
          %v472 = vsel %vm408, %v465, 0
          %v475 = vsel %vm408, %v466, 0
          %477 = vmatprep.subr.mxu0 0.0
          %478 = vmatpush1.msra.mxu0 %v467
          %479 = vmatprep.subr.mxu0 0.0
          %480 = vmatpush1.msra.mxu0 %v468
          %481 = vmatprep.subr.mxu0 0.0
          %482 = vmatpush1.msra.mxu0 %v469
          %483 = vmatprep.subr.mxu0 0.0
          %484 = vmatpush1.msra.mxu0 %v470
          %485 = vmatprep.subr.mxu0 0.0
          %486 = vmatpush1.msra.mxu0 0.0
          %487 = vmatprep.subr.mxu0 0.0
          %488 = vmatpush1.msra.mxu0 0.0
          %489 = vmatprep.subr.mxu0 0.0
          %490 = vmatpush1.msra.mxu0 0.0
          %491 = vmatprep.subr.mxu0 0.0
          %492 = vmatpush1.msra.mxu0 0.0
          %493 = vmatprep.subr.mxu0 0.0
          %494 = vmatpush1.msra.mxu0 0.0
          %495 = vmatprep.subr.mxu0 0.0
          %496 = vmatpush1.msra.mxu0 0.0
          %497 = vmatprep.subr.mxu0 0.0
          %498 = vmatpush1.msra.mxu0 0.0
          %499 = vmatprep.subr.mxu0 0.0
          %500 = vmatpush1.msra.mxu0 0.0
          %501 = vmatprep.subr.mxu0 0.0
          %502 = vmatpush1.msra.mxu0 0.0
          %503 = vmatprep.subr.mxu0 0.0
          %504 = vmatpush1.msra.mxu0 0.0
          %505 = vmatprep.subr.mxu0 0.0
          %506 = vmatpush1.msra.mxu0 0.0
          %507 = vmatprep.subr.mxu0 0.0
          %508 = vmatpush1.msra.mxu0 0.0
          %509 = vmatprep.subr.mxu0 0.0
          %510 = vmatpush1.msra.mxu0 0.0
          %511 = vmatprep.subr.mxu0 0.0
          %512 = vmatpush1.msra.mxu0 0.0
          %513 = vmatprep.subr.mxu0 0.0
          %514 = vmatpush1.msra.mxu0 0.0
          %515 = vmatprep.subr.mxu0 0.0
          %516 = vmatpush1.msra.mxu0 0.0
          %517 = vmatprep.subr.mxu0 0.0
          %518 = vmatpush1.msra.mxu0 0.0
          %519 = vmatprep.subr.mxu0 0.0
          %520 = vmatpush1.msra.mxu0 0.0
          %521 = vmatprep.subr.mxu0 0.0
          %522 = vmatpush1.msra.mxu0 0.0
          %523 = vmatprep.subr.mxu0 0.0
          %524 = vmatpush1.msra.mxu0 0.0
          %525 = vmatprep.subr.mxu0 0.0
          %526 = vmatpush1.msra.mxu0 0.0
          %527 = vmatprep.subr.mxu0 0.0
          %528 = vmatpush1.msra.mxu0 0.0
          %529 = vmatprep.subr.mxu0 0.0
          %530 = vmatpush1.msra.mxu0 0.0
          %531 = vmatprep.subr.mxu0 0.0
          %532 = vmatpush1.msra.mxu0 0.0
          %533 = vmatprep.subr.mxu0 0.0
          %534 = vmatpush1.msra.mxu0 0.0
          %535 = vmatprep.subr.mxu0 0.0
          %536 = vmatpush1.msra.mxu0 0.0
          %537 = vmatprep.subr.mxu0 0.0
          %538 = vmatpush1.msra.mxu0 0.0
          %539 = vmatprep.subr.mxu0 0.0
          %540 = vmatpush1.msra.mxu0 0.0
          %541 = vmatprep.mubr.f32.mxu0 0.0
          %542 = vmatmul.mubr.f32.gmra.mrb[0].mxu0 %v472
          %v543 = vpop.f32.mrb[0].mxu0
          %v544 = vadd.f32 0.0, %v543
          %v545 = vpop.f32.mrb[0].mxu0
          %546 = vmatprep.mubr.f32.mxu0 0.0
          %547 = vmatmul.mubr.f32.gmra.mrb[0].mxu0 %v475
          %v548 = vpop.f32.mrb[0].mxu0
          %v549 = vadd.f32 0.0, %v548
          %v550 = vpop.f32.mrb[0].mxu0
          %551 = vdwg.mxu0
          %552 = vxpose.xlu0.b32.start [1/16] %v544, 128
          %553 = vxpose.xlu0.b32.cont [2/16] %v549, 128
          %554 = vxpose.xlu0.b32.cont [3/16] 0.0, 128
          %555 = vxpose.xlu0.b32.cont [4/16] 0.0, 128
          %556 = vxpose.xlu0.b32.cont [5/16] 0.0, 128
          %557 = vxpose.xlu0.b32.cont [6/16] 0.0, 128
          %558 = vxpose.xlu0.b32.cont [7/16] 0.0, 128
          %559 = vxpose.xlu0.b32.cont [8/16] 0.0, 128
          %560 = vxpose.xlu0.b32.cont [9/16] 0.0, 128
          %561 = vxpose.xlu0.b32.cont [10/16] 0.0, 128
          %562 = vxpose.xlu0.b32.cont [11/16] 0.0, 128
          %563 = vxpose.xlu0.b32.cont [12/16] 0.0, 128
          %564 = vxpose.xlu0.b32.cont [13/16] 0.0, 128
          %565 = vxpose.xlu0.b32.cont [14/16] 0.0, 128
          %566 = vxpose.xlu0.b32.cont [15/16] 0.0, 128
          %567 = vxpose.xlu0.b32.end [16/16] 0.0, 128
          %v568 = vpop.trf.xlu0
          %v569 = vpop.trf.xlu0
          %v570 = vpop.trf.xlu0
          %v571 = vpop.trf.xlu0
          %v572 = vpop.trf.xlu0
          %v573 = vpop.trf.xlu0
          %v574 = vpop.trf.xlu0
          %v575 = vpop.trf.xlu0
          %v576 = vpop.trf.xlu0
          %v577 = vpop.trf.xlu0
          %v578 = vpop.trf.xlu0
          %v579 = vpop.trf.xlu0
          %v580 = vpop.trf.xlu0
          %v581 = vpop.trf.xlu0
          %v582 = vpop.trf.xlu0
          %v583 = vpop.trf.xlu0
          %vm584 = vcmask 130048
          %585 = vst.msk [vmem:[#allocation2] sm:$0xff] %vm584, %v568
          %588 = vrot.lane.b32.xlu0 %v544, 96
          %v589 = vpop.permute.xlu0 %588
          %590 = vrot.lane.b32.xlu0 %v549, 96
          %v591 = vpop.permute.xlu0 %590
          %vm594 = vcmask 64512
          %595 = vst.msk [vmem:[#allocation3] sm:$0xff] %vm594, %v589
          %596 = vst.msk [vmem:[#allocation3 + $0x8] sm:$0xff] %vm594, %v591
          %597 = vrot.lane.b32.xlu0 %v544, 120
          %v598 = vpop.permute.xlu0 %597
          %599 = vrot.lane.b32.xlu0 %v549, 120
          %v600 = vpop.permute.xlu0 %599
          %603 = vxpose.xlu0.b32.start [1/16] %v598, 128
          %604 = vxpose.xlu0.b32.cont [2/16] %v600, 128
          %605 = vxpose.xlu0.b32.cont [3/16] 0.0, 128
          %606 = vxpose.xlu0.b32.cont [4/16] 0.0, 128
          %607 = vxpose.xlu0.b32.cont [5/16] 0.0, 128
          %608 = vxpose.xlu0.b32.cont [6/16] 0.0, 128
          %609 = vxpose.xlu0.b32.cont [7/16] 0.0, 128
          %610 = vxpose.xlu0.b32.cont [8/16] 0.0, 128
          %611 = vxpose.xlu0.b32.cont [9/16] 0.0, 128
          %612 = vxpose.xlu0.b32.cont [10/16] 0.0, 128
          %613 = vxpose.xlu0.b32.cont [11/16] 0.0, 128
          %614 = vxpose.xlu0.b32.cont [12/16] 0.0, 128
          %615 = vxpose.xlu0.b32.cont [13/16] 0.0, 128
          %616 = vxpose.xlu0.b32.cont [14/16] 0.0, 128
          %617 = vxpose.xlu0.b32.cont [15/16] 0.0, 128
          %618 = vxpose.xlu0.b32.end [16/16] 0.0, 128
          %v619 = vpop.trf.xlu0
          %v620 = vpop.trf.xlu0
          %v621 = vpop.trf.xlu0
          %v622 = vpop.trf.xlu0
          %v623 = vpop.trf.xlu0
          %v624 = vpop.trf.xlu0
          %v625 = vpop.trf.xlu0
          %v626 = vpop.trf.xlu0
          %v627 = vpop.trf.xlu0
          %v628 = vpop.trf.xlu0
          %v629 = vpop.trf.xlu0
          %v630 = vpop.trf.xlu0
          %v631 = vpop.trf.xlu0
          %v632 = vpop.trf.xlu0
          %v633 = vpop.trf.xlu0
          %v634 = vpop.trf.xlu0
          %s635 = scalar_lea.vmem [#allocation2], 8
          %636 = vst.msk [vmem:[%s635] sm:$0xff] %vm584, %v619
          %637 = vrot.lane.b32.xlu0 %v544, 88
          %v638 = vpop.permute.xlu0 %637
          %639 = vrot.lane.b32.xlu0 %v549, 88
          %v640 = vpop.permute.xlu0 %639
          %s643 = scalar_lea.vmem [#allocation3], 16
          %644 = vst.msk [vmem:[%s643] sm:$0xff] %vm594, %v638
          %645 = vst.msk [vmem:[%s643 + $0x8] sm:$0xff] %vm594, %v640
          %646 = vrot.lane.b32.xlu0 %v544, 112
          %v647 = vpop.permute.xlu0 %646
          %648 = vrot.lane.b32.xlu0 %v549, 112
          %v649 = vpop.permute.xlu0 %648
          %652 = vxpose.xlu0.b32.start [1/16] %v647, 128
          %653 = vxpose.xlu0.b32.cont [2/16] %v649, 128
          %654 = vxpose.xlu0.b32.cont [3/16] 0.0, 128
          %655 = vxpose.xlu0.b32.cont [4/16] 0.0, 128
          %656 = vxpose.xlu0.b32.cont [5/16] 0.0, 128
          %657 = vxpose.xlu0.b32.cont [6/16] 0.0, 128
          %658 = vxpose.xlu0.b32.cont [7/16] 0.0, 128
          %659 = vxpose.xlu0.b32.cont [8/16] 0.0, 128
          %660 = vxpose.xlu0.b32.cont [9/16] 0.0, 128
          %661 = vxpose.xlu0.b32.cont [10/16] 0.0, 128
          %662 = vxpose.xlu0.b32.cont [11/16] 0.0, 128
          %663 = vxpose.xlu0.b32.cont [12/16] 0.0, 128
          %664 = vxpose.xlu0.b32.cont [13/16] 0.0, 128
          %665 = vxpose.xlu0.b32.cont [14/16] 0.0, 128
          %666 = vxpose.xlu0.b32.cont [15/16] 0.0, 128
          %667 = vxpose.xlu0.b32.end [16/16] 0.0, 128
          %v668 = vpop.trf.xlu0
          %v669 = vpop.trf.xlu0
          %v670 = vpop.trf.xlu0
          %v671 = vpop.trf.xlu0
          %v672 = vpop.trf.xlu0
          %v673 = vpop.trf.xlu0
          %v674 = vpop.trf.xlu0
          %v675 = vpop.trf.xlu0
          %v676 = vpop.trf.xlu0
          %v677 = vpop.trf.xlu0
          %v678 = vpop.trf.xlu0
          %v679 = vpop.trf.xlu0
          %v680 = vpop.trf.xlu0
          %v681 = vpop.trf.xlu0
          %v682 = vpop.trf.xlu0
          %v683 = vpop.trf.xlu0
          %s684 = scalar_lea.vmem [#allocation2], 16
          %685 = vst.msk [vmem:[%s684] sm:$0xff] %vm584, %v668
          %686 = vrot.lane.b32.xlu0 %v544, 80
          %v687 = vpop.permute.xlu0 %686
          %688 = vrot.lane.b32.xlu0 %v549, 80
          %v689 = vpop.permute.xlu0 %688
          %s692 = scalar_lea.vmem [#allocation3], 32
          %693 = vst.msk [vmem:[%s692] sm:$0xff] %vm594, %v687
          %694 = vst.msk [vmem:[%s692 + $0x8] sm:$0xff] %vm594, %v689
          %695 = vrot.lane.b32.xlu0 %v544, 104
          %v696 = vpop.permute.xlu0 %695
          %697 = vrot.lane.b32.xlu0 %v549, 104
          %v698 = vpop.permute.xlu0 %697
          %701 = vxpose.xlu0.b32.start [1/16] %v696, 128
          %702 = vxpose.xlu0.b32.cont [2/16] %v698, 128
          %703 = vxpose.xlu0.b32.cont [3/16] 0.0, 128
          %704 = vxpose.xlu0.b32.cont [4/16] 0.0, 128
          %705 = vxpose.xlu0.b32.cont [5/16] 0.0, 128
          %706 = vxpose.xlu0.b32.cont [6/16] 0.0, 128
          %707 = vxpose.xlu0.b32.cont [7/16] 0.0, 128
          %708 = vxpose.xlu0.b32.cont [8/16] 0.0, 128
          %709 = vxpose.xlu0.b32.cont [9/16] 0.0, 128
          %710 = vxpose.xlu0.b32.cont [10/16] 0.0, 128
          %711 = vxpose.xlu0.b32.cont [11/16] 0.0, 128
          %712 = vxpose.xlu0.b32.cont [12/16] 0.0, 128
          %713 = vxpose.xlu0.b32.cont [13/16] 0.0, 128
          %714 = vxpose.xlu0.b32.cont [14/16] 0.0, 128
          %715 = vxpose.xlu0.b32.cont [15/16] 0.0, 128
          %716 = vxpose.xlu0.b32.end [16/16] 0.0, 128
          %v717 = vpop.trf.xlu0
          %v718 = vpop.trf.xlu0
          %v719 = vpop.trf.xlu0
          %v720 = vpop.trf.xlu0
          %v721 = vpop.trf.xlu0
          %v722 = vpop.trf.xlu0
          %v723 = vpop.trf.xlu0
          %v724 = vpop.trf.xlu0
          %v725 = vpop.trf.xlu0
          %v726 = vpop.trf.xlu0
          %v727 = vpop.trf.xlu0
          %v728 = vpop.trf.xlu0
          %v729 = vpop.trf.xlu0
          %v730 = vpop.trf.xlu0
          %v731 = vpop.trf.xlu0
          %v732 = vpop.trf.xlu0
          %s733 = scalar_lea.vmem [#allocation2], 24
          %734 = vst.msk [vmem:[%s733] sm:$0xff] %vm584, %v717
          %735 = vrot.lane.b32.xlu0 %v544, 72
          %v736 = vpop.permute.xlu0 %735
          %737 = vrot.lane.b32.xlu0 %v549, 72
          %v738 = vpop.permute.xlu0 %737
          %s741 = scalar_lea.vmem [#allocation3], 48
          %742 = vst.msk [vmem:[%s741] sm:$0xff] %vm594, %v736
          %743 = vst.msk [vmem:[%s741 + $0x8] sm:$0xff] %vm594, %v738
        $region68: #{tpu_custom_call.1} parent=63 // pred_fallthru
          _
        %s744 = scalar_lea.vmem %s398, %s399
        %v745 = vld [vmem:[%s744] sm:$0xff]
        %vm746 = vcmask 261120
        %v747 = vsel %vm746, %v745, 0.0
        %748 = vadd.xlane.f32.xlu0 %v747
        %v749 = vpop.xlane.xlu0 %748
        %v750 = vrcp.pop 32.0
        %v751 = vmul.f32 %v749, %v750
        %v752 = vsub.f32 %v745, %v751
        %v753 = vmul.f32 %v752, %v752
        %v754 = vsel %vm746, %v753, 0.0
        %755 = vadd.xlane.f32.xlu0 %v754
        %v756 = vpop.xlane.xlu0 %755
        %v757 = vrcp.pop 31.0
        %v758 = vmul.f32 %v756, %v757
        %v759 = vadd.f32 %v758, 1e-05
        %v760 = vrsqrt.pop %v759
        %v761 = vmul.f32 %v759, %v760
        %vm762 = vcmp.eq.f32.partialorder %v759, inf
        %v763 = vsel %vm762, %v759, %v761
        %vm764 = vcmp.eq.f32.partialorder %v759, 0.0
        %v765 = vand.u32 %v759, 2147483648
        %v766 = vsel %vm764, %v765, %v763
        %v767 = vrcp.pop %v766
        %v768 = vmul.f32 %v752, %v767
        %v770 = vlaneseq
        %v771 = vshrl.u32 %v770, 7
        %v772 = vsub.s32 0, %v771
        %v773 = vrot.slane %v400, %v772
        %v775 = vmul.f32 %v773, %v768
        %v777 = vlaneseq
        %v778 = vshrl.u32 %v777, 7
        %v779 = vsub.s32 0, %v778
        %v780 = vrot.slane %v401, %v779
        %v782 = vadd.f32 %v775, %v780
        %v783 = vmul.f32 %v782, 0.35355338
        %v784 = vld [vmem:[%s3] sm:$0xff]
        %v785 = vld [vmem:[%s3 + $0x8] sm:$0xff]
        %v786 = vld [vmem:[%s3 + $0x10] sm:$0xff]
        %v787 = vld [vmem:[%s3 + $0x18] sm:$0xff]
        %v789 = vsel %vm746, %v783, 0
        %791 = vmatprep.subr.mxu0 0.0
        %792 = vmatpush1.msra.mxu0 %v784
        %793 = vmatprep.subr.mxu0 0.0
        %794 = vmatpush1.msra.mxu0 %v785
        %795 = vmatprep.subr.mxu0 0.0
        %796 = vmatpush1.msra.mxu0 %v786
        %797 = vmatprep.subr.mxu0 0.0
        %798 = vmatpush1.msra.mxu0 %v787
        %799 = vmatprep.subr.mxu0 0.0
        %800 = vmatpush1.msra.mxu0 0.0
        %801 = vmatprep.subr.mxu0 0.0
        %802 = vmatpush1.msra.mxu0 0.0
        %803 = vmatprep.subr.mxu0 0.0
        %804 = vmatpush1.msra.mxu0 0.0
        %805 = vmatprep.subr.mxu0 0.0
        %806 = vmatpush1.msra.mxu0 0.0
        %807 = vmatprep.subr.mxu0 0.0
        %808 = vmatpush1.msra.mxu0 0.0
        %809 = vmatprep.subr.mxu0 0.0
        %810 = vmatpush1.msra.mxu0 0.0
        %811 = vmatprep.subr.mxu0 0.0
        %812 = vmatpush1.msra.mxu0 0.0
        %813 = vmatprep.subr.mxu0 0.0
        %814 = vmatpush1.msra.mxu0 0.0
        %815 = vmatprep.subr.mxu0 0.0
        %816 = vmatpush1.msra.mxu0 0.0
        %817 = vmatprep.subr.mxu0 0.0
        %818 = vmatpush1.msra.mxu0 0.0
        %819 = vmatprep.subr.mxu0 0.0
        %820 = vmatpush1.msra.mxu0 0.0
        %821 = vmatprep.subr.mxu0 0.0
        %822 = vmatpush1.msra.mxu0 0.0
        %823 = vmatprep.subr.mxu0 0.0
        %824 = vmatpush1.msra.mxu0 0.0
        %825 = vmatprep.subr.mxu0 0.0
        %826 = vmatpush1.msra.mxu0 0.0
        %827 = vmatprep.subr.mxu0 0.0
        %828 = vmatpush1.msra.mxu0 0.0
        %829 = vmatprep.subr.mxu0 0.0
        %830 = vmatpush1.msra.mxu0 0.0
        %831 = vmatprep.subr.mxu0 0.0
        %832 = vmatpush1.msra.mxu0 0.0
        %833 = vmatprep.subr.mxu0 0.0
        %834 = vmatpush1.msra.mxu0 0.0
        %835 = vmatprep.subr.mxu0 0.0
        %836 = vmatpush1.msra.mxu0 0.0
        %837 = vmatprep.subr.mxu0 0.0
        %838 = vmatpush1.msra.mxu0 0.0
        %839 = vmatprep.subr.mxu0 0.0
        %840 = vmatpush1.msra.mxu0 0.0
        %841 = vmatprep.subr.mxu0 0.0
        %842 = vmatpush1.msra.mxu0 0.0
        %843 = vmatprep.subr.mxu0 0.0
        %844 = vmatpush1.msra.mxu0 0.0
        %845 = vmatprep.subr.mxu0 0.0
        %846 = vmatpush1.msra.mxu0 0.0
        %847 = vmatprep.subr.mxu0 0.0
        %848 = vmatpush1.msra.mxu0 0.0
        %849 = vmatprep.subr.mxu0 0.0
        %850 = vmatpush1.msra.mxu0 0.0
        %851 = vmatprep.subr.mxu0 0.0
        %852 = vmatpush1.msra.mxu0 0.0
        %853 = vmatprep.subr.mxu0 0.0
        %854 = vmatpush1.msra.mxu0 0.0
        %855 = vmatprep.mubr.f32.mxu0 0.0
        %856 = vmatmul.mubr.f32.gmra.mrb[0].mxu0 %v789
        %v857 = vpop.f32.mrb[0].mxu0
        %v858 = vadd.f32 0.0, %v857
        %v859 = vpop.f32.mrb[0].mxu0
        %860 = vdwg.mxu0
        %v861 = vlaneseq
        %v862 = vshrl.u32 %v861, 7
        %v863 = vstv %s399
        %v864 = vadd.s32 %v863, %v862
        %v865 = vlaneseq
        %v866 = vand.u32 %v865, 127
        %vm867 = vcmp.gt.s32.totalorder %v866, %v864
        %v868 = vld [vmem:[#allocation2] sm:$0xff]
        %vm869 = vcmask 64512
        %v871 = vsel %vm869, %v858, 0
        %873 = vmatprep.subr.mxu0 0.0
        %874 = vmatpush1.msra.mxu0 %v868
        %875 = vmatprep.subr.mxu0 0.0
        %876 = vmatpush1.msra.mxu0 0.0
        %877 = vmatprep.subr.mxu0 0.0
        %878 = vmatpush1.msra.mxu0 0.0
        %879 = vmatprep.subr.mxu0 0.0
        %880 = vmatpush1.msra.mxu0 0.0
        %881 = vmatprep.subr.mxu0 0.0
        %882 = vmatpush1.msra.mxu0 0.0
        %883 = vmatprep.subr.mxu0 0.0
        %884 = vmatpush1.msra.mxu0 0.0
        %885 = vmatprep.subr.mxu0 0.0
        %886 = vmatpush1.msra.mxu0 0.0
        %887 = vmatprep.subr.mxu0 0.0
        %888 = vmatpush1.msra.mxu0 0.0
        %889 = vmatprep.subr.mxu0 0.0
        %890 = vmatpush1.msra.mxu0 0.0
        %891 = vmatprep.subr.mxu0 0.0
        %892 = vmatpush1.msra.mxu0 0.0
        %893 = vmatprep.subr.mxu0 0.0
        %894 = vmatpush1.msra.mxu0 0.0
        %895 = vmatprep.subr.mxu0 0.0
        %896 = vmatpush1.msra.mxu0 0.0
        %897 = vmatprep.subr.mxu0 0.0
        %898 = vmatpush1.msra.mxu0 0.0
        %899 = vmatprep.subr.mxu0 0.0
        %900 = vmatpush1.msra.mxu0 0.0
        %901 = vmatprep.subr.mxu0 0.0
        %902 = vmatpush1.msra.mxu0 0.0
        %903 = vmatprep.subr.mxu0 0.0
        %904 = vmatpush1.msra.mxu0 0.0
        %905 = vmatprep.subr.mxu0 0.0
        %906 = vmatpush1.msra.mxu0 0.0
        %907 = vmatprep.subr.mxu0 0.0
        %908 = vmatpush1.msra.mxu0 0.0
        %909 = vmatprep.subr.mxu0 0.0
        %910 = vmatpush1.msra.mxu0 0.0
        %911 = vmatprep.subr.mxu0 0.0
        %912 = vmatpush1.msra.mxu0 0.0
        %913 = vmatprep.subr.mxu0 0.0
        %914 = vmatpush1.msra.mxu0 0.0
        %915 = vmatprep.subr.mxu0 0.0
        %916 = vmatpush1.msra.mxu0 0.0
        %917 = vmatprep.subr.mxu0 0.0
        %918 = vmatpush1.msra.mxu0 0.0
        %919 = vmatprep.subr.mxu0 0.0
        %920 = vmatpush1.msra.mxu0 0.0
        %921 = vmatprep.subr.mxu0 0.0
        %922 = vmatpush1.msra.mxu0 0.0
        %923 = vmatprep.subr.mxu0 0.0
        %924 = vmatpush1.msra.mxu0 0.0
        %925 = vmatprep.subr.mxu0 0.0
        %926 = vmatpush1.msra.mxu0 0.0
        %927 = vmatprep.subr.mxu0 0.0
        %928 = vmatpush1.msra.mxu0 0.0
        %929 = vmatprep.subr.mxu0 0.0
        %930 = vmatpush1.msra.mxu0 0.0
        %931 = vmatprep.subr.mxu0 0.0
        %932 = vmatpush1.msra.mxu0 0.0
        %933 = vmatprep.subr.mxu0 0.0
        %934 = vmatpush1.msra.mxu0 0.0
        %935 = vmatprep.subr.mxu0 0.0
        %936 = vmatpush1.msra.mxu0 0.0
        %937 = vmatprep.mubr.f32.mxu0 0.0
        %938 = vmatmul.mubr.f32.gmra.mrb[0].mxu0 %v871
        %v939 = vpop.f32.mrb[0].mxu0
        %v940 = vadd.f32 0.0, %v939
        %v941 = vpop.f32.mrb[0].mxu0
        %942 = vdwg.mxu0
        %v943 = vsel %vm867, -1.7014117e+38, %v940
        %vm944 = vcmask 130048
        %v945 = vsel %vm944, %v943, -inf
        %946 = vmax.xlane.f32.xlu0 %v945
        %v947 = vpop.xlane.xlu0 %946
        %v948 = vsub.f32 %v943, %v947
        %v949 = vmul.f32 %v948, 1.442695
        %v950 = vpow.pop %v949
        %v951 = vsel %vm944, %v950, 0.0
        %952 = vadd.xlane.f32.xlu0 %v951
        %v953 = vpop.xlane.xlu0 %952
        %v954 = vrcp.pop %v953
        %v955 = vmul.f32 %v950, %v954
        %v956 = vld [vmem:[#allocation3] sm:$0xff]
        %v957 = vld [vmem:[#allocation3 + $0x8] sm:$0xff]
        %v959 = vsel %vm944, %v955, 0
        %961 = vmatprep.subr.mxu0 0.0
        %962 = vmatpush1.msra.mxu0 %v956
        %963 = vmatprep.subr.mxu0 0.0
        %964 = vmatpush1.msra.mxu0 %v957
        %965 = vmatprep.subr.mxu0 0.0
        %966 = vmatpush1.msra.mxu0 0.0
        %967 = vmatprep.subr.mxu0 0.0
        %968 = vmatpush1.msra.mxu0 0.0
        %969 = vmatprep.subr.mxu0 0.0
        %970 = vmatpush1.msra.mxu0 0.0
        %971 = vmatprep.subr.mxu0 0.0
        %972 = vmatpush1.msra.mxu0 0.0
        %973 = vmatprep.subr.mxu0 0.0
        %974 = vmatpush1.msra.mxu0 0.0
        %975 = vmatprep.subr.mxu0 0.0
        %976 = vmatpush1.msra.mxu0 0.0
        %977 = vmatprep.subr.mxu0 0.0
        %978 = vmatpush1.msra.mxu0 0.0
        %979 = vmatprep.subr.mxu0 0.0
        %980 = vmatpush1.msra.mxu0 0.0
        %981 = vmatprep.subr.mxu0 0.0
        %982 = vmatpush1.msra.mxu0 0.0
        %983 = vmatprep.subr.mxu0 0.0
        %984 = vmatpush1.msra.mxu0 0.0
        %985 = vmatprep.subr.mxu0 0.0
        %986 = vmatpush1.msra.mxu0 0.0
        %987 = vmatprep.subr.mxu0 0.0
        %988 = vmatpush1.msra.mxu0 0.0
        %989 = vmatprep.subr.mxu0 0.0
        %990 = vmatpush1.msra.mxu0 0.0
        %991 = vmatprep.subr.mxu0 0.0
        %992 = vmatpush1.msra.mxu0 0.0
        %993 = vmatprep.subr.mxu0 0.0
        %994 = vmatpush1.msra.mxu0 0.0
        %995 = vmatprep.subr.mxu0 0.0
        %996 = vmatpush1.msra.mxu0 0.0
        %997 = vmatprep.subr.mxu0 0.0
        %998 = vmatpush1.msra.mxu0 0.0
        %999 = vmatprep.subr.mxu0 0.0
        %1000 = vmatpush1.msra.mxu0 0.0
        %1001 = vmatprep.subr.mxu0 0.0
        %1002 = vmatpush1.msra.mxu0 0.0
        %1003 = vmatprep.subr.mxu0 0.0
        %1004 = vmatpush1.msra.mxu0 0.0
        %1005 = vmatprep.subr.mxu0 0.0
        %1006 = vmatpush1.msra.mxu0 0.0
        %1007 = vmatprep.subr.mxu0 0.0
        %1008 = vmatpush1.msra.mxu0 0.0
        %1009 = vmatprep.subr.mxu0 0.0
        %1010 = vmatpush1.msra.mxu0 0.0
        %1011 = vmatprep.subr.mxu0 0.0
        %1012 = vmatpush1.msra.mxu0 0.0
        %1013 = vmatprep.subr.mxu0 0.0
        %1014 = vmatpush1.msra.mxu0 0.0
        %1015 = vmatprep.subr.mxu0 0.0
        %1016 = vmatpush1.msra.mxu0 0.0
        %1017 = vmatprep.subr.mxu0 0.0
        %1018 = vmatpush1.msra.mxu0 0.0
        %1019 = vmatprep.subr.mxu0 0.0
        %1020 = vmatpush1.msra.mxu0 0.0
        %1021 = vmatprep.subr.mxu0 0.0
        %1022 = vmatpush1.msra.mxu0 0.0
        %1023 = vmatprep.subr.mxu0 0.0
        %1024 = vmatpush1.msra.mxu0 0.0
        %1025 = vmatprep.mubr.f32.mxu0 0.0
        %1026 = vmatmul.mubr.f32.gmra.mrb[0].mxu0 %v959
        %v1027 = vpop.f32.mrb[0].mxu0
        %v1028 = vadd.f32 0.0, %v1027
        %v1029 = vpop.f32.mrb[0].mxu0
        %1030 = vdwg.mxu0
        %s1031 = scalar_lea.vmem [#allocation2], 8
        %v1032 = vld [vmem:[%s1031] sm:$0xff]
        %1033 = vrot.lane.b32.xlu0 %v858, 120
        %v1034 = vpop.permute.xlu0 %1033
        %v1035 = vsel %vm869, %v1034, 0
        %1037 = vmatprep.subr.mxu0 0.0
        %1038 = vmatpush1.msra.mxu0 %v1032
        %1039 = vmatprep.subr.mxu0 0.0
        %1040 = vmatpush1.msra.mxu0 0.0
        %1041 = vmatprep.subr.mxu0 0.0
        %1042 = vmatpush1.msra.mxu0 0.0
        %1043 = vmatprep.subr.mxu0 0.0
        %1044 = vmatpush1.msra.mxu0 0.0
        %1045 = vmatprep.subr.mxu0 0.0
        %1046 = vmatpush1.msra.mxu0 0.0
        %1047 = vmatprep.subr.mxu0 0.0
        %1048 = vmatpush1.msra.mxu0 0.0
        %1049 = vmatprep.subr.mxu0 0.0
        %1050 = vmatpush1.msra.mxu0 0.0
        %1051 = vmatprep.subr.mxu0 0.0
        %1052 = vmatpush1.msra.mxu0 0.0
        %1053 = vmatprep.subr.mxu0 0.0
        %1054 = vmatpush1.msra.mxu0 0.0
        %1055 = vmatprep.subr.mxu0 0.0
        %1056 = vmatpush1.msra.mxu0 0.0
        %1057 = vmatprep.subr.mxu0 0.0
        %1058 = vmatpush1.msra.mxu0 0.0
        %1059 = vmatprep.subr.mxu0 0.0
        %1060 = vmatpush1.msra.mxu0 0.0
        %1061 = vmatprep.subr.mxu0 0.0
        %1062 = vmatpush1.msra.mxu0 0.0
        %1063 = vmatprep.subr.mxu0 0.0
        %1064 = vmatpush1.msra.mxu0 0.0
        %1065 = vmatprep.subr.mxu0 0.0
        %1066 = vmatpush1.msra.mxu0 0.0
        %1067 = vmatprep.subr.mxu0 0.0
        %1068 = vmatpush1.msra.mxu0 0.0
        %1069 = vmatprep.subr.mxu0 0.0
        %1070 = vmatpush1.msra.mxu0 0.0
        %1071 = vmatprep.subr.mxu0 0.0
        %1072 = vmatpush1.msra.mxu0 0.0
        %1073 = vmatprep.subr.mxu0 0.0
        %1074 = vmatpush1.msra.mxu0 0.0
        %1075 = vmatprep.subr.mxu0 0.0
        %1076 = vmatpush1.msra.mxu0 0.0
        %1077 = vmatprep.subr.mxu0 0.0
        %1078 = vmatpush1.msra.mxu0 0.0
        %1079 = vmatprep.subr.mxu0 0.0
        %1080 = vmatpush1.msra.mxu0 0.0
        %1081 = vmatprep.subr.mxu0 0.0
        %1082 = vmatpush1.msra.mxu0 0.0
        %1083 = vmatprep.subr.mxu0 0.0
        %1084 = vmatpush1.msra.mxu0 0.0
        %1085 = vmatprep.subr.mxu0 0.0
        %1086 = vmatpush1.msra.mxu0 0.0
        %1087 = vmatprep.subr.mxu0 0.0
        %1088 = vmatpush1.msra.mxu0 0.0
        %1089 = vmatprep.subr.mxu0 0.0
        %1090 = vmatpush1.msra.mxu0 0.0
        %1091 = vmatprep.subr.mxu0 0.0
        %1092 = vmatpush1.msra.mxu0 0.0
        %1093 = vmatprep.subr.mxu0 0.0
        %1094 = vmatpush1.msra.mxu0 0.0
        %1095 = vmatprep.subr.mxu0 0.0
        %1096 = vmatpush1.msra.mxu0 0.0
        %1097 = vmatprep.subr.mxu0 0.0
        %1098 = vmatpush1.msra.mxu0 0.0
        %1099 = vmatprep.subr.mxu0 0.0
        %1100 = vmatpush1.msra.mxu0 0.0
        %1101 = vmatprep.mubr.f32.mxu0 0.0
        %1102 = vmatmul.mubr.f32.gmra.mrb[0].mxu0 %v1035
        %v1103 = vpop.f32.mrb[0].mxu0
        %v1104 = vadd.f32 0.0, %v1103
        %v1105 = vpop.f32.mrb[0].mxu0
        %1106 = vdwg.mxu0
        %v1107 = vsel %vm867, -1.7014117e+38, %v1104
        %v1108 = vsel %vm944, %v1107, -inf
        %1109 = vmax.xlane.f32.xlu0 %v1108
        %v1110 = vpop.xlane.xlu0 %1109
        %v1111 = vsub.f32 %v1107, %v1110
        %v1112 = vmul.f32 %v1111, 1.442695
        %v1113 = vpow.pop %v1112
        %v1114 = vsel %vm944, %v1113, 0.0
        %1115 = vadd.xlane.f32.xlu0 %v1114
        %v1116 = vpop.xlane.xlu0 %1115
        %v1117 = vrcp.pop %v1116
        %v1118 = vmul.f32 %v1113, %v1117
        %s1119 = scalar_lea.vmem [#allocation3], 16
        %v1120 = vld [vmem:[%s1119] sm:$0xff]
        %v1121 = vld [vmem:[%s1119 + $0x8] sm:$0xff]
        %v1123 = vsel %vm944, %v1118, 0
        %1125 = vmatprep.subr.mxu0 0.0
        %1126 = vmatpush1.msra.mxu0 %v1120
        %1127 = vmatprep.subr.mxu0 0.0
        %1128 = vmatpush1.msra.mxu0 %v1121
        %1129 = vmatprep.subr.mxu0 0.0
        %1130 = vmatpush1.msra.mxu0 0.0
        %1131 = vmatprep.subr.mxu0 0.0
        %1132 = vmatpush1.msra.mxu0 0.0
        %1133 = vmatprep.subr.mxu0 0.0
        %1134 = vmatpush1.msra.mxu0 0.0
        %1135 = vmatprep.subr.mxu0 0.0
        %1136 = vmatpush1.msra.mxu0 0.0
        %1137 = vmatprep.subr.mxu0 0.0
        %1138 = vmatpush1.msra.mxu0 0.0
        %1139 = vmatprep.subr.mxu0 0.0
        %1140 = vmatpush1.msra.mxu0 0.0
        %1141 = vmatprep.subr.mxu0 0.0
        %1142 = vmatpush1.msra.mxu0 0.0
        %1143 = vmatprep.subr.mxu0 0.0
        %1144 = vmatpush1.msra.mxu0 0.0
        %1145 = vmatprep.subr.mxu0 0.0
        %1146 = vmatpush1.msra.mxu0 0.0
        %1147 = vmatprep.subr.mxu0 0.0
        %1148 = vmatpush1.msra.mxu0 0.0
        %1149 = vmatprep.subr.mxu0 0.0
        %1150 = vmatpush1.msra.mxu0 0.0
        %1151 = vmatprep.subr.mxu0 0.0
        %1152 = vmatpush1.msra.mxu0 0.0
        %1153 = vmatprep.subr.mxu0 0.0
        %1154 = vmatpush1.msra.mxu0 0.0
        %1155 = vmatprep.subr.mxu0 0.0
        %1156 = vmatpush1.msra.mxu0 0.0
        %1157 = vmatprep.subr.mxu0 0.0
        %1158 = vmatpush1.msra.mxu0 0.0
        %1159 = vmatprep.subr.mxu0 0.0
        %1160 = vmatpush1.msra.mxu0 0.0
        %1161 = vmatprep.subr.mxu0 0.0
        %1162 = vmatpush1.msra.mxu0 0.0
        %1163 = vmatprep.subr.mxu0 0.0
        %1164 = vmatpush1.msra.mxu0 0.0
        %1165 = vmatprep.subr.mxu0 0.0
        %1166 = vmatpush1.msra.mxu0 0.0
        %1167 = vmatprep.subr.mxu0 0.0
        %1168 = vmatpush1.msra.mxu0 0.0
        %1169 = vmatprep.subr.mxu0 0.0
        %1170 = vmatpush1.msra.mxu0 0.0
        %1171 = vmatprep.subr.mxu0 0.0
        %1172 = vmatpush1.msra.mxu0 0.0
        %1173 = vmatprep.subr.mxu0 0.0
        %1174 = vmatpush1.msra.mxu0 0.0
        %1175 = vmatprep.subr.mxu0 0.0
        %1176 = vmatpush1.msra.mxu0 0.0
        %1177 = vmatprep.subr.mxu0 0.0
        %1178 = vmatpush1.msra.mxu0 0.0
        %1179 = vmatprep.subr.mxu0 0.0
        %1180 = vmatpush1.msra.mxu0 0.0
        %1181 = vmatprep.subr.mxu0 0.0
        %1182 = vmatpush1.msra.mxu0 0.0
        %1183 = vmatprep.subr.mxu0 0.0
        %1184 = vmatpush1.msra.mxu0 0.0
        %1185 = vmatprep.subr.mxu0 0.0
        %1186 = vmatpush1.msra.mxu0 0.0
        %1187 = vmatprep.subr.mxu0 0.0
        %1188 = vmatpush1.msra.mxu0 0.0
        %1189 = vmatprep.mubr.f32.mxu0 0.0
        %1190 = vmatmul.mubr.f32.gmra.mrb[0].mxu0 %v1123
        %v1191 = vpop.f32.mrb[0].mxu0
        %v1192 = vadd.f32 0.0, %v1191
        %v1193 = vpop.f32.mrb[0].mxu0
        %1194 = vdwg.mxu0
        %s1195 = scalar_lea.vmem [#allocation2], 16
        %v1196 = vld [vmem:[%s1195] sm:$0xff]
        %1197 = vrot.lane.b32.xlu0 %v858, 112
        %v1198 = vpop.permute.xlu0 %1197
        %v1199 = vsel %vm869, %v1198, 0
        %1201 = vmatprep.subr.mxu0 0.0
        %1202 = vmatpush1.msra.mxu0 %v1196
        %1203 = vmatprep.subr.mxu0 0.0
        %1204 = vmatpush1.msra.mxu0 0.0
        %1205 = vmatprep.subr.mxu0 0.0
        %1206 = vmatpush1.msra.mxu0 0.0
        %1207 = vmatprep.subr.mxu0 0.0
        %1208 = vmatpush1.msra.mxu0 0.0
        %1209 = vmatprep.subr.mxu0 0.0
        %1210 = vmatpush1.msra.mxu0 0.0
        %1211 = vmatprep.subr.mxu0 0.0
        %1212 = vmatpush1.msra.mxu0 0.0
        %1213 = vmatprep.subr.mxu0 0.0
        %1214 = vmatpush1.msra.mxu0 0.0
        %1215 = vmatprep.subr.mxu0 0.0
        %1216 = vmatpush1.msra.mxu0 0.0
        %1217 = vmatprep.subr.mxu0 0.0
        %1218 = vmatpush1.msra.mxu0 0.0
        %1219 = vmatprep.subr.mxu0 0.0
        %1220 = vmatpush1.msra.mxu0 0.0
        %1221 = vmatprep.subr.mxu0 0.0
        %1222 = vmatpush1.msra.mxu0 0.0
        %1223 = vmatprep.subr.mxu0 0.0
        %1224 = vmatpush1.msra.mxu0 0.0
        %1225 = vmatprep.subr.mxu0 0.0
        %1226 = vmatpush1.msra.mxu0 0.0
        %1227 = vmatprep.subr.mxu0 0.0
        %1228 = vmatpush1.msra.mxu0 0.0
        %1229 = vmatprep.subr.mxu0 0.0
        %1230 = vmatpush1.msra.mxu0 0.0
        %1231 = vmatprep.subr.mxu0 0.0
        %1232 = vmatpush1.msra.mxu0 0.0
        %1233 = vmatprep.subr.mxu0 0.0
        %1234 = vmatpush1.msra.mxu0 0.0
        %1235 = vmatprep.subr.mxu0 0.0
        %1236 = vmatpush1.msra.mxu0 0.0
        %1237 = vmatprep.subr.mxu0 0.0
        %1238 = vmatpush1.msra.mxu0 0.0
        %1239 = vmatprep.subr.mxu0 0.0
        %1240 = vmatpush1.msra.mxu0 0.0
        %1241 = vmatprep.subr.mxu0 0.0
        %1242 = vmatpush1.msra.mxu0 0.0
        %1243 = vmatprep.subr.mxu0 0.0
        %1244 = vmatpush1.msra.mxu0 0.0
        %1245 = vmatprep.subr.mxu0 0.0
        %1246 = vmatpush1.msra.mxu0 0.0
        %1247 = vmatprep.subr.mxu0 0.0
        %1248 = vmatpush1.msra.mxu0 0.0
        %1249 = vmatprep.subr.mxu0 0.0
        %1250 = vmatpush1.msra.mxu0 0.0
        %1251 = vmatprep.subr.mxu0 0.0
        %1252 = vmatpush1.msra.mxu0 0.0
        %1253 = vmatprep.subr.mxu0 0.0
        %1254 = vmatpush1.msra.mxu0 0.0
        %1255 = vmatprep.subr.mxu0 0.0
        %1256 = vmatpush1.msra.mxu0 0.0
        %1257 = vmatprep.subr.mxu0 0.0
        %1258 = vmatpush1.msra.mxu0 0.0
        %1259 = vmatprep.subr.mxu0 0.0
        %1260 = vmatpush1.msra.mxu0 0.0
        %1261 = vmatprep.subr.mxu0 0.0
        %1262 = vmatpush1.msra.mxu0 0.0
        %1263 = vmatprep.subr.mxu0 0.0
        %1264 = vmatpush1.msra.mxu0 0.0
        %1265 = vmatprep.mubr.f32.mxu0 0.0
        %1266 = vmatmul.mubr.f32.gmra.mrb[0].mxu0 %v1199
        %v1267 = vpop.f32.mrb[0].mxu0
        %v1268 = vadd.f32 0.0, %v1267
        %v1269 = vpop.f32.mrb[0].mxu0
        %1270 = vdwg.mxu0
        %v1271 = vsel %vm867, -1.7014117e+38, %v1268
        %v1272 = vsel %vm944, %v1271, -inf
        %1273 = vmax.xlane.f32.xlu0 %v1272
        %v1274 = vpop.xlane.xlu0 %1273
        %v1275 = vsub.f32 %v1271, %v1274
        %v1276 = vmul.f32 %v1275, 1.442695
        %v1277 = vpow.pop %v1276
        %v1278 = vsel %vm944, %v1277, 0.0
        %1279 = vadd.xlane.f32.xlu0 %v1278
        %v1280 = vpop.xlane.xlu0 %1279
        %v1281 = vrcp.pop %v1280
        %v1282 = vmul.f32 %v1277, %v1281
        %s1283 = scalar_lea.vmem [#allocation3], 32
        %v1284 = vld [vmem:[%s1283] sm:$0xff]
        %v1285 = vld [vmem:[%s1283 + $0x8] sm:$0xff]
        %v1287 = vsel %vm944, %v1282, 0
        %1289 = vmatprep.subr.mxu0 0.0
        %1290 = vmatpush1.msra.mxu0 %v1284
        %1291 = vmatprep.subr.mxu0 0.0
        %1292 = vmatpush1.msra.mxu0 %v1285
        %1293 = vmatprep.subr.mxu0 0.0
        %1294 = vmatpush1.msra.mxu0 0.0
        %1295 = vmatprep.subr.mxu0 0.0
        %1296 = vmatpush1.msra.mxu0 0.0
        %1297 = vmatprep.subr.mxu0 0.0
        %1298 = vmatpush1.msra.mxu0 0.0
        %1299 = vmatprep.subr.mxu0 0.0
        %1300 = vmatpush1.msra.mxu0 0.0
        %1301 = vmatprep.subr.mxu0 0.0
        %1302 = vmatpush1.msra.mxu0 0.0
        %1303 = vmatprep.subr.mxu0 0.0
        %1304 = vmatpush1.msra.mxu0 0.0
        %1305 = vmatprep.subr.mxu0 0.0
        %1306 = vmatpush1.msra.mxu0 0.0
        %1307 = vmatprep.subr.mxu0 0.0
        %1308 = vmatpush1.msra.mxu0 0.0
        %1309 = vmatprep.subr.mxu0 0.0
        %1310 = vmatpush1.msra.mxu0 0.0
        %1311 = vmatprep.subr.mxu0 0.0
        %1312 = vmatpush1.msra.mxu0 0.0
        %1313 = vmatprep.subr.mxu0 0.0
        %1314 = vmatpush1.msra.mxu0 0.0
        %1315 = vmatprep.subr.mxu0 0.0
        %1316 = vmatpush1.msra.mxu0 0.0
        %1317 = vmatprep.subr.mxu0 0.0
        %1318 = vmatpush1.msra.mxu0 0.0
        %1319 = vmatprep.subr.mxu0 0.0
        %1320 = vmatpush1.msra.mxu0 0.0
        %1321 = vmatprep.subr.mxu0 0.0
        %1322 = vmatpush1.msra.mxu0 0.0
        %1323 = vmatprep.subr.mxu0 0.0
        %1324 = vmatpush1.msra.mxu0 0.0
        %1325 = vmatprep.subr.mxu0 0.0
        %1326 = vmatpush1.msra.mxu0 0.0
        %1327 = vmatprep.subr.mxu0 0.0
        %1328 = vmatpush1.msra.mxu0 0.0
        %1329 = vmatprep.subr.mxu0 0.0
        %1330 = vmatpush1.msra.mxu0 0.0
        %1331 = vmatprep.subr.mxu0 0.0
        %1332 = vmatpush1.msra.mxu0 0.0
        %1333 = vmatprep.subr.mxu0 0.0
        %1334 = vmatpush1.msra.mxu0 0.0
        %1335 = vmatprep.subr.mxu0 0.0
        %1336 = vmatpush1.msra.mxu0 0.0
        %1337 = vmatprep.subr.mxu0 0.0
        %1338 = vmatpush1.msra.mxu0 0.0
        %1339 = vmatprep.subr.mxu0 0.0
        %1340 = vmatpush1.msra.mxu0 0.0
        %1341 = vmatprep.subr.mxu0 0.0
        %1342 = vmatpush1.msra.mxu0 0.0
        %1343 = vmatprep.subr.mxu0 0.0
        %1344 = vmatpush1.msra.mxu0 0.0
        %1345 = vmatprep.subr.mxu0 0.0
        %1346 = vmatpush1.msra.mxu0 0.0
        %1347 = vmatprep.subr.mxu0 0.0
        %1348 = vmatpush1.msra.mxu0 0.0
        %1349 = vmatprep.subr.mxu0 0.0
        %1350 = vmatpush1.msra.mxu0 0.0
        %1351 = vmatprep.subr.mxu0 0.0
        %1352 = vmatpush1.msra.mxu0 0.0
        %1353 = vmatprep.mubr.f32.mxu0 0.0
        %1354 = vmatmul.mubr.f32.gmra.mrb[0].mxu0 %v1287
        %v1355 = vpop.f32.mrb[0].mxu0
        %v1356 = vadd.f32 0.0, %v1355
        %v1357 = vpop.f32.mrb[0].mxu0
        %1358 = vdwg.mxu0
        %s1359 = scalar_lea.vmem [#allocation2], 24
        %v1360 = vld [vmem:[%s1359] sm:$0xff]
        %1361 = vrot.lane.b32.xlu0 %v858, 104
        %v1362 = vpop.permute.xlu0 %1361
        %v1363 = vsel %vm869, %v1362, 0
        %1365 = vmatprep.subr.mxu0 0.0
        %1366 = vmatpush1.msra.mxu0 %v1360
        %1367 = vmatprep.subr.mxu0 0.0
        %1368 = vmatpush1.msra.mxu0 0.0
        %1369 = vmatprep.subr.mxu0 0.0
        %1370 = vmatpush1.msra.mxu0 0.0
        %1371 = vmatprep.subr.mxu0 0.0
        %1372 = vmatpush1.msra.mxu0 0.0
        %1373 = vmatprep.subr.mxu0 0.0
        %1374 = vmatpush1.msra.mxu0 0.0
        %1375 = vmatprep.subr.mxu0 0.0
        %1376 = vmatpush1.msra.mxu0 0.0
        %1377 = vmatprep.subr.mxu0 0.0
        %1378 = vmatpush1.msra.mxu0 0.0
        %1379 = vmatprep.subr.mxu0 0.0
        %1380 = vmatpush1.msra.mxu0 0.0
        %1381 = vmatprep.subr.mxu0 0.0
        %1382 = vmatpush1.msra.mxu0 0.0
        %1383 = vmatprep.subr.mxu0 0.0
        %1384 = vmatpush1.msra.mxu0 0.0
        %1385 = vmatprep.subr.mxu0 0.0
        %1386 = vmatpush1.msra.mxu0 0.0
        %1387 = vmatprep.subr.mxu0 0.0
        %1388 = vmatpush1.msra.mxu0 0.0
        %1389 = vmatprep.subr.mxu0 0.0
        %1390 = vmatpush1.msra.mxu0 0.0
        %1391 = vmatprep.subr.mxu0 0.0
        %1392 = vmatpush1.msra.mxu0 0.0
        %1393 = vmatprep.subr.mxu0 0.0
        %1394 = vmatpush1.msra.mxu0 0.0
        %1395 = vmatprep.subr.mxu0 0.0
        %1396 = vmatpush1.msra.mxu0 0.0
        %1397 = vmatprep.subr.mxu0 0.0
        %1398 = vmatpush1.msra.mxu0 0.0
        %1399 = vmatprep.subr.mxu0 0.0
        %1400 = vmatpush1.msra.mxu0 0.0
        %1401 = vmatprep.subr.mxu0 0.0
        %1402 = vmatpush1.msra.mxu0 0.0
        %1403 = vmatprep.subr.mxu0 0.0
        %1404 = vmatpush1.msra.mxu0 0.0
        %1405 = vmatprep.subr.mxu0 0.0
        %1406 = vmatpush1.msra.mxu0 0.0
        %1407 = vmatprep.subr.mxu0 0.0
        %1408 = vmatpush1.msra.mxu0 0.0
        %1409 = vmatprep.subr.mxu0 0.0
        %1410 = vmatpush1.msra.mxu0 0.0
        %1411 = vmatprep.subr.mxu0 0.0
        %1412 = vmatpush1.msra.mxu0 0.0
        %1413 = vmatprep.subr.mxu0 0.0
        %1414 = vmatpush1.msra.mxu0 0.0
        %1415 = vmatprep.subr.mxu0 0.0
        %1416 = vmatpush1.msra.mxu0 0.0
        %1417 = vmatprep.subr.mxu0 0.0
        %1418 = vmatpush1.msra.mxu0 0.0
        %1419 = vmatprep.subr.mxu0 0.0
        %1420 = vmatpush1.msra.mxu0 0.0
        %1421 = vmatprep.subr.mxu0 0.0
        %1422 = vmatpush1.msra.mxu0 0.0
        %1423 = vmatprep.subr.mxu0 0.0
        %1424 = vmatpush1.msra.mxu0 0.0
        %1425 = vmatprep.subr.mxu0 0.0
        %1426 = vmatpush1.msra.mxu0 0.0
        %1427 = vmatprep.subr.mxu0 0.0
        %1428 = vmatpush1.msra.mxu0 0.0
        %1429 = vmatprep.mubr.f32.mxu0 0.0
        %1430 = vmatmul.mubr.f32.gmra.mrb[0].mxu0 %v1363
        %v1431 = vpop.f32.mrb[0].mxu0
        %v1432 = vadd.f32 0.0, %v1431
        %v1433 = vpop.f32.mrb[0].mxu0
        %1434 = vdwg.mxu0
        %v1435 = vsel %vm867, -1.7014117e+38, %v1432
        %v1436 = vsel %vm944, %v1435, -inf
        %1437 = vmax.xlane.f32.xlu0 %v1436
        %v1438 = vpop.xlane.xlu0 %1437
        %v1439 = vsub.f32 %v1435, %v1438
        %v1440 = vmul.f32 %v1439, 1.442695
        %v1441 = vpow.pop %v1440
        %v1442 = vsel %vm944, %v1441, 0.0
        %1443 = vadd.xlane.f32.xlu0 %v1442
        %v1444 = vpop.xlane.xlu0 %1443
        %v1445 = vrcp.pop %v1444
        %v1446 = vmul.f32 %v1441, %v1445
        %s1447 = scalar_lea.vmem [#allocation3], 48
        %v1448 = vld [vmem:[%s1447] sm:$0xff]
        %v1449 = vld [vmem:[%s1447 + $0x8] sm:$0xff]
        %v1451 = vsel %vm944, %v1446, 0
        %1453 = vmatprep.subr.mxu0 0.0
        %1454 = vmatpush1.msra.mxu0 %v1448
        %1455 = vmatprep.subr.mxu0 0.0
        %1456 = vmatpush1.msra.mxu0 %v1449
        %1457 = vmatprep.subr.mxu0 0.0
        %1458 = vmatpush1.msra.mxu0 0.0
        %1459 = vmatprep.subr.mxu0 0.0
        %1460 = vmatpush1.msra.mxu0 0.0
        %1461 = vmatprep.subr.mxu0 0.0
        %1462 = vmatpush1.msra.mxu0 0.0
        %1463 = vmatprep.subr.mxu0 0.0
        %1464 = vmatpush1.msra.mxu0 0.0
        %1465 = vmatprep.subr.mxu0 0.0
        %1466 = vmatpush1.msra.mxu0 0.0
        %1467 = vmatprep.subr.mxu0 0.0
        %1468 = vmatpush1.msra.mxu0 0.0
        %1469 = vmatprep.subr.mxu0 0.0
        %1470 = vmatpush1.msra.mxu0 0.0
        %1471 = vmatprep.subr.mxu0 0.0
        %1472 = vmatpush1.msra.mxu0 0.0
        %1473 = vmatprep.subr.mxu0 0.0
        %1474 = vmatpush1.msra.mxu0 0.0
        %1475 = vmatprep.subr.mxu0 0.0
        %1476 = vmatpush1.msra.mxu0 0.0
        %1477 = vmatprep.subr.mxu0 0.0
        %1478 = vmatpush1.msra.mxu0 0.0
        %1479 = vmatprep.subr.mxu0 0.0
        %1480 = vmatpush1.msra.mxu0 0.0
        %1481 = vmatprep.subr.mxu0 0.0
        %1482 = vmatpush1.msra.mxu0 0.0
        %1483 = vmatprep.subr.mxu0 0.0
        %1484 = vmatpush1.msra.mxu0 0.0
        %1485 = vmatprep.subr.mxu0 0.0
        %1486 = vmatpush1.msra.mxu0 0.0
        %1487 = vmatprep.subr.mxu0 0.0
        %1488 = vmatpush1.msra.mxu0 0.0
        %1489 = vmatprep.subr.mxu0 0.0
        %1490 = vmatpush1.msra.mxu0 0.0
        %1491 = vmatprep.subr.mxu0 0.0
        %1492 = vmatpush1.msra.mxu0 0.0
        %1493 = vmatprep.subr.mxu0 0.0
        %1494 = vmatpush1.msra.mxu0 0.0
        %1495 = vmatprep.subr.mxu0 0.0
        %1496 = vmatpush1.msra.mxu0 0.0
        %1497 = vmatprep.subr.mxu0 0.0
        %1498 = vmatpush1.msra.mxu0 0.0
        %1499 = vmatprep.subr.mxu0 0.0
        %1500 = vmatpush1.msra.mxu0 0.0
        %1501 = vmatprep.subr.mxu0 0.0
        %1502 = vmatpush1.msra.mxu0 0.0
        %1503 = vmatprep.subr.mxu0 0.0
        %1504 = vmatpush1.msra.mxu0 0.0
        %1505 = vmatprep.subr.mxu0 0.0
        %1506 = vmatpush1.msra.mxu0 0.0
        %1507 = vmatprep.subr.mxu0 0.0
        %1508 = vmatpush1.msra.mxu0 0.0
        %1509 = vmatprep.subr.mxu0 0.0
        %1510 = vmatpush1.msra.mxu0 0.0
        %1511 = vmatprep.subr.mxu0 0.0
        %1512 = vmatpush1.msra.mxu0 0.0
        %1513 = vmatprep.subr.mxu0 0.0
        %1514 = vmatpush1.msra.mxu0 0.0
        %1515 = vmatprep.subr.mxu0 0.0
        %1516 = vmatpush1.msra.mxu0 0.0
        %1517 = vmatprep.mubr.f32.mxu0 0.0
        %1518 = vmatmul.mubr.f32.gmra.mrb[0].mxu0 %v1451
        %v1519 = vpop.f32.mrb[0].mxu0
        %v1520 = vadd.f32 0.0, %v1519
        %v1521 = vpop.f32.mrb[0].mxu0
        %1522 = vdwg.mxu0
        %1524 = vrot.lane.b32.xlu0 %v1192, 8
        %v1525 = vpop.permute.xlu0 %1524
        %1528 = vrot.lane.b32.xlu0 %v1356, 16
        %v1529 = vpop.permute.xlu0 %1528
        %1532 = vrot.lane.b32.xlu0 %v1520, 24
        %v1533 = vpop.permute.xlu0 %1532
        %v1535 = vsel %vm869, %v1028, %v1525
        %v1536 = vsel %vm944, %v1535, %v1529
        %vm1537 = vcmask 195584
        %v1538 = vsel %vm1537, %v1536, %v1533
        %v1539 = vadd.f32 %v745, %v1538
        %v1540 = vld [vmem:[%s5] sm:$0x1]
        %v1541 = vld [vmem:[%s6] sm:$0x1]
        %v1542 = vsel %vm746, %v1539, 0.0
        %1543 = vadd.xlane.f32.xlu0 %v1542
        %v1544 = vpop.xlane.xlu0 %1543
        %v1545 = vmul.f32 %v1544, %v750
        %v1546 = vsub.f32 %v1539, %v1545
        %v1547 = vmul.f32 %v1546, %v1546
        %v1548 = vsel %vm746, %v1547, 0.0
        %1549 = vadd.xlane.f32.xlu0 %v1548
        %v1550 = vpop.xlane.xlu0 %1549
        %v1551 = vmul.f32 %v1550, %v757
        %v1552 = vadd.f32 %v1551, 1e-05
        %v1553 = vrsqrt.pop %v1552
        %v1554 = vmul.f32 %v1552, %v1553
        %vm1555 = vcmp.eq.f32.partialorder %v1552, inf
        %v1556 = vsel %vm1555, %v1552, %v1554
        %vm1557 = vcmp.eq.f32.partialorder %v1552, 0.0
        %v1558 = vand.u32 %v1552, 2147483648
        %v1559 = vsel %vm1557, %v1558, %v1556
        %v1560 = vrcp.pop %v1559
        %v1561 = vmul.f32 %v1546, %v1560
        %v1563 = vlaneseq
        %v1564 = vshrl.u32 %v1563, 7
        %v1565 = vsub.s32 0, %v1564
        %v1566 = vrot.slane %v1540, %v1565
        %v1568 = vmul.f32 %v1566, %v1561
        %v1570 = vlaneseq
        %v1571 = vshrl.u32 %v1570, 7
        %v1572 = vsub.s32 0, %v1571
        %v1573 = vrot.slane %v1541, %v1572
        %v1575 = vadd.f32 %v1568, %v1573
        %v1576 = vld [vmem:[%s7] sm:$0xff]
        %v1577 = vld [vmem:[%s7 + $0x8] sm:$0xff]
        %v1578 = vld [vmem:[%s7 + $0x10] sm:$0xff]
        %v1579 = vld [vmem:[%s7 + $0x18] sm:$0xff]
        %v1580 = vld [vmem:[%s8] sm:$0x1]
        %v1582 = vlaneseq
        %v1583 = vshrl.u32 %v1582, 7
        %v1584 = vsub.s32 0, %v1583
        %v1585 = vrot.slane %v1580, %v1584
        %v1588 = vsel %vm746, %v1575, 0
        %1590 = vmatprep.subr.mxu0 0.0
        %1591 = vmatpush1.msra.mxu0 %v1576
        %1592 = vmatprep.subr.mxu0 0.0
        %1593 = vmatpush1.msra.mxu0 %v1577
        %1594 = vmatprep.subr.mxu0 0.0
        %1595 = vmatpush1.msra.mxu0 %v1578
        %1596 = vmatprep.subr.mxu0 0.0
        %1597 = vmatpush1.msra.mxu0 %v1579
        %1598 = vmatprep.subr.mxu0 0.0
        %1599 = vmatpush1.msra.mxu0 0.0
        %1600 = vmatprep.subr.mxu0 0.0
        %1601 = vmatpush1.msra.mxu0 0.0
        %1602 = vmatprep.subr.mxu0 0.0
        %1603 = vmatpush1.msra.mxu0 0.0
        %1604 = vmatprep.subr.mxu0 0.0
        %1605 = vmatpush1.msra.mxu0 0.0
        %1606 = vmatprep.subr.mxu0 0.0
        %1607 = vmatpush1.msra.mxu0 0.0
        %1608 = vmatprep.subr.mxu0 0.0
        %1609 = vmatpush1.msra.mxu0 0.0
        %1610 = vmatprep.subr.mxu0 0.0
        %1611 = vmatpush1.msra.mxu0 0.0
        %1612 = vmatprep.subr.mxu0 0.0
        %1613 = vmatpush1.msra.mxu0 0.0
        %1614 = vmatprep.subr.mxu0 0.0
        %1615 = vmatpush1.msra.mxu0 0.0
        %1616 = vmatprep.subr.mxu0 0.0
        %1617 = vmatpush1.msra.mxu0 0.0
        %1618 = vmatprep.subr.mxu0 0.0
        %1619 = vmatpush1.msra.mxu0 0.0
        %1620 = vmatprep.subr.mxu0 0.0
        %1621 = vmatpush1.msra.mxu0 0.0
        %1622 = vmatprep.subr.mxu0 0.0
        %1623 = vmatpush1.msra.mxu0 0.0
        %1624 = vmatprep.subr.mxu0 0.0
        %1625 = vmatpush1.msra.mxu0 0.0
        %1626 = vmatprep.subr.mxu0 0.0
        %1627 = vmatpush1.msra.mxu0 0.0
        %1628 = vmatprep.subr.mxu0 0.0
        %1629 = vmatpush1.msra.mxu0 0.0
        %1630 = vmatprep.subr.mxu0 0.0
        %1631 = vmatpush1.msra.mxu0 0.0
        %1632 = vmatprep.subr.mxu0 0.0
        %1633 = vmatpush1.msra.mxu0 0.0
        %1634 = vmatprep.subr.mxu0 0.0
        %1635 = vmatpush1.msra.mxu0 0.0
        %1636 = vmatprep.subr.mxu0 0.0
        %1637 = vmatpush1.msra.mxu0 0.0
        %1638 = vmatprep.subr.mxu0 0.0
        %1639 = vmatpush1.msra.mxu0 0.0
        %1640 = vmatprep.subr.mxu0 0.0
        %1641 = vmatpush1.msra.mxu0 0.0
        %1642 = vmatprep.subr.mxu0 0.0
        %1643 = vmatpush1.msra.mxu0 0.0
        %1644 = vmatprep.subr.mxu0 0.0
        %1645 = vmatpush1.msra.mxu0 0.0
        %1646 = vmatprep.subr.mxu0 0.0
        %1647 = vmatpush1.msra.mxu0 0.0
        %1648 = vmatprep.subr.mxu0 0.0
        %1649 = vmatpush1.msra.mxu0 0.0
        %1650 = vmatprep.subr.mxu0 0.0
        %1651 = vmatpush1.msra.mxu0 0.0
        %1652 = vmatprep.subr.mxu0 0.0
        %1653 = vmatpush1.msra.mxu0 0.0
        %1654 = vmatprep.mubr.f32.mxu0 0.0
        %1655 = vmatmul.mubr.f32.gmra.mrb[0].mxu0 %v1588
        %v1656 = vpop.f32.mrb[0].mxu0
        %v1657 = vadd.f32 %v1585, %v1656
        %v1658 = vpop.f32.mrb[0].mxu0
        %1659 = vdwg.mxu0
        %v1660 = vmul.f32 %v1657, 0.5
        %v1661 = vmul.f32 %v1657, 0.044715
        %v1662 = vmul.f32 %v1661, %v1657
        %v1663 = vmul.f32 %v1662, %v1657
        %v1664 = vadd.f32 %v1657, %v1663
        %v1665 = vmul.f32 %v1664, 0.7978846
        %v1666 = vtanh.pop %v1665
        %v1667 = vadd.f32 %v1666, 1.0
        %v1668 = vmul.f32 %v1660, %v1667
        %v1669 = vld [vmem:[%s9] sm:$0xff]
        %v1670 = vld [vmem:[%s9 + $0x8] sm:$0xff]
        %v1671 = vld [vmem:[%s9 + $0x10] sm:$0xff]
        %v1672 = vld [vmem:[%s9 + $0x18] sm:$0xff]
        %v1673 = vld [vmem:[%s9 + $0x20] sm:$0xff]
        %v1674 = vld [vmem:[%s9 + $0x28] sm:$0xff]
        %v1675 = vld [vmem:[%s9 + $0x30] sm:$0xff]
        %v1676 = vld [vmem:[%s9 + $0x38] sm:$0xff]
        %v1677 = vld [vmem:[%s9 + $0x40] sm:$0xff]
        %v1678 = vld [vmem:[%s9 + $0x48] sm:$0xff]
        %v1679 = vld [vmem:[%s9 + $0x50] sm:$0xff]
        %v1680 = vld [vmem:[%s9 + $0x58] sm:$0xff]
        %v1681 = vld [vmem:[%s9 + $0x60] sm:$0xff]
        %v1682 = vld [vmem:[%s9 + $0x68] sm:$0xff]
        %v1683 = vld [vmem:[%s9 + $0x70] sm:$0xff]
        %v1684 = vld [vmem:[%s9 + $0x78] sm:$0xff]
        %v1685 = vld [vmem:[%s10] sm:$0x1]
        %v1687 = vlaneseq
        %v1688 = vshrl.u32 %v1687, 7
        %v1689 = vsub.s32 0, %v1688
        %v1690 = vrot.slane %v1685, %v1689
        %1692 = vmatprep.subr.mxu0 0.0
        %1693 = vmatpush1.msra.mxu0 %v1669
        %1694 = vmatprep.subr.mxu0 0.0
        %1695 = vmatpush1.msra.mxu0 %v1670
        %1696 = vmatprep.subr.mxu0 0.0
        %1697 = vmatpush1.msra.mxu0 %v1671
        %1698 = vmatprep.subr.mxu0 0.0
        %1699 = vmatpush1.msra.mxu0 %v1672
        %1700 = vmatprep.subr.mxu0 0.0
        %1701 = vmatpush1.msra.mxu0 %v1673
        %1702 = vmatprep.subr.mxu0 0.0
        %1703 = vmatpush1.msra.mxu0 %v1674
        %1704 = vmatprep.subr.mxu0 0.0
        %1705 = vmatpush1.msra.mxu0 %v1675
        %1706 = vmatprep.subr.mxu0 0.0
        %1707 = vmatpush1.msra.mxu0 %v1676
        %1708 = vmatprep.subr.mxu0 0.0
        %1709 = vmatpush1.msra.mxu0 %v1677
        %1710 = vmatprep.subr.mxu0 0.0
        %1711 = vmatpush1.msra.mxu0 %v1678
        %1712 = vmatprep.subr.mxu0 0.0
        %1713 = vmatpush1.msra.mxu0 %v1679
        %1714 = vmatprep.subr.mxu0 0.0
        %1715 = vmatpush1.msra.mxu0 %v1680
        %1716 = vmatprep.subr.mxu0 0.0
        %1717 = vmatpush1.msra.mxu0 %v1681
        %1718 = vmatprep.subr.mxu0 0.0
        %1719 = vmatpush1.msra.mxu0 %v1682
        %1720 = vmatprep.subr.mxu0 0.0
        %1721 = vmatpush1.msra.mxu0 %v1683
        %1722 = vmatprep.subr.mxu0 0.0
        %1723 = vmatpush1.msra.mxu0 %v1684
        %1724 = vmatprep.subr.mxu0 0.0
        %1725 = vmatpush1.msra.mxu0 0.0
        %1726 = vmatprep.subr.mxu0 0.0
        %1727 = vmatpush1.msra.mxu0 0.0
        %1728 = vmatprep.subr.mxu0 0.0
        %1729 = vmatpush1.msra.mxu0 0.0
        %1730 = vmatprep.subr.mxu0 0.0
        %1731 = vmatpush1.msra.mxu0 0.0
        %1732 = vmatprep.subr.mxu0 0.0
        %1733 = vmatpush1.msra.mxu0 0.0
        %1734 = vmatprep.subr.mxu0 0.0
        %1735 = vmatpush1.msra.mxu0 0.0
        %1736 = vmatprep.subr.mxu0 0.0
        %1737 = vmatpush1.msra.mxu0 0.0
        %1738 = vmatprep.subr.mxu0 0.0
        %1739 = vmatpush1.msra.mxu0 0.0
        %1740 = vmatprep.subr.mxu0 0.0
        %1741 = vmatpush1.msra.mxu0 0.0
        %1742 = vmatprep.subr.mxu0 0.0
        %1743 = vmatpush1.msra.mxu0 0.0
        %1744 = vmatprep.subr.mxu0 0.0
        %1745 = vmatpush1.msra.mxu0 0.0
        %1746 = vmatprep.subr.mxu0 0.0
        %1747 = vmatpush1.msra.mxu0 0.0
        %1748 = vmatprep.subr.mxu0 0.0
        %1749 = vmatpush1.msra.mxu0 0.0
        %1750 = vmatprep.subr.mxu0 0.0
        %1751 = vmatpush1.msra.mxu0 0.0
        %1752 = vmatprep.subr.mxu0 0.0
        %1753 = vmatpush1.msra.mxu0 0.0
        %1754 = vmatprep.subr.mxu0 0.0
        %1755 = vmatpush1.msra.mxu0 0.0
        %1756 = vmatprep.mubr.f32.mxu0 0.0
        %1757 = vmatmul.mubr.f32.gmra.mrb[0].mxu0 %v1668
        %v1758 = vpop.f32.mrb[0].mxu0
        %v1759 = vadd.f32 %v1690, %v1758
        %v1760 = vpop.f32.mrb[0].mxu0
        %1761 = vdwg.mxu0
        %v1762 = vadd.f32 %v1539, %v1759
        %1763 = vst.msk [vmem:[%s393] sm:$0xff] %vm746, %v1762
        %s1764 = sand.u32 %s283, 1
        %s1765 = scalar_lea.sflag [#allocation5], %s1764
        %s1766 = sand.u32 %s283, 1
        %s1767 = smul.addr %s1766, 8
        %s1768 = scalar_lea.vmem [#allocation4], %s1767
        // Predicated region
        $region69: #{tpu_custom_call.1} parent=63 // pred_check
          %p1769 = pneg %p293
        $region70: #{tpu_custom_call.1} parent=63 // pred_check_branch
          %1771 = sbr.rel (%p1769) target = $region72
        $region71: #{tpu_custom_call.1} parent=63 // pred_region
          %s1773 = ssub.s32 128, 128
          %1774 = vsyncadd %s1765, %s1773
          %s1775 = smul.addr %s29, 2
          %s1776 = sadd.s32 %s30, %s1775
          %s1777 = smul.addr %s1776, 128
          %s1778 = scalar_lea.hbm %s11, %s1777
          %s1780 = sshll.u32 %s1768, 4
          %s1781 = int_to_ptr.vmem [resolvable:$true] %s1780
          %1783 = dma.vmem_to_hbm [thread:$0]  %s1781, 128, %s1778, %s1765
        $region72: #{tpu_custom_call.1} parent=63 // pred_fallthru
          _
      $region64: #{tpu_custom_call.1} parent=5 // pred_fallthru
        _
      %p1784 = scmp.le.s32.totalorder 2, %s20
      // Predicated region
      $region73: #{tpu_custom_call.1} parent=5 // pred_check
        %p1785 = pneg %p1784
      $region74: #{tpu_custom_call.1} parent=5 // pred_check_branch
        %1787 = sbr.rel (%p1785) target = $region76
      $region75: #{tpu_custom_call.1} parent=5 // pred_region
        %s1788 = ssub.s32 %s20, 2
        // Predicated region
        $region77: #{tpu_custom_call.1} parent=75 // pred_check
          %p1789 = pneg %p299
        $region78: #{tpu_custom_call.1} parent=75 // pred_check_branch
          %1791 = sbr.rel (%p1789) target = $region80
        $region79: #{tpu_custom_call.1} parent=75 // pred_region
          %s1792 = sand.u32 %s284, 1
          %s1793 = scalar_lea.sflag [#allocation5], %s1792
          %s1794 = sand.u32 %s284, 1
          %s1795 = smul.addr %s1794, 8
          %s1796 = scalar_lea.vmem [#allocation4], %s1795
          %1797 = dma.done %s1793, 128
        $region80: #{tpu_custom_call.1} parent=75 // pred_fallthru
          _
      $region76: #{tpu_custom_call.1} parent=5 // pred_fallthru
        _
    $region6: #{tpu_custom_call.1} parent=1 // loop_footer
      %s24 = sadd.s32 1, %s20
    $region7: #{tpu_custom_call.1} parent=1 // loop_footer_branch
      %19 = sbr.rel target = $region3
    $region8: #{tpu_custom_call.1} parent=1 // loop_exit
      _
    %1798 = vsyncpa [#allocation5], 1
    %s1799 = scalar_lea.sflag [#allocation5], 1
    %1800 = vsyncpa %s1799, 1

</llo_original>
